<compile_context>
chip_gen: v6e
topology: v6e:2x2x1
jax: 0.10.0
libtpu: 0.0.40
codegen_flags: <defaults>
</compile_context>

<pallas_src>
import functools

import numpy as np
import jax
import jax.numpy as jnp
from jax import lax
from jax.experimental import pallas as pl
from jax.experimental.pallas import tpu as pltpu


# ----------------------------------------------------------------------------
# Fused kernel
# ----------------------------------------------------------------------------
def _snli_kernel(ids_ref, emb_ref, wih_ref, bih_ref, whh_ref,
                 ws1_ref, ws2_ref, fcw_ref, fcb_ref, wout_ref, bout_ref,
                 out_ref,
                 gx_ref, hsf_ref, hsb_ref,
                 *, B, T, H, r):
    f32 = jnp.float32
    N = T * B                 # time-major rows: n = t*B + b
    H2 = 2 * H                # [prem | hyp] width for one direction
    G = 4 * H                 # one gate block: chains [p_fwd, h_fwd, p_bwd, h_bwd]
    V2 = emb_ref.shape[0]     # combined (premise + hypothesis) vocab rows

    def sigmoid(x):           # tanh-only formulation: one EUP push
        return 0.5 * jnp.tanh(0.5 * x) + 0.5

    def onez(cond):           # 0/1 float mask
        return jnp.where(cond, 1.0, 0.0).astype(f32)

    # ---- 1. Embedding lookup: ONE one-hot matmul for both encoders ----------
    lane_v = lax.broadcasted_iota(jnp.int32, (N, V2), 1)
    onehot = onez((lane_v == ids_ref[0]) | (lane_v == ids_ref[1]))        # (N, 2V)
    x2 = jnp.dot(onehot, emb_ref[...], preferred_element_type=f32)        # (N, 2E)

    # ---- 2. Hoisted input projection: ONE dot for 2 encoders x 2 dirs -------
    gx_ref[...] = (jnp.dot(x2, wih_ref[...], preferred_element_type=f32)
                   + bih_ref[...])                                        # (N, 16H)

    # ---- 3. Fused recurrence: 4 LSTM chains, ONE MXU dot per step -----------
    whh = whh_ref[...]                                                    # (4H, 16H)
    lane_g = lax.broadcasted_iota(jnp.int32, (1, 4 * G), 1)
    fwd_lanes = (lane_g % G) < H2          # fwd chains within each gate block

    def step(t, carry):
        h, c = carry
        tb = T - 1 - t
        # fwd chains consume timestep t, bwd chains timestep T-1-t
        gx_t = jnp.where(fwd_lanes,
                         gx_ref[pl.ds(t * B, B)],
                         gx_ref[pl.ds(tb * B, B)])                        # (B, 16H)
        gates = gx_t + jnp.dot(h, whh, preferred_element_type=f32)        # ONE dot
        sg = sigmoid(gates[:, :3 * G])     # [i | f | o] in one transcendental push
        gg = jnp.tanh(gates[:, 3 * G:])    # candidate g
        c = sg[:, G:2 * G] * c + sg[:, :G] * gg
        h = sg[:, 2 * G:3 * G] * jnp.tanh(c)                              # (B, 4H)
        hsf_ref[pl.ds(t * B, B)] = h[:, :H2]       # lanes [p_fwd | h_fwd]
        hsb_ref[pl.ds(tb * B, B)] = h[:, H2:]      # lanes [p_bwd | h_bwd]
        return h, c

    z = jnp.zeros((B, G), f32)
    lax.fori_loop(0, T, step, (z, z), unroll=True)

    # ---- 4. Structured self-attention, both encoders in one pass ------------
    h4 = jnp.concatenate([hsf_ref[...], hsb_ref[...]], axis=-1)           # (N, 4H)
    u = jnp.tanh(jnp.dot(h4, ws1_ref[...], preferred_element_type=f32))   # (N, 2*da)
    s = jnp.dot(u, ws2_ref[...], preferred_element_type=f32)              # (N, 2*r)

    # Softmax over time (rows of the same batch element).  Shift by the global
    # max (mathematically identical per-column, keeps exp() in range).
    smax = jnp.max(jnp.max(s, axis=0, keepdims=True), axis=1, keepdims=True)
    ex = jnp.exp(s - smax)                                                # (N, 2r)

    # Segment-sums over time via a constant 0/1 selection matrix.
    sel_bn = onez(lax.broadcasted_iota(jnp.int32, (B, N), 1) % B
                  == lax.broadcasted_iota(jnp.int32, (B, N), 0))          # (B, N)
    sel_nb = onez(lax.broadcasted_iota(jnp.int32, (N, B), 0) % B
                  == lax.broadcasted_iota(jnp.int32, (N, B), 1))          # (N, B)
    denom = jnp.dot(sel_bn, ex, preferred_element_type=f32)               # (B, 2r)
    a = ex * jnp.dot(sel_nb, pl.reciprocal(denom, approx=True),
                     preferred_element_type=f32)                          # (N, 2r)

    # Per-hop attention-weighted hidden states (premise / hypothesis attention
    # blended per lane group), lane-packed over hops, pooled over time with the
    # same selection matmul, then projected with ONE K = r*4H dot.
    lane_h = lax.broadcasted_iota(jnp.int32, (1, G), 1)
    prem_lanes = (lane_h % H2) < H
    cols = [jnp.where(prem_lanes, a[:, j:j + 1], a[:, r + j:r + j + 1]) * h4
            for j in range(r)]
    w = jnp.concatenate(cols, axis=-1)                                    # (N, r*4H)
    pooled = jnp.dot(sel_bn, w, preferred_element_type=f32)               # (B, r*4H)
    enc = (jnp.dot(pooled, fcw_ref[...], preferred_element_type=f32)
           + fcb_ref[...])                                                # (B, 2H)

    # ---- 5. Combine [p, p*h, p-h, h] + output linear (one K=4H dot) ---------
    enc_p = enc[:, :H]
    enc_h = enc[:, H:]
    soft_in = jnp.concatenate([enc_p, enc_p * enc_h, enc_p - enc_h, enc_h], axis=-1)
    out_ref[...] = (jnp.dot(soft_in, wout_ref[...], preferred_element_type=f32)
                    + bout_ref[...])                                      # (B, C)


# ----------------------------------------------------------------------------
# One-time weight packing (outside the per-call path)
# ----------------------------------------------------------------------------
# Target gate-block order inside each 16H gate tensor is (i, f, o, g);
# source LSTM weights use the PyTorch order (i, f, g, o).
_GATE_PERM = (0, 1, 3, 2)


def pack_model(prem, hyp, w_out, b_out):
    def npf(a):
        return np.asarray(a, np.float32)

    E, H4 = npf(prem['wih_f']).shape
    H = H4 // 4
    V = npf(prem['embedding']).shape[0]
    da = npf(prem['ws1']).shape[1]
    r = npf(prem['ws2']).shape[1]
    hid = npf(prem['fcb']).shape[1]
    assert hid == H, "encoder output dim must equal hidden_size"
    G = 4 * H

    # chain order = lane order in the kernel: [p_fwd, h_fwd, p_bwd, h_bwd]
    chains = ((prem, 'f', 0), (hyp, 'f', E), (prem, 'b', 0), (hyp, 'b', E))

    emb = np.zeros((2 * V, 2 * E), np.float32)            # block-diag [prem | hyp]
    emb[:V, :E] = npf(prem['embedding'])
    emb[V:, E:] = npf(hyp['embedding'])

    wih = np.zeros((2 * E, 4 * G), np.float32)
    whh = np.zeros((G, 4 * G), np.float32)
    bih = np.zeros((1, 4 * G), np.float32)
    for c, (p, d, roff) in enumerate(chains):
        w_i, w_h, b = npf(p['wih_' + d]), npf(p['whh_' + d]), npf(p['b_' + d])
        for k, gs in enumerate(_GATE_PERM):
            col = slice(k * G + c * H, k * G + (c + 1) * H)
            src = slice(gs * H, (gs + 1) * H)
            wih[roff:roff + E, col] = w_i[:, src]
            whh[c * H:(c + 1) * H, col] = w_h[:, src]
            bih[0, col] = b[0, src]

    # hidden lanes are [p_fwd, h_fwd, p_bwd, h_bwd]; source ws1/fcw rows are
    # [fwd H | bwd H] per encoder.
    ws1 = np.zeros((G, 2 * da), np.float32)
    ws1[0 * H:1 * H, :da] = npf(prem['ws1'])[:H]
    ws1[2 * H:3 * H, :da] = npf(prem['ws1'])[H:]
    ws1[1 * H:2 * H, da:] = npf(hyp['ws1'])[:H]
    ws1[3 * H:4 * H, da:] = npf(hyp['ws1'])[H:]

    ws2 = np.zeros((2 * da, 2 * r), np.float32)
    ws2[:da, :r] = npf(prem['ws2'])
    ws2[da:, r:] = npf(hyp['ws2'])

    fcw_p = npf(prem['fcw']).reshape(r, 2 * H, hid)
    fcw_h = npf(hyp['fcw']).reshape(r, 2 * H, hid)
    fcw = np.zeros((r * G, 2 * hid), np.float32)
    for j in range(r):
        base = j * G
        fcw[base + 0 * H: base + 1 * H, :hid] = fcw_p[j, :H]     # p_fwd
        fcw[base + 2 * H: base + 3 * H, :hid] = fcw_p[j, H:]     # p_bwd
        fcw[base + 1 * H: base + 2 * H, hid:] = fcw_h[j, :H]     # h_fwd
        fcw[base + 3 * H: base + 4 * H, hid:] = fcw_h[j, H:]     # h_bwd

    fcb = np.concatenate([npf(prem['fcb']), npf(hyp['fcb'])], axis=1)

    packed = dict(emb=emb, wih=wih, bih=bih, whh=whh, ws1=ws1, ws2=ws2,
                  fcw=fcw, fcb=fcb, w_out=npf(w_out), b_out=npf(b_out))
    return {k: jnp.asarray(v) for k, v in packed.items()}


# ----------------------------------------------------------------------------
# Per-call wrapper
# ----------------------------------------------------------------------------
def _full_spec(shape):
    nd = len(shape)
    return pl.BlockSpec(shape, lambda *_: (0,) * nd)


def snli_bilstm_attentive_forward(x_prem_tok, x_hyp_tok, packed):
    B, T = x_prem_tok.shape
    V = packed['emb'].shape[0] // 2
    H = packed['whh'].shape[0] // 4
    r = packed['ws2'].shape[1] // 2
    C = packed['w_out'].shape[1]

    # Time-major token-id rows (n = t*B + b); hypothesis ids index the second
    # half of the block-diagonal combined embedding table.
    ids_p = x_prem_tok.T.reshape(T * B, 1).astype(jnp.int32)
    ids_h = x_hyp_tok.T.reshape(T * B, 1).astype(jnp.int32) + V
    ids = jnp.stack([ids_p, ids_h], axis=0)                     # (2, T*B, 1)

    args = (ids, packed['emb'], packed['wih'], packed['bih'], packed['whh'],
            packed['ws1'], packed['ws2'], packed['fcw'], packed['fcb'],
            packed['w_out'], packed['b_out'])

    kernel = functools.partial(_snli_kernel, B=B, T=T, H=H, r=r)
    return pl.pallas_call(
        kernel,
        out_shape=jax.ShapeDtypeStruct((B, C), jnp.float32),
        in_specs=[_full_spec(a.shape) for a in args],
        out_specs=_full_spec((B, C)),
        scratch_shapes=[
            pltpu.VMEM((T * B, 16 * H), jnp.float32),  # gate pre-activations
            pltpu.VMEM((T * B, 2 * H), jnp.float32),   # fwd hidden  [prem | hyp]
            pltpu.VMEM((T * B, 2 * H), jnp.float32),   # bwd hidden  [prem | hyp]
        ],
        compiler_params=pltpu.CompilerParams(vmem_limit_bytes=32 * 1024 * 1024),
    )(*args)


# ----------------------------------------------------------------------------
# Parameter init (random, self-contained)
# ----------------------------------------------------------------------------
def init_encoder_params(key, *, top_words, E, H, da, r, hidden_out):
    ks = jax.random.split(key, 11)
    s = 0.1
    # NOTE: PyTorch LSTM has b_ih and b_hh; a single bias per direction is used
    # here (equivalent to their sum when porting trained weights).
    return {
        'embedding': jax.random.normal(ks[0], (top_words, E), jnp.float32) * s,
        'wih_f': jax.random.normal(ks[1], (E, 4 * H), jnp.float32) * s,
        'whh_f': jax.random.normal(ks[2], (H, 4 * H), jnp.float32) * s,
        'b_f':   jax.random.normal(ks[3], (1, 4 * H), jnp.float32) * s,
        'wih_b': jax.random.normal(ks[4], (E, 4 * H), jnp.float32) * s,
        'whh_b': jax.random.normal(ks[5], (H, 4 * H), jnp.float32) * s,
        'b_b':   jax.random.normal(ks[6], (1, 4 * H), jnp.float32) * s,
        'ws1':   jax.random.normal(ks[7], (2 * H, da), jnp.float32) * s,
        'ws2':   jax.random.normal(ks[8], (da, r), jnp.float32) * s,
        'fcw':   jax.random.normal(ks[9], (r * 2 * H, hidden_out), jnp.float32) * s,
        'fcb':   jax.random.normal(ks[10], (1, hidden_out), jnp.float32) * s,
    }


if __name__ == "__main__":
    # Small, consistent shapes.
    B, T = 2, 8            # batch, max_seq_len
    E = 32                 # emb_dim
    H = 16                 # hidden_size (per LSTM direction; also encoder output dim)
    da, r = 8, 4
    NUM_CLASSES = 3
    TOP_WORDS = 100

    key = jax.random.PRNGKey(0)
    k_prem, k_hyp, k_out, k_xp, k_xh = jax.random.split(key, 5)

    prem_params = init_encoder_params(k_prem, top_words=TOP_WORDS, E=E, H=H,
                                      da=da, r=r, hidden_out=H)
    hyp_params = init_encoder_params(k_hyp, top_words=TOP_WORDS, E=E, H=H,
                                     da=da, r=r, hidden_out=H)
    w_out = jax.random.normal(k_out, (4 * H, NUM_CLASSES), jnp.float32) * 0.1
    b_out = jnp.zeros((1, NUM_CLASSES), jnp.float32)

    x_prem = jax.random.randint(k_xp, (B, T), 0, TOP_WORDS, dtype=jnp.int32)
    x_hyp = jax.random.randint(k_xh, (B, T), 0, TOP_WORDS, dtype=jnp.int32)

    packed = pack_model(prem_params, hyp_params, w_out, b_out)   # once, off the hot path
    fwd = jax.jit(snli_bilstm_attentive_forward)

    logits = fwd(x_prem, x_hyp, packed)
    logits = jax.block_until_ready(logits)
    assert logits.shape == (B, NUM_CLASSES), logits.shape
    print("KERNEL_OK")
</pallas_src>

<mosaic_0001>
module attributes {stable_mosaic.version = 11 : i64} {
  func.func @_snli_kernel(%arg0: memref<2x16x1xi32, #tpu.memory_space<vmem>>, %arg1: memref<200x64xf32, #tpu.memory_space<vmem>>, %arg2: memref<64x256xf32, #tpu.memory_space<vmem>>, %arg3: memref<1x256xf32, #tpu.memory_space<vmem>>, %arg4: memref<64x256xf32, #tpu.memory_space<vmem>>, %arg5: memref<64x16xf32, #tpu.memory_space<vmem>>, %arg6: memref<16x8xf32, #tpu.memory_space<vmem>>, %arg7: memref<256x32xf32, #tpu.memory_space<vmem>>, %arg8: memref<1x32xf32, #tpu.memory_space<vmem>>, %arg9: memref<64x3xf32, #tpu.memory_space<vmem>>, %arg10: memref<1x3xf32, #tpu.memory_space<vmem>>, %arg11: memref<2x3xf32, #tpu.memory_space<vmem>>, %arg12: memref<16x256xf32, #tpu.memory_space<vmem>>, %arg13: memref<16x32xf32, #tpu.memory_space<vmem>>, %arg14: memref<16x32xf32, #tpu.memory_space<vmem>>) attributes {dimension_semantics = [], scalar_prefetch = 0 : i64, scratch_operands = 3 : i64, tpu.core_type = #tpu.core_type<tc>} {
    %0 = tpu.iota {dimensions = array<i32: 1>} : vector<16x200xi32>
    %c0 = arith.constant 0 : index
    %c0_0 = arith.constant 0 : index
    %c0_1 = arith.constant 0 : index
    %1 = vector.load %arg0[%c0, %c0_0, %c0_1] : memref<2x16x1xi32, #tpu.memory_space<vmem>>, vector<1x16x1xi32>
    %2 = vector.shape_cast %1 : vector<1x16x1xi32> to vector<16x1xi32>
    %3 = vector.broadcast %2 : vector<16x1xi32> to vector<16x200xi32>
    %4 = arith.cmpi eq, %0, %3 : vector<16x200xi32>
    %c1 = arith.constant 1 : index
    %c0_2 = arith.constant 0 : index
    %c0_3 = arith.constant 0 : index
    %5 = vector.load %arg0[%c1, %c0_2, %c0_3] : memref<2x16x1xi32, #tpu.memory_space<vmem>>, vector<1x16x1xi32>
    %6 = vector.shape_cast %5 : vector<1x16x1xi32> to vector<16x1xi32>
    %7 = vector.broadcast %6 : vector<16x1xi32> to vector<16x200xi32>
    %8 = arith.cmpi eq, %0, %7 : vector<16x200xi32>
    %9 = arith.ori %4, %8 : vector<16x200xi1>
    %cst = arith.constant 1.000000e+00 : f32
    %cst_4 = arith.constant 0.000000e+00 : f32
    %10 = vector.broadcast %cst : f32 to vector<16x200xf32>
    %11 = vector.broadcast %cst_4 : f32 to vector<16x200xf32>
    %12 = arith.select %9, %10, %11 : vector<16x200xi1>, vector<16x200xf32>
    %c0_5 = arith.constant 0 : index
    %c0_6 = arith.constant 0 : index
    %13 = vector.load %arg1[%c0_5, %c0_6] : memref<200x64xf32, #tpu.memory_space<vmem>>, vector<200x64xf32>
    %cst_7 = arith.constant dense<0.000000e+00> : vector<16x64xf32>
    %14 = tpu.matmul %12, %13, %cst_7 {dimension_numbers = #tpu.dot_dimension_numbers<[1], [0], [0], [1], [0, 0, 1, 1], [], []>} : vector<16x200xf32>, vector<200x64xf32>, vector<16x64xf32> -> vector<16x64xf32>
    %c0_8 = arith.constant 0 : index
    %c0_9 = arith.constant 0 : index
    %15 = vector.load %arg2[%c0_8, %c0_9] : memref<64x256xf32, #tpu.memory_space<vmem>>, vector<64x256xf32>
    %cst_10 = arith.constant dense<0.000000e+00> : vector<16x256xf32>
    %16 = tpu.matmul %14, %15, %cst_10 {dimension_numbers = #tpu.dot_dimension_numbers<[1], [0], [0], [1], [0, 0, 1, 1], [], []>} : vector<16x64xf32>, vector<64x256xf32>, vector<16x256xf32> -> vector<16x256xf32>
    %c0_11 = arith.constant 0 : index
    %c0_12 = arith.constant 0 : index
    %17 = vector.load %arg3[%c0_11, %c0_12] : memref<1x256xf32, #tpu.memory_space<vmem>>, vector<1x256xf32>
    %18 = vector.broadcast %17 : vector<1x256xf32> to vector<16x256xf32>
    %19 = arith.addf %16, %18 : vector<16x256xf32>
    %c0_13 = arith.constant 0 : index
    %c0_14 = arith.constant 0 : index
    %20 = vector.load %arg12[%c0_13, %c0_14] : memref<16x256xf32, #tpu.memory_space<vmem>>, vector<16x256xf32>
    tpu.vector_store %arg12[%c0_13, %c0_14], %19 {strides = array<i32>} : memref<16x256xf32, #tpu.memory_space<vmem>>, vector<16x256xf32>,
    %c0_15 = arith.constant 0 : index
    %c0_16 = arith.constant 0 : index
    %21 = vector.load %arg4[%c0_15, %c0_16] : memref<64x256xf32, #tpu.memory_space<vmem>>, vector<64x256xf32>
    %22 = tpu.iota {dimensions = array<i32: 1>} : vector<1x256xi32>
    %c64_i32 = arith.constant 64 : i32
    %c0_i32 = arith.constant 0 : i32
    %23 = arith.cmpi eq, %c64_i32, %c0_i32 : i32
    %c1_i32 = arith.constant 1 : i32
    %24 = arith.select %23, %c1_i32, %c64_i32 : i32
    %25 = vector.broadcast %24 : i32 to vector<1x256xi32>
    %26 = arith.remsi %22, %25 : vector<1x256xi32>
    %c0_i32_17 = arith.constant 0 : i32
    %27 = vector.broadcast %c0_i32_17 : i32 to vector<1x256xi32>
    %28 = arith.cmpi ne, %26, %27 : vector<1x256xi32>
    %c0_i32_18 = arith.constant 0 : i32
    %29 = vector.broadcast %c0_i32_18 : i32 to vector<1x256xi32>
    %30 = arith.cmpi slt, %26, %29 : vector<1x256xi32>
    %c0_i32_19 = arith.constant 0 : i32
    %31 = arith.cmpi slt, %24, %c0_i32_19 : i32
    %32 = vector.broadcast %31 : i1 to vector<1x256xi1>
    %33 = vector.broadcast %32 : vector<1x256xi1> to vector<1x256xi1>
    %34 = arith.xori %30, %33 : vector<1x256xi1>
    %35 = arith.andi %34, %28 : vector<1x256xi1>
    %36 = vector.broadcast %24 : i32 to vector<1x256xi32>
    %37 = arith.addi %26, %36 : vector<1x256xi32>
    %38 = arith.select %35, %37, %26 : vector<1x256xi1>, vector<1x256xi32>
    %c32_i32 = arith.constant 32 : i32
    %39 = vector.broadcast %c32_i32 : i32 to vector<1x256xi32>
    %40 = arith.cmpi slt, %38, %39 : vector<1x256xi32>
    %cst_20 = arith.constant 0.000000e+00 : f32
    %41 = vector.broadcast %cst_20 : f32 to vector<2x64xf32>
    %c0_i32_21 = arith.constant 0 : i32
    %c7_i32 = arith.constant 7 : i32
    %42 = arith.subi %c7_i32, %c0_i32_21 : i32
    %c2_i32 = arith.constant 2 : i32
    %43 = arith.muli %c0_i32_21, %c2_i32 : i32
    %44 = arith.index_cast %43 : i32 to index
    %c0_22 = arith.constant 0 : index
    %45 = vector.load %arg12[%44, %c0_22] : memref<16x256xf32, #tpu.memory_space<vmem>>, vector<2x256xf32>
    %c2_i32_23 = arith.constant 2 : i32
    %46 = arith.muli %42, %c2_i32_23 : i32
    %47 = arith.index_cast %46 : i32 to index
    %c0_24 = arith.constant 0 : index
    %48 = vector.load %arg12[%47, %c0_24] : memref<16x256xf32, #tpu.memory_space<vmem>>, vector<2x256xf32>
    %49 = vector.shape_cast %40 : vector<1x256xi1> to vector<1x256xi1>
    %50 = vector.broadcast %49 : vector<1x256xi1> to vector<2x256xi1>
    %51 = arith.select %50, %45, %48 : vector<2x256xi1>, vector<2x256xf32>
    %cst_25 = arith.constant dense<0.000000e+00> : vector<2x256xf32>
    %52 = tpu.matmul %41, %21, %cst_25 {dimension_numbers = #tpu.dot_dimension_numbers<[1], [0], [0], [1], [0, 0, 1, 1], [], []>} : vector<2x64xf32>, vector<64x256xf32>, vector<2x256xf32> -> vector<2x256xf32>
    %53 = arith.addf %51, %52 : vector<2x256xf32>
    %54 = vector.extract_strided_slice %53 {offsets = [0, 0], sizes = [2, 192], strides = [1, 1]} : vector<2x256xf32> to vector<2x192xf32>
    %cst_26 = arith.constant 5.000000e-01 : f32
    %55 = vector.broadcast %cst_26 : f32 to vector<2x192xf32>
    %56 = arith.mulf %55, %54 : vector<2x192xf32>
    %57 = math.tanh %56 : vector<2x192xf32>
    %cst_27 = arith.constant 5.000000e-01 : f32
    %58 = vector.broadcast %cst_27 : f32 to vector<2x192xf32>
    %59 = arith.mulf %58, %57 : vector<2x192xf32>
    %cst_28 = arith.constant 5.000000e-01 : f32
    %60 = vector.broadcast %cst_28 : f32 to vector<2x192xf32>
    %61 = arith.addf %59, %60 : vector<2x192xf32>
    %62 = vector.extract_strided_slice %53 {offsets = [0, 192], sizes = [2, 64], strides = [1, 1]} : vector<2x256xf32> to vector<2x64xf32>
    %63 = math.tanh %62 : vector<2x64xf32>
    %64 = vector.extract_strided_slice %61 {offsets = [0, 64], sizes = [2, 64], strides = [1, 1]} : vector<2x192xf32> to vector<2x64xf32>
    %65 = arith.mulf %64, %41 : vector<2x64xf32>
    %66 = vector.extract_strided_slice %61 {offsets = [0, 0], sizes = [2, 64], strides = [1, 1]} : vector<2x192xf32> to vector<2x64xf32>
    %67 = arith.mulf %66, %63 : vector<2x64xf32>
    %68 = arith.addf %65, %67 : vector<2x64xf32>
    %69 = vector.extract_strided_slice %61 {offsets = [0, 128], sizes = [2, 64], strides = [1, 1]} : vector<2x192xf32> to vector<2x64xf32>
    %70 = math.tanh %68 : vector<2x64xf32>
    %71 = arith.mulf %69, %70 : vector<2x64xf32>
    %72 = vector.extract_strided_slice %71 {offsets = [0, 0], sizes = [2, 32], strides = [1, 1]} : vector<2x64xf32> to vector<2x32xf32>
    %c2_i32_29 = arith.constant 2 : i32
    %73 = arith.muli %c0_i32_21, %c2_i32_29 : i32
    %74 = arith.index_cast %73 : i32 to index
    %c0_30 = arith.constant 0 : index
    %75 = vector.load %arg13[%74, %c0_30] : memref<16x32xf32, #tpu.memory_space<vmem>>, vector<2x32xf32>
    tpu.vector_store %arg13[%74, %c0_30], %72 {strides = array<i32>} : memref<16x32xf32, #tpu.memory_space<vmem>>, vector<2x32xf32>,
    %76 = vector.extract_strided_slice %71 {offsets = [0, 32], sizes = [2, 32], strides = [1, 1]} : vector<2x64xf32> to vector<2x32xf32>
    %c2_i32_31 = arith.constant 2 : i32
    %77 = arith.muli %42, %c2_i32_31 : i32
    %78 = arith.index_cast %77 : i32 to index
    %c0_32 = arith.constant 0 : index
    %79 = vector.load %arg14[%78, %c0_32] : memref<16x32xf32, #tpu.memory_space<vmem>>, vector<2x32xf32>
    tpu.vector_store %arg14[%78, %c0_32], %76 {strides = array<i32>} : memref<16x32xf32, #tpu.memory_space<vmem>>, vector<2x32xf32>,
    %c1_i32_33 = arith.constant 1 : i32
    %c7_i32_34 = arith.constant 7 : i32
    %80 = arith.subi %c7_i32_34, %c1_i32_33 : i32
    %c2_i32_35 = arith.constant 2 : i32
    %81 = arith.muli %c1_i32_33, %c2_i32_35 : i32
    %82 = arith.index_cast %81 : i32 to index
    %c0_36 = arith.constant 0 : index
    %83 = vector.load %arg12[%82, %c0_36] : memref<16x256xf32, #tpu.memory_space<vmem>>, vector<2x256xf32>
    %c2_i32_37 = arith.constant 2 : i32
    %84 = arith.muli %80, %c2_i32_37 : i32
    %85 = arith.index_cast %84 : i32 to index
    %c0_38 = arith.constant 0 : index
    %86 = vector.load %arg12[%85, %c0_38] : memref<16x256xf32, #tpu.memory_space<vmem>>, vector<2x256xf32>
    %87 = vector.shape_cast %40 : vector<1x256xi1> to vector<1x256xi1>
    %88 = vector.broadcast %87 : vector<1x256xi1> to vector<2x256xi1>
    %89 = arith.select %88, %83, %86 : vector<2x256xi1>, vector<2x256xf32>
    %cst_39 = arith.constant dense<0.000000e+00> : vector<2x256xf32>
    %90 = tpu.matmul %71, %21, %cst_39 {dimension_numbers = #tpu.dot_dimension_numbers<[1], [0], [0], [1], [0, 0, 1, 1], [], []>} : vector<2x64xf32>, vector<64x256xf32>, vector<2x256xf32> -> vector<2x256xf32>
    %91 = arith.addf %89, %90 : vector<2x256xf32>
    %92 = vector.extract_strided_slice %91 {offsets = [0, 0], sizes = [2, 192], strides = [1, 1]} : vector<2x256xf32> to vector<2x192xf32>
    %cst_40 = arith.constant 5.000000e-01 : f32
    %93 = vector.broadcast %cst_40 : f32 to vector<2x192xf32>
    %94 = arith.mulf %93, %92 : vector<2x192xf32>
    %95 = math.tanh %94 : vector<2x192xf32>
    %cst_41 = arith.constant 5.000000e-01 : f32
    %96 = vector.broadcast %cst_41 : f32 to vector<2x192xf32>
    %97 = arith.mulf %96, %95 : vector<2x192xf32>
    %cst_42 = arith.constant 5.000000e-01 : f32
    %98 = vector.broadcast %cst_42 : f32 to vector<2x192xf32>
    %99 = arith.addf %97, %98 : vector<2x192xf32>
    %100 = vector.extract_strided_slice %91 {offsets = [0, 192], sizes = [2, 64], strides = [1, 1]} : vector<2x256xf32> to vector<2x64xf32>
    %101 = math.tanh %100 : vector<2x64xf32>
    %102 = vector.extract_strided_slice %99 {offsets = [0, 64], sizes = [2, 64], strides = [1, 1]} : vector<2x192xf32> to vector<2x64xf32>
    %103 = arith.mulf %102, %68 : vector<2x64xf32>
    %104 = vector.extract_strided_slice %99 {offsets = [0, 0], sizes = [2, 64], strides = [1, 1]} : vector<2x192xf32> to vector<2x64xf32>
    %105 = arith.mulf %104, %101 : vector<2x64xf32>
    %106 = arith.addf %103, %105 : vector<2x64xf32>
    %107 = vector.extract_strided_slice %99 {offsets = [0, 128], sizes = [2, 64], strides = [1, 1]} : vector<2x192xf32> to vector<2x64xf32>
    %108 = math.tanh %106 : vector<2x64xf32>
    %109 = arith.mulf %107, %108 : vector<2x64xf32>
    %110 = vector.extract_strided_slice %109 {offsets = [0, 0], sizes = [2, 32], strides = [1, 1]} : vector<2x64xf32> to vector<2x32xf32>
    %c2_i32_43 = arith.constant 2 : i32
    %111 = arith.muli %c1_i32_33, %c2_i32_43 : i32
    %112 = arith.index_cast %111 : i32 to index
    %c0_44 = arith.constant 0 : index
    %113 = vector.load %arg13[%112, %c0_44] : memref<16x32xf32, #tpu.memory_space<vmem>>, vector<2x32xf32>
    tpu.vector_store %arg13[%112, %c0_44], %110 {strides = array<i32>} : memref<16x32xf32, #tpu.memory_space<vmem>>, vector<2x32xf32>,
    %114 = vector.extract_strided_slice %109 {offsets = [0, 32], sizes = [2, 32], strides = [1, 1]} : vector<2x64xf32> to vector<2x32xf32>
    %c2_i32_45 = arith.constant 2 : i32
    %115 = arith.muli %80, %c2_i32_45 : i32
    %116 = arith.index_cast %115 : i32 to index
    %c0_46 = arith.constant 0 : index
    %117 = vector.load %arg14[%116, %c0_46] : memref<16x32xf32, #tpu.memory_space<vmem>>, vector<2x32xf32>
    tpu.vector_store %arg14[%116, %c0_46], %114 {strides = array<i32>} : memref<16x32xf32, #tpu.memory_space<vmem>>, vector<2x32xf32>,
    %c2_i32_47 = arith.constant 2 : i32
    %c7_i32_48 = arith.constant 7 : i32
    %118 = arith.subi %c7_i32_48, %c2_i32_47 : i32
    %c2_i32_49 = arith.constant 2 : i32
    %119 = arith.muli %c2_i32_47, %c2_i32_49 : i32
    %120 = arith.index_cast %119 : i32 to index
    %c0_50 = arith.constant 0 : index
    %121 = vector.load %arg12[%120, %c0_50] : memref<16x256xf32, #tpu.memory_space<vmem>>, vector<2x256xf32>
    %c2_i32_51 = arith.constant 2 : i32
    %122 = arith.muli %118, %c2_i32_51 : i32
    %123 = arith.index_cast %122 : i32 to index
    %c0_52 = arith.constant 0 : index
    %124 = vector.load %arg12[%123, %c0_52] : memref<16x256xf32, #tpu.memory_space<vmem>>, vector<2x256xf32>
    %125 = vector.shape_cast %40 : vector<1x256xi1> to vector<1x256xi1>
    %126 = vector.broadcast %125 : vector<1x256xi1> to vector<2x256xi1>
    %127 = arith.select %126, %121, %124 : vector<2x256xi1>, vector<2x256xf32>
    %cst_53 = arith.constant dense<0.000000e+00> : vector<2x256xf32>
    %128 = tpu.matmul %109, %21, %cst_53 {dimension_numbers = #tpu.dot_dimension_numbers<[1], [0], [0], [1], [0, 0, 1, 1], [], []>} : vector<2x64xf32>, vector<64x256xf32>, vector<2x256xf32> -> vector<2x256xf32>
    %129 = arith.addf %127, %128 : vector<2x256xf32>
    %130 = vector.extract_strided_slice %129 {offsets = [0, 0], sizes = [2, 192], strides = [1, 1]} : vector<2x256xf32> to vector<2x192xf32>
    %cst_54 = arith.constant 5.000000e-01 : f32
    %131 = vector.broadcast %cst_54 : f32 to vector<2x192xf32>
    %132 = arith.mulf %131, %130 : vector<2x192xf32>
    %133 = math.tanh %132 : vector<2x192xf32>
    %cst_55 = arith.constant 5.000000e-01 : f32
    %134 = vector.broadcast %cst_55 : f32 to vector<2x192xf32>
    %135 = arith.mulf %134, %133 : vector<2x192xf32>
    %cst_56 = arith.constant 5.000000e-01 : f32
    %136 = vector.broadcast %cst_56 : f32 to vector<2x192xf32>
    %137 = arith.addf %135, %136 : vector<2x192xf32>
    %138 = vector.extract_strided_slice %129 {offsets = [0, 192], sizes = [2, 64], strides = [1, 1]} : vector<2x256xf32> to vector<2x64xf32>
    %139 = math.tanh %138 : vector<2x64xf32>
    %140 = vector.extract_strided_slice %137 {offsets = [0, 64], sizes = [2, 64], strides = [1, 1]} : vector<2x192xf32> to vector<2x64xf32>
    %141 = arith.mulf %140, %106 : vector<2x64xf32>
    %142 = vector.extract_strided_slice %137 {offsets = [0, 0], sizes = [2, 64], strides = [1, 1]} : vector<2x192xf32> to vector<2x64xf32>
    %143 = arith.mulf %142, %139 : vector<2x64xf32>
    %144 = arith.addf %141, %143 : vector<2x64xf32>
    %145 = vector.extract_strided_slice %137 {offsets = [0, 128], sizes = [2, 64], strides = [1, 1]} : vector<2x192xf32> to vector<2x64xf32>
    %146 = math.tanh %144 : vector<2x64xf32>
    %147 = arith.mulf %145, %146 : vector<2x64xf32>
    %148 = vector.extract_strided_slice %147 {offsets = [0, 0], sizes = [2, 32], strides = [1, 1]} : vector<2x64xf32> to vector<2x32xf32>
    %c2_i32_57 = arith.constant 2 : i32
    %149 = arith.muli %c2_i32_47, %c2_i32_57 : i32
    %150 = arith.index_cast %149 : i32 to index
    %c0_58 = arith.constant 0 : index
    %151 = vector.load %arg13[%150, %c0_58] : memref<16x32xf32, #tpu.memory_space<vmem>>, vector<2x32xf32>
    tpu.vector_store %arg13[%150, %c0_58], %148 {strides = array<i32>} : memref<16x32xf32, #tpu.memory_space<vmem>>, vector<2x32xf32>,
    %152 = vector.extract_strided_slice %147 {offsets = [0, 32], sizes = [2, 32], strides = [1, 1]} : vector<2x64xf32> to vector<2x32xf32>
    %c2_i32_59 = arith.constant 2 : i32
    %153 = arith.muli %118, %c2_i32_59 : i32
    %154 = arith.index_cast %153 : i32 to index
    %c0_60 = arith.constant 0 : index
    %155 = vector.load %arg14[%154, %c0_60] : memref<16x32xf32, #tpu.memory_space<vmem>>, vector<2x32xf32>
    tpu.vector_store %arg14[%154, %c0_60], %152 {strides = array<i32>} : memref<16x32xf32, #tpu.memory_space<vmem>>, vector<2x32xf32>,
    %c3_i32 = arith.constant 3 : i32
    %c7_i32_61 = arith.constant 7 : i32
    %156 = arith.subi %c7_i32_61, %c3_i32 : i32
    %c2_i32_62 = arith.constant 2 : i32
    %157 = arith.muli %c3_i32, %c2_i32_62 : i32
    %158 = arith.index_cast %157 : i32 to index
    %c0_63 = arith.constant 0 : index
    %159 = vector.load %arg12[%158, %c0_63] : memref<16x256xf32, #tpu.memory_space<vmem>>, vector<2x256xf32>
    %c2_i32_64 = arith.constant 2 : i32
    %160 = arith.muli %156, %c2_i32_64 : i32
    %161 = arith.index_cast %160 : i32 to index
    %c0_65 = arith.constant 0 : index
    %162 = vector.load %arg12[%161, %c0_65] : memref<16x256xf32, #tpu.memory_space<vmem>>, vector<2x256xf32>
    %163 = vector.shape_cast %40 : vector<1x256xi1> to vector<1x256xi1>
    %164 = vector.broadcast %163 : vector<1x256xi1> to vector<2x256xi1>
    %165 = arith.select %164, %159, %162 : vector<2x256xi1>, vector<2x256xf32>
    %cst_66 = arith.constant dense<0.000000e+00> : vector<2x256xf32>
    %166 = tpu.matmul %147, %21, %cst_66 {dimension_numbers = #tpu.dot_dimension_numbers<[1], [0], [0], [1], [0, 0, 1, 1], [], []>} : vector<2x64xf32>, vector<64x256xf32>, vector<2x256xf32> -> vector<2x256xf32>
    %167 = arith.addf %165, %166 : vector<2x256xf32>
    %168 = vector.extract_strided_slice %167 {offsets = [0, 0], sizes = [2, 192], strides = [1, 1]} : vector<2x256xf32> to vector<2x192xf32>
    %cst_67 = arith.constant 5.000000e-01 : f32
    %169 = vector.broadcast %cst_67 : f32 to vector<2x192xf32>
    %170 = arith.mulf %169, %168 : vector<2x192xf32>
    %171 = math.tanh %170 : vector<2x192xf32>
    %cst_68 = arith.constant 5.000000e-01 : f32
    %172 = vector.broadcast %cst_68 : f32 to vector<2x192xf32>
    %173 = arith.mulf %172, %171 : vector<2x192xf32>
    %cst_69 = arith.constant 5.000000e-01 : f32
    %174 = vector.broadcast %cst_69 : f32 to vector<2x192xf32>
    %175 = arith.addf %173, %174 : vector<2x192xf32>
    %176 = vector.extract_strided_slice %167 {offsets = [0, 192], sizes = [2, 64], strides = [1, 1]} : vector<2x256xf32> to vector<2x64xf32>
    %177 = math.tanh %176 : vector<2x64xf32>
    %178 = vector.extract_strided_slice %175 {offsets = [0, 64], sizes = [2, 64], strides = [1, 1]} : vector<2x192xf32> to vector<2x64xf32>
    %179 = arith.mulf %178, %144 : vector<2x64xf32>
    %180 = vector.extract_strided_slice %175 {offsets = [0, 0], sizes = [2, 64], strides = [1, 1]} : vector<2x192xf32> to vector<2x64xf32>
    %181 = arith.mulf %180, %177 : vector<2x64xf32>
    %182 = arith.addf %179, %181 : vector<2x64xf32>
    %183 = vector.extract_strided_slice %175 {offsets = [0, 128], sizes = [2, 64], strides = [1, 1]} : vector<2x192xf32> to vector<2x64xf32>
    %184 = math.tanh %182 : vector<2x64xf32>
    %185 = arith.mulf %183, %184 : vector<2x64xf32>
    %186 = vector.extract_strided_slice %185 {offsets = [0, 0], sizes = [2, 32], strides = [1, 1]} : vector<2x64xf32> to vector<2x32xf32>
    %c2_i32_70 = arith.constant 2 : i32
    %187 = arith.muli %c3_i32, %c2_i32_70 : i32
    %188 = arith.index_cast %187 : i32 to index
    %c0_71 = arith.constant 0 : index
    %189 = vector.load %arg13[%188, %c0_71] : memref<16x32xf32, #tpu.memory_space<vmem>>, vector<2x32xf32>
    tpu.vector_store %arg13[%188, %c0_71], %186 {strides = array<i32>} : memref<16x32xf32, #tpu.memory_space<vmem>>, vector<2x32xf32>,
    %190 = vector.extract_strided_slice %185 {offsets = [0, 32], sizes = [2, 32], strides = [1, 1]} : vector<2x64xf32> to vector<2x32xf32>
    %c2_i32_72 = arith.constant 2 : i32
    %191 = arith.muli %156, %c2_i32_72 : i32
    %192 = arith.index_cast %191 : i32 to index
    %c0_73 = arith.constant 0 : index
    %193 = vector.load %arg14[%192, %c0_73] : memref<16x32xf32, #tpu.memory_space<vmem>>, vector<2x32xf32>
    tpu.vector_store %arg14[%192, %c0_73], %190 {strides = array<i32>} : memref<16x32xf32, #tpu.memory_space<vmem>>, vector<2x32xf32>,
    %c4_i32 = arith.constant 4 : i32
    %c7_i32_74 = arith.constant 7 : i32
    %194 = arith.subi %c7_i32_74, %c4_i32 : i32
    %c2_i32_75 = arith.constant 2 : i32
    %195 = arith.muli %c4_i32, %c2_i32_75 : i32
    %196 = arith.index_cast %195 : i32 to index
    %c0_76 = arith.constant 0 : index
    %197 = vector.load %arg12[%196, %c0_76] : memref<16x256xf32, #tpu.memory_space<vmem>>, vector<2x256xf32>
    %c2_i32_77 = arith.constant 2 : i32
    %198 = arith.muli %194, %c2_i32_77 : i32
    %199 = arith.index_cast %198 : i32 to index
    %c0_78 = arith.constant 0 : index
    %200 = vector.load %arg12[%199, %c0_78] : memref<16x256xf32, #tpu.memory_space<vmem>>, vector<2x256xf32>
    %201 = vector.shape_cast %40 : vector<1x256xi1> to vector<1x256xi1>
    %202 = vector.broadcast %201 : vector<1x256xi1> to vector<2x256xi1>
    %203 = arith.select %202, %197, %200 : vector<2x256xi1>, vector<2x256xf32>
    %cst_79 = arith.constant dense<0.000000e+00> : vector<2x256xf32>
    %204 = tpu.matmul %185, %21, %cst_79 {dimension_numbers = #tpu.dot_dimension_numbers<[1], [0], [0], [1], [0, 0, 1, 1], [], []>} : vector<2x64xf32>, vector<64x256xf32>, vector<2x256xf32> -> vector<2x256xf32>
    %205 = arith.addf %203, %204 : vector<2x256xf32>
    %206 = vector.extract_strided_slice %205 {offsets = [0, 0], sizes = [2, 192], strides = [1, 1]} : vector<2x256xf32> to vector<2x192xf32>
    %cst_80 = arith.constant 5.000000e-01 : f32
    %207 = vector.broadcast %cst_80 : f32 to vector<2x192xf32>
    %208 = arith.mulf %207, %206 : vector<2x192xf32>
    %209 = math.tanh %208 : vector<2x192xf32>
    %cst_81 = arith.constant 5.000000e-01 : f32
    %210 = vector.broadcast %cst_81 : f32 to vector<2x192xf32>
    %211 = arith.mulf %210, %209 : vector<2x192xf32>
    %cst_82 = arith.constant 5.000000e-01 : f32
    %212 = vector.broadcast %cst_82 : f32 to vector<2x192xf32>
    %213 = arith.addf %211, %212 : vector<2x192xf32>
    %214 = vector.extract_strided_slice %205 {offsets = [0, 192], sizes = [2, 64], strides = [1, 1]} : vector<2x256xf32> to vector<2x64xf32>
    %215 = math.tanh %214 : vector<2x64xf32>
    %216 = vector.extract_strided_slice %213 {offsets = [0, 64], sizes = [2, 64], strides = [1, 1]} : vector<2x192xf32> to vector<2x64xf32>
    %217 = arith.mulf %216, %182 : vector<2x64xf32>
    %218 = vector.extract_strided_slice %213 {offsets = [0, 0], sizes = [2, 64], strides = [1, 1]} : vector<2x192xf32> to vector<2x64xf32>
    %219 = arith.mulf %218, %215 : vector<2x64xf32>
    %220 = arith.addf %217, %219 : vector<2x64xf32>
    %221 = vector.extract_strided_slice %213 {offsets = [0, 128], sizes = [2, 64], strides = [1, 1]} : vector<2x192xf32> to vector<2x64xf32>
    %222 = math.tanh %220 : vector<2x64xf32>
    %223 = arith.mulf %221, %222 : vector<2x64xf32>
    %224 = vector.extract_strided_slice %223 {offsets = [0, 0], sizes = [2, 32], strides = [1, 1]} : vector<2x64xf32> to vector<2x32xf32>
    %c2_i32_83 = arith.constant 2 : i32
    %225 = arith.muli %c4_i32, %c2_i32_83 : i32
    %226 = arith.index_cast %225 : i32 to index
    %c0_84 = arith.constant 0 : index
    %227 = vector.load %arg13[%226, %c0_84] : memref<16x32xf32, #tpu.memory_space<vmem>>, vector<2x32xf32>
    tpu.vector_store %arg13[%226, %c0_84], %224 {strides = array<i32>} : memref<16x32xf32, #tpu.memory_space<vmem>>, vector<2x32xf32>,
    %228 = vector.extract_strided_slice %223 {offsets = [0, 32], sizes = [2, 32], strides = [1, 1]} : vector<2x64xf32> to vector<2x32xf32>
    %c2_i32_85 = arith.constant 2 : i32
    %229 = arith.muli %194, %c2_i32_85 : i32
    %230 = arith.index_cast %229 : i32 to index
    %c0_86 = arith.constant 0 : index
    %231 = vector.load %arg14[%230, %c0_86] : memref<16x32xf32, #tpu.memory_space<vmem>>, vector<2x32xf32>
    tpu.vector_store %arg14[%230, %c0_86], %228 {strides = array<i32>} : memref<16x32xf32, #tpu.memory_space<vmem>>, vector<2x32xf32>,
    %c5_i32 = arith.constant 5 : i32
    %c7_i32_87 = arith.constant 7 : i32
    %232 = arith.subi %c7_i32_87, %c5_i32 : i32
    %c2_i32_88 = arith.constant 2 : i32
    %233 = arith.muli %c5_i32, %c2_i32_88 : i32
    %234 = arith.index_cast %233 : i32 to index
    %c0_89 = arith.constant 0 : index
    %235 = vector.load %arg12[%234, %c0_89] : memref<16x256xf32, #tpu.memory_space<vmem>>, vector<2x256xf32>
    %c2_i32_90 = arith.constant 2 : i32
    %236 = arith.muli %232, %c2_i32_90 : i32
    %237 = arith.index_cast %236 : i32 to index
    %c0_91 = arith.constant 0 : index
    %238 = vector.load %arg12[%237, %c0_91] : memref<16x256xf32, #tpu.memory_space<vmem>>, vector<2x256xf32>
    %239 = vector.shape_cast %40 : vector<1x256xi1> to vector<1x256xi1>
    %240 = vector.broadcast %239 : vector<1x256xi1> to vector<2x256xi1>
    %241 = arith.select %240, %235, %238 : vector<2x256xi1>, vector<2x256xf32>
    %cst_92 = arith.constant dense<0.000000e+00> : vector<2x256xf32>
    %242 = tpu.matmul %223, %21, %cst_92 {dimension_numbers = #tpu.dot_dimension_numbers<[1], [0], [0], [1], [0, 0, 1, 1], [], []>} : vector<2x64xf32>, vector<64x256xf32>, vector<2x256xf32> -> vector<2x256xf32>
    %243 = arith.addf %241, %242 : vector<2x256xf32>
    %244 = vector.extract_strided_slice %243 {offsets = [0, 0], sizes = [2, 192], strides = [1, 1]} : vector<2x256xf32> to vector<2x192xf32>
    %cst_93 = arith.constant 5.000000e-01 : f32
    %245 = vector.broadcast %cst_93 : f32 to vector<2x192xf32>
    %246 = arith.mulf %245, %244 : vector<2x192xf32>
    %247 = math.tanh %246 : vector<2x192xf32>
    %cst_94 = arith.constant 5.000000e-01 : f32
    %248 = vector.broadcast %cst_94 : f32 to vector<2x192xf32>
    %249 = arith.mulf %248, %247 : vector<2x192xf32>
    %cst_95 = arith.constant 5.000000e-01 : f32
    %250 = vector.broadcast %cst_95 : f32 to vector<2x192xf32>
    %251 = arith.addf %249, %250 : vector<2x192xf32>
    %252 = vector.extract_strided_slice %243 {offsets = [0, 192], sizes = [2, 64], strides = [1, 1]} : vector<2x256xf32> to vector<2x64xf32>
    %253 = math.tanh %252 : vector<2x64xf32>
    %254 = vector.extract_strided_slice %251 {offsets = [0, 64], sizes = [2, 64], strides = [1, 1]} : vector<2x192xf32> to vector<2x64xf32>
    %255 = arith.mulf %254, %220 : vector<2x64xf32>
    %256 = vector.extract_strided_slice %251 {offsets = [0, 0], sizes = [2, 64], strides = [1, 1]} : vector<2x192xf32> to vector<2x64xf32>
    %257 = arith.mulf %256, %253 : vector<2x64xf32>
    %258 = arith.addf %255, %257 : vector<2x64xf32>
    %259 = vector.extract_strided_slice %251 {offsets = [0, 128], sizes = [2, 64], strides = [1, 1]} : vector<2x192xf32> to vector<2x64xf32>
    %260 = math.tanh %258 : vector<2x64xf32>
    %261 = arith.mulf %259, %260 : vector<2x64xf32>
    %262 = vector.extract_strided_slice %261 {offsets = [0, 0], sizes = [2, 32], strides = [1, 1]} : vector<2x64xf32> to vector<2x32xf32>
    %c2_i32_96 = arith.constant 2 : i32
    %263 = arith.muli %c5_i32, %c2_i32_96 : i32
    %264 = arith.index_cast %263 : i32 to index
    %c0_97 = arith.constant 0 : index
    %265 = vector.load %arg13[%264, %c0_97] : memref<16x32xf32, #tpu.memory_space<vmem>>, vector<2x32xf32>
    tpu.vector_store %arg13[%264, %c0_97], %262 {strides = array<i32>} : memref<16x32xf32, #tpu.memory_space<vmem>>, vector<2x32xf32>,
    %266 = vector.extract_strided_slice %261 {offsets = [0, 32], sizes = [2, 32], strides = [1, 1]} : vector<2x64xf32> to vector<2x32xf32>
    %c2_i32_98 = arith.constant 2 : i32
    %267 = arith.muli %232, %c2_i32_98 : i32
    %268 = arith.index_cast %267 : i32 to index
    %c0_99 = arith.constant 0 : index
    %269 = vector.load %arg14[%268, %c0_99] : memref<16x32xf32, #tpu.memory_space<vmem>>, vector<2x32xf32>
    tpu.vector_store %arg14[%268, %c0_99], %266 {strides = array<i32>} : memref<16x32xf32, #tpu.memory_space<vmem>>, vector<2x32xf32>,
    %c6_i32 = arith.constant 6 : i32
    %c7_i32_100 = arith.constant 7 : i32
    %270 = arith.subi %c7_i32_100, %c6_i32 : i32
    %c2_i32_101 = arith.constant 2 : i32
    %271 = arith.muli %c6_i32, %c2_i32_101 : i32
    %272 = arith.index_cast %271 : i32 to index
    %c0_102 = arith.constant 0 : index
    %273 = vector.load %arg12[%272, %c0_102] : memref<16x256xf32, #tpu.memory_space<vmem>>, vector<2x256xf32>
    %c2_i32_103 = arith.constant 2 : i32
    %274 = arith.muli %270, %c2_i32_103 : i32
    %275 = arith.index_cast %274 : i32 to index
    %c0_104 = arith.constant 0 : index
    %276 = vector.load %arg12[%275, %c0_104] : memref<16x256xf32, #tpu.memory_space<vmem>>, vector<2x256xf32>
    %277 = vector.shape_cast %40 : vector<1x256xi1> to vector<1x256xi1>
    %278 = vector.broadcast %277 : vector<1x256xi1> to vector<2x256xi1>
    %279 = arith.select %278, %273, %276 : vector<2x256xi1>, vector<2x256xf32>
    %cst_105 = arith.constant dense<0.000000e+00> : vector<2x256xf32>
    %280 = tpu.matmul %261, %21, %cst_105 {dimension_numbers = #tpu.dot_dimension_numbers<[1], [0], [0], [1], [0, 0, 1, 1], [], []>} : vector<2x64xf32>, vector<64x256xf32>, vector<2x256xf32> -> vector<2x256xf32>
    %281 = arith.addf %279, %280 : vector<2x256xf32>
    %282 = vector.extract_strided_slice %281 {offsets = [0, 0], sizes = [2, 192], strides = [1, 1]} : vector<2x256xf32> to vector<2x192xf32>
    %cst_106 = arith.constant 5.000000e-01 : f32
    %283 = vector.broadcast %cst_106 : f32 to vector<2x192xf32>
    %284 = arith.mulf %283, %282 : vector<2x192xf32>
    %285 = math.tanh %284 : vector<2x192xf32>
    %cst_107 = arith.constant 5.000000e-01 : f32
    %286 = vector.broadcast %cst_107 : f32 to vector<2x192xf32>
    %287 = arith.mulf %286, %285 : vector<2x192xf32>
    %cst_108 = arith.constant 5.000000e-01 : f32
    %288 = vector.broadcast %cst_108 : f32 to vector<2x192xf32>
    %289 = arith.addf %287, %288 : vector<2x192xf32>
    %290 = vector.extract_strided_slice %281 {offsets = [0, 192], sizes = [2, 64], strides = [1, 1]} : vector<2x256xf32> to vector<2x64xf32>
    %291 = math.tanh %290 : vector<2x64xf32>
    %292 = vector.extract_strided_slice %289 {offsets = [0, 64], sizes = [2, 64], strides = [1, 1]} : vector<2x192xf32> to vector<2x64xf32>
    %293 = arith.mulf %292, %258 : vector<2x64xf32>
    %294 = vector.extract_strided_slice %289 {offsets = [0, 0], sizes = [2, 64], strides = [1, 1]} : vector<2x192xf32> to vector<2x64xf32>
    %295 = arith.mulf %294, %291 : vector<2x64xf32>
    %296 = arith.addf %293, %295 : vector<2x64xf32>
    %297 = vector.extract_strided_slice %289 {offsets = [0, 128], sizes = [2, 64], strides = [1, 1]} : vector<2x192xf32> to vector<2x64xf32>
    %298 = math.tanh %296 : vector<2x64xf32>
    %299 = arith.mulf %297, %298 : vector<2x64xf32>
    %300 = vector.extract_strided_slice %299 {offsets = [0, 0], sizes = [2, 32], strides = [1, 1]} : vector<2x64xf32> to vector<2x32xf32>
    %c2_i32_109 = arith.constant 2 : i32
    %301 = arith.muli %c6_i32, %c2_i32_109 : i32
    %302 = arith.index_cast %301 : i32 to index
    %c0_110 = arith.constant 0 : index
    %303 = vector.load %arg13[%302, %c0_110] : memref<16x32xf32, #tpu.memory_space<vmem>>, vector<2x32xf32>
    tpu.vector_store %arg13[%302, %c0_110], %300 {strides = array<i32>} : memref<16x32xf32, #tpu.memory_space<vmem>>, vector<2x32xf32>,
    %304 = vector.extract_strided_slice %299 {offsets = [0, 32], sizes = [2, 32], strides = [1, 1]} : vector<2x64xf32> to vector<2x32xf32>
    %c2_i32_111 = arith.constant 2 : i32
    %305 = arith.muli %270, %c2_i32_111 : i32
    %306 = arith.index_cast %305 : i32 to index
    %c0_112 = arith.constant 0 : index
    %307 = vector.load %arg14[%306, %c0_112] : memref<16x32xf32, #tpu.memory_space<vmem>>, vector<2x32xf32>
    tpu.vector_store %arg14[%306, %c0_112], %304 {strides = array<i32>} : memref<16x32xf32, #tpu.memory_space<vmem>>, vector<2x32xf32>,
    %c7_i32_113 = arith.constant 7 : i32
    %c7_i32_114 = arith.constant 7 : i32
    %308 = arith.subi %c7_i32_114, %c7_i32_113 : i32
    %c2_i32_115 = arith.constant 2 : i32
    %309 = arith.muli %c7_i32_113, %c2_i32_115 : i32
    %310 = arith.index_cast %309 : i32 to index
    %c0_116 = arith.constant 0 : index
    %311 = vector.load %arg12[%310, %c0_116] : memref<16x256xf32, #tpu.memory_space<vmem>>, vector<2x256xf32>
    %c2_i32_117 = arith.constant 2 : i32
    %312 = arith.muli %308, %c2_i32_117 : i32
    %313 = arith.index_cast %312 : i32 to index
    %c0_118 = arith.constant 0 : index
    %314 = vector.load %arg12[%313, %c0_118] : memref<16x256xf32, #tpu.memory_space<vmem>>, vector<2x256xf32>
    %315 = vector.shape_cast %40 : vector<1x256xi1> to vector<1x256xi1>
    %316 = vector.broadcast %315 : vector<1x256xi1> to vector<2x256xi1>
    %317 = arith.select %316, %311, %314 : vector<2x256xi1>, vector<2x256xf32>
    %cst_119 = arith.constant dense<0.000000e+00> : vector<2x256xf32>
    %318 = tpu.matmul %299, %21, %cst_119 {dimension_numbers = #tpu.dot_dimension_numbers<[1], [0], [0], [1], [0, 0, 1, 1], [], []>} : vector<2x64xf32>, vector<64x256xf32>, vector<2x256xf32> -> vector<2x256xf32>
    %319 = arith.addf %317, %318 : vector<2x256xf32>
    %320 = vector.extract_strided_slice %319 {offsets = [0, 0], sizes = [2, 192], strides = [1, 1]} : vector<2x256xf32> to vector<2x192xf32>
    %cst_120 = arith.constant 5.000000e-01 : f32
    %321 = vector.broadcast %cst_120 : f32 to vector<2x192xf32>
    %322 = arith.mulf %321, %320 : vector<2x192xf32>
    %323 = math.tanh %322 : vector<2x192xf32>
    %cst_121 = arith.constant 5.000000e-01 : f32
    %324 = vector.broadcast %cst_121 : f32 to vector<2x192xf32>
    %325 = arith.mulf %324, %323 : vector<2x192xf32>
    %cst_122 = arith.constant 5.000000e-01 : f32
    %326 = vector.broadcast %cst_122 : f32 to vector<2x192xf32>
    %327 = arith.addf %325, %326 : vector<2x192xf32>
    %328 = vector.extract_strided_slice %319 {offsets = [0, 192], sizes = [2, 64], strides = [1, 1]} : vector<2x256xf32> to vector<2x64xf32>
    %329 = math.tanh %328 : vector<2x64xf32>
    %330 = vector.extract_strided_slice %327 {offsets = [0, 64], sizes = [2, 64], strides = [1, 1]} : vector<2x192xf32> to vector<2x64xf32>
    %331 = arith.mulf %330, %296 : vector<2x64xf32>
    %332 = vector.extract_strided_slice %327 {offsets = [0, 0], sizes = [2, 64], strides = [1, 1]} : vector<2x192xf32> to vector<2x64xf32>
    %333 = arith.mulf %332, %329 : vector<2x64xf32>
    %334 = arith.addf %331, %333 : vector<2x64xf32>
    %335 = vector.extract_strided_slice %327 {offsets = [0, 128], sizes = [2, 64], strides = [1, 1]} : vector<2x192xf32> to vector<2x64xf32>
    %336 = math.tanh %334 : vector<2x64xf32>
    %337 = arith.mulf %335, %336 : vector<2x64xf32>
    %338 = vector.extract_strided_slice %337 {offsets = [0, 0], sizes = [2, 32], strides = [1, 1]} : vector<2x64xf32> to vector<2x32xf32>
    %c2_i32_123 = arith.constant 2 : i32
    %339 = arith.muli %c7_i32_113, %c2_i32_123 : i32
    %340 = arith.index_cast %339 : i32 to index
    %c0_124 = arith.constant 0 : index
    %341 = vector.load %arg13[%340, %c0_124] : memref<16x32xf32, #tpu.memory_space<vmem>>, vector<2x32xf32>
    tpu.vector_store %arg13[%340, %c0_124], %338 {strides = array<i32>} : memref<16x32xf32, #tpu.memory_space<vmem>>, vector<2x32xf32>,
    %342 = vector.extract_strided_slice %337 {offsets = [0, 32], sizes = [2, 32], strides = [1, 1]} : vector<2x64xf32> to vector<2x32xf32>
    %c2_i32_125 = arith.constant 2 : i32
    %343 = arith.muli %308, %c2_i32_125 : i32
    %344 = arith.index_cast %343 : i32 to index
    %c0_126 = arith.constant 0 : index
    %345 = vector.load %arg14[%344, %c0_126] : memref<16x32xf32, #tpu.memory_space<vmem>>, vector<2x32xf32>
    tpu.vector_store %arg14[%344, %c0_126], %342 {strides = array<i32>} : memref<16x32xf32, #tpu.memory_space<vmem>>, vector<2x32xf32>,
    %c8_i32 = arith.constant 8 : i32
    %c0_127 = arith.constant 0 : index
    %c0_128 = arith.constant 0 : index
    %346 = vector.load %arg13[%c0_127, %c0_128] : memref<16x32xf32, #tpu.memory_space<vmem>>, vector<16x32xf32>
    %c0_129 = arith.constant 0 : index
    %c0_130 = arith.constant 0 : index
    %347 = vector.load %arg14[%c0_129, %c0_130] : memref<16x32xf32, #tpu.memory_space<vmem>>, vector<16x32xf32>
    %348 = tpu.concatenate %346, %347 in 1 : vector<16x32xf32>, vector<16x32xf32> -> vector<16x64xf32>
    %c0_131 = arith.constant 0 : index
    %c0_132 = arith.constant 0 : index
    %349 = vector.load %arg5[%c0_131, %c0_132] : memref<64x16xf32, #tpu.memory_space<vmem>>, vector<64x16xf32>
    %cst_133 = arith.constant dense<0.000000e+00> : vector<16x16xf32>
    %350 = tpu.matmul %348, %349, %cst_133 {dimension_numbers = #tpu.dot_dimension_numbers<[1], [0], [0], [1], [0, 0, 1, 1], [], []>} : vector<16x64xf32>, vector<64x16xf32>, vector<16x16xf32> -> vector<16x16xf32>
    %351 = math.tanh %350 : vector<16x16xf32>
    %c0_134 = arith.constant 0 : index
    %c0_135 = arith.constant 0 : index
    %352 = vector.load %arg6[%c0_134, %c0_135] : memref<16x8xf32, #tpu.memory_space<vmem>>, vector<16x8xf32>
    %cst_136 = arith.constant dense<0.000000e+00> : vector<16x8xf32>
    %353 = tpu.matmul %351, %352, %cst_136 {dimension_numbers = #tpu.dot_dimension_numbers<[1], [0], [0], [1], [0, 0, 1, 1], [], []>} : vector<16x16xf32>, vector<16x8xf32>, vector<16x8xf32> -> vector<16x8xf32>
    %cst_137 = arith.constant dense<0xFF800000> : vector<8xf32>
    %354 = vector.multi_reduction <maximumf>, %353, %cst_137 [0] : vector<16x8xf32> to vector<8xf32>
    %355 = vector.shape_cast %354 : vector<8xf32> to vector<1x8xf32>
    %cst_138 = arith.constant dense<0xFF800000> : vector<1xf32>
    %356 = vector.multi_reduction <maximumf>, %355, %cst_138 [1] : vector<1x8xf32> to vector<1xf32>
    %357 = vector.shape_cast %356 : vector<1xf32> to vector<1x1xf32>
    %358 = vector.broadcast %357 : vector<1x1xf32> to vector<16x8xf32>
    %359 = arith.subf %353, %358 : vector<16x8xf32>
    %360 = math.exp %359 : vector<16x8xf32>
    %361 = tpu.iota {dimensions = array<i32: 1>} : vector<2x16xi32>
    %c2_i32_139 = arith.constant 2 : i32
    %c0_i32_140 = arith.constant 0 : i32
    %362 = arith.cmpi eq, %c2_i32_139, %c0_i32_140 : i32
    %c1_i32_141 = arith.constant 1 : i32
    %363 = arith.select %362, %c1_i32_141, %c2_i32_139 : i32
    %364 = vector.broadcast %363 : i32 to vector<2x16xi32>
    %365 = arith.remsi %361, %364 : vector<2x16xi32>
    %c0_i32_142 = arith.constant 0 : i32
    %366 = vector.broadcast %c0_i32_142 : i32 to vector<2x16xi32>
    %367 = arith.cmpi ne, %365, %366 : vector<2x16xi32>
    %c0_i32_143 = arith.constant 0 : i32
    %368 = vector.broadcast %c0_i32_143 : i32 to vector<2x16xi32>
    %369 = arith.cmpi slt, %365, %368 : vector<2x16xi32>
    %c0_i32_144 = arith.constant 0 : i32
    %370 = arith.cmpi slt, %363, %c0_i32_144 : i32
    %371 = vector.broadcast %370 : i1 to vector<2x16xi1>
    %372 = vector.broadcast %371 : vector<2x16xi1> to vector<2x16xi1>
    %373 = arith.xori %369, %372 : vector<2x16xi1>
    %374 = arith.andi %373, %367 : vector<2x16xi1>
    %375 = vector.broadcast %363 : i32 to vector<2x16xi32>
    %376 = arith.addi %365, %375 : vector<2x16xi32>
    %377 = arith.select %374, %376, %365 : vector<2x16xi1>, vector<2x16xi32>
    %378 = tpu.iota {dimensions = array<i32: 0>} : vector<2x16xi32>
    %379 = arith.cmpi eq, %377, %378 : vector<2x16xi32>
    %cst_145 = arith.constant 1.000000e+00 : f32
    %cst_146 = arith.constant 0.000000e+00 : f32
    %380 = vector.broadcast %cst_145 : f32 to vector<2x16xf32>
    %381 = vector.broadcast %cst_146 : f32 to vector<2x16xf32>
    %382 = arith.select %379, %380, %381 : vector<2x16xi1>, vector<2x16xf32>
    %383 = tpu.iota {dimensions = array<i32: 0>} : vector<16x2xi32>
    %c2_i32_147 = arith.constant 2 : i32
    %c0_i32_148 = arith.constant 0 : i32
    %384 = arith.cmpi eq, %c2_i32_147, %c0_i32_148 : i32
    %c1_i32_149 = arith.constant 1 : i32
    %385 = arith.select %384, %c1_i32_149, %c2_i32_147 : i32
    %386 = vector.broadcast %385 : i32 to vector<16x2xi32>
    %387 = arith.remsi %383, %386 : vector<16x2xi32>
    %c0_i32_150 = arith.constant 0 : i32
    %388 = vector.broadcast %c0_i32_150 : i32 to vector<16x2xi32>
    %389 = arith.cmpi ne, %387, %388 : vector<16x2xi32>
    %c0_i32_151 = arith.constant 0 : i32
    %390 = vector.broadcast %c0_i32_151 : i32 to vector<16x2xi32>
    %391 = arith.cmpi slt, %387, %390 : vector<16x2xi32>
    %c0_i32_152 = arith.constant 0 : i32
    %392 = arith.cmpi slt, %385, %c0_i32_152 : i32
    %393 = vector.broadcast %392 : i1 to vector<16x2xi1>
    %394 = vector.broadcast %393 : vector<16x2xi1> to vector<16x2xi1>
    %395 = arith.xori %391, %394 : vector<16x2xi1>
    %396 = arith.andi %395, %389 : vector<16x2xi1>
    %397 = vector.broadcast %385 : i32 to vector<16x2xi32>
    %398 = arith.addi %387, %397 : vector<16x2xi32>
    %399 = arith.select %396, %398, %387 : vector<16x2xi1>, vector<16x2xi32>
    %400 = tpu.iota {dimensions = array<i32: 1>} : vector<16x2xi32>
    %401 = arith.cmpi eq, %399, %400 : vector<16x2xi32>
    %cst_153 = arith.constant 1.000000e+00 : f32
    %cst_154 = arith.constant 0.000000e+00 : f32
    %402 = vector.broadcast %cst_153 : f32 to vector<16x2xf32>
    %403 = vector.broadcast %cst_154 : f32 to vector<16x2xf32>
    %404 = arith.select %401, %402, %403 : vector<16x2xi1>, vector<16x2xf32>
    %cst_155 = arith.constant dense<0.000000e+00> : vector<2x8xf32>
    %405 = tpu.matmul %382, %360, %cst_155 {dimension_numbers = #tpu.dot_dimension_numbers<[1], [0], [0], [1], [0, 0, 1, 1], [], []>} : vector<2x16xf32>, vector<16x8xf32>, vector<2x8xf32> -> vector<2x8xf32>
    %406 = tpu.reciprocal %405 {approx = true} : vector<2x8xf32> -> vector<2x8xf32>
    %cst_156 = arith.constant dense<0.000000e+00> : vector<16x8xf32>
    %407 = tpu.matmul %404, %406, %cst_156 {dimension_numbers = #tpu.dot_dimension_numbers<[1], [0], [0], [1], [0, 0, 1, 1], [], []>} : vector<16x2xf32>, vector<2x8xf32>, vector<16x8xf32> -> vector<16x8xf32>
    %408 = arith.mulf %360, %407 : vector<16x8xf32>
    %409 = tpu.iota {dimensions = array<i32: 1>} : vector<1x64xi32>
    %c32_i32_157 = arith.constant 32 : i32
    %c0_i32_158 = arith.constant 0 : i32
    %410 = arith.cmpi eq, %c32_i32_157, %c0_i32_158 : i32
    %c1_i32_159 = arith.constant 1 : i32
    %411 = arith.select %410, %c1_i32_159, %c32_i32_157 : i32
    %412 = vector.broadcast %411 : i32 to vector<1x64xi32>
    %413 = arith.remsi %409, %412 : vector<1x64xi32>
    %c0_i32_160 = arith.constant 0 : i32
    %414 = vector.broadcast %c0_i32_160 : i32 to vector<1x64xi32>
    %415 = arith.cmpi ne, %413, %414 : vector<1x64xi32>
    %c0_i32_161 = arith.constant 0 : i32
    %416 = vector.broadcast %c0_i32_161 : i32 to vector<1x64xi32>
    %417 = arith.cmpi slt, %413, %416 : vector<1x64xi32>
    %c0_i32_162 = arith.constant 0 : i32
    %418 = arith.cmpi slt, %411, %c0_i32_162 : i32
    %419 = vector.broadcast %418 : i1 to vector<1x64xi1>
    %420 = vector.broadcast %419 : vector<1x64xi1> to vector<1x64xi1>
    %421 = arith.xori %417, %420 : vector<1x64xi1>
    %422 = arith.andi %421, %415 : vector<1x64xi1>
    %423 = vector.broadcast %411 : i32 to vector<1x64xi32>
    %424 = arith.addi %413, %423 : vector<1x64xi32>
    %425 = arith.select %422, %424, %413 : vector<1x64xi1>, vector<1x64xi32>
    %c16_i32 = arith.constant 16 : i32
    %426 = vector.broadcast %c16_i32 : i32 to vector<1x64xi32>
    %427 = arith.cmpi slt, %425, %426 : vector<1x64xi32>
    %428 = vector.extract_strided_slice %408 {offsets = [0, 0], sizes = [16, 1], strides = [1, 1]} : vector<16x8xf32> to vector<16x1xf32>
    %429 = vector.extract_strided_slice %408 {offsets = [0, 4], sizes = [16, 1], strides = [1, 1]} : vector<16x8xf32> to vector<16x1xf32>
    %430 = vector.shape_cast %427 : vector<1x64xi1> to vector<1x64xi1>
    %431 = vector.broadcast %430 : vector<1x64xi1> to vector<16x64xi1>
    %432 = vector.shape_cast %428 : vector<16x1xf32> to vector<16x1xf32>
    %433 = vector.broadcast %432 : vector<16x1xf32> to vector<16x64xf32>
    %434 = vector.shape_cast %429 : vector<16x1xf32> to vector<16x1xf32>
    %435 = vector.broadcast %434 : vector<16x1xf32> to vector<16x64xf32>
    %436 = arith.select %431, %433, %435 : vector<16x64xi1>, vector<16x64xf32>
    %437 = arith.mulf %436, %348 : vector<16x64xf32>
    %438 = vector.extract_strided_slice %408 {offsets = [0, 1], sizes = [16, 1], strides = [1, 1]} : vector<16x8xf32> to vector<16x1xf32>
    %439 = vector.extract_strided_slice %408 {offsets = [0, 5], sizes = [16, 1], strides = [1, 1]} : vector<16x8xf32> to vector<16x1xf32>
    %440 = vector.shape_cast %427 : vector<1x64xi1> to vector<1x64xi1>
    %441 = vector.broadcast %440 : vector<1x64xi1> to vector<16x64xi1>
    %442 = vector.shape_cast %438 : vector<16x1xf32> to vector<16x1xf32>
    %443 = vector.broadcast %442 : vector<16x1xf32> to vector<16x64xf32>
    %444 = vector.shape_cast %439 : vector<16x1xf32> to vector<16x1xf32>
    %445 = vector.broadcast %444 : vector<16x1xf32> to vector<16x64xf32>
    %446 = arith.select %441, %443, %445 : vector<16x64xi1>, vector<16x64xf32>
    %447 = arith.mulf %446, %348 : vector<16x64xf32>
    %448 = vector.extract_strided_slice %408 {offsets = [0, 2], sizes = [16, 1], strides = [1, 1]} : vector<16x8xf32> to vector<16x1xf32>
    %449 = vector.extract_strided_slice %408 {offsets = [0, 6], sizes = [16, 1], strides = [1, 1]} : vector<16x8xf32> to vector<16x1xf32>
    %450 = vector.shape_cast %427 : vector<1x64xi1> to vector<1x64xi1>
    %451 = vector.broadcast %450 : vector<1x64xi1> to vector<16x64xi1>
    %452 = vector.shape_cast %448 : vector<16x1xf32> to vector<16x1xf32>
    %453 = vector.broadcast %452 : vector<16x1xf32> to vector<16x64xf32>
    %454 = vector.shape_cast %449 : vector<16x1xf32> to vector<16x1xf32>
    %455 = vector.broadcast %454 : vector<16x1xf32> to vector<16x64xf32>
    %456 = arith.select %451, %453, %455 : vector<16x64xi1>, vector<16x64xf32>
    %457 = arith.mulf %456, %348 : vector<16x64xf32>
    %458 = vector.extract_strided_slice %408 {offsets = [0, 3], sizes = [16, 1], strides = [1, 1]} : vector<16x8xf32> to vector<16x1xf32>
    %459 = vector.extract_strided_slice %408 {offsets = [0, 7], sizes = [16, 1], strides = [1, 1]} : vector<16x8xf32> to vector<16x1xf32>
    %460 = vector.shape_cast %427 : vector<1x64xi1> to vector<1x64xi1>
    %461 = vector.broadcast %460 : vector<1x64xi1> to vector<16x64xi1>
    %462 = vector.shape_cast %458 : vector<16x1xf32> to vector<16x1xf32>
    %463 = vector.broadcast %462 : vector<16x1xf32> to vector<16x64xf32>
    %464 = vector.shape_cast %459 : vector<16x1xf32> to vector<16x1xf32>
    %465 = vector.broadcast %464 : vector<16x1xf32> to vector<16x64xf32>
    %466 = arith.select %461, %463, %465 : vector<16x64xi1>, vector<16x64xf32>
    %467 = arith.mulf %466, %348 : vector<16x64xf32>
    %468 = tpu.concatenate %437, %447, %457, %467 in 1 : vector<16x64xf32>, vector<16x64xf32>, vector<16x64xf32>, vector<16x64xf32> -> vector<16x256xf32>
    %cst_163 = arith.constant dense<0.000000e+00> : vector<2x256xf32>
    %469 = tpu.matmul %382, %468, %cst_163 {dimension_numbers = #tpu.dot_dimension_numbers<[1], [0], [0], [1], [0, 0, 1, 1], [], []>} : vector<2x16xf32>, vector<16x256xf32>, vector<2x256xf32> -> vector<2x256xf32>
    %c0_164 = arith.constant 0 : index
    %c0_165 = arith.constant 0 : index
    %470 = vector.load %arg7[%c0_164, %c0_165] : memref<256x32xf32, #tpu.memory_space<vmem>>, vector<256x32xf32>
    %cst_166 = arith.constant dense<0.000000e+00> : vector<2x32xf32>
    %471 = tpu.matmul %469, %470, %cst_166 {dimension_numbers = #tpu.dot_dimension_numbers<[1], [0], [0], [1], [0, 0, 1, 1], [], []>} : vector<2x256xf32>, vector<256x32xf32>, vector<2x32xf32> -> vector<2x32xf32>
    %c0_167 = arith.constant 0 : index
    %c0_168 = arith.constant 0 : index
    %472 = vector.load %arg8[%c0_167, %c0_168] : memref<1x32xf32, #tpu.memory_space<vmem>>, vector<1x32xf32>
    %473 = vector.broadcast %472 : vector<1x32xf32> to vector<2x32xf32>
    %474 = arith.addf %471, %473 : vector<2x32xf32>
    %475 = vector.extract_strided_slice %474 {offsets = [0, 0], sizes = [2, 16], strides = [1, 1]} : vector<2x32xf32> to vector<2x16xf32>
    %476 = vector.extract_strided_slice %474 {offsets = [0, 16], sizes = [2, 16], strides = [1, 1]} : vector<2x32xf32> to vector<2x16xf32>
    %477 = arith.mulf %475, %476 : vector<2x16xf32>
    %478 = arith.subf %475, %476 : vector<2x16xf32>
    %479 = tpu.concatenate %475, %477, %478, %476 in 1 : vector<2x16xf32>, vector<2x16xf32>, vector<2x16xf32>, vector<2x16xf32> -> vector<2x64xf32>
    %c0_169 = arith.constant 0 : index
    %c0_170 = arith.constant 0 : index
    %480 = vector.load %arg9[%c0_169, %c0_170] : memref<64x3xf32, #tpu.memory_space<vmem>>, vector<64x3xf32>
    %cst_171 = arith.constant dense<0.000000e+00> : vector<2x3xf32>
    %481 = tpu.matmul %479, %480, %cst_171 {dimension_numbers = #tpu.dot_dimension_numbers<[1], [0], [0], [1], [0, 0, 1, 1], [], []>} : vector<2x64xf32>, vector<64x3xf32>, vector<2x3xf32> -> vector<2x3xf32>
    %c0_172 = arith.constant 0 : index
    %c0_173 = arith.constant 0 : index
    %482 = vector.load %arg10[%c0_172, %c0_173] : memref<1x3xf32, #tpu.memory_space<vmem>>, vector<1x3xf32>
    %483 = vector.broadcast %482 : vector<1x3xf32> to vector<2x3xf32>
    %484 = arith.addf %481, %483 : vector<2x3xf32>
    %c0_174 = arith.constant 0 : index
    %c0_175 = arith.constant 0 : index
    %485 = vector.load %arg11[%c0_174, %c0_175] : memref<2x3xf32, #tpu.memory_space<vmem>>, vector<2x3xf32>
    tpu.vector_store %arg11[%c0_174, %c0_175], %484 {strides = array<i32>} : memref<2x3xf32, #tpu.memory_space<vmem>>, vector<2x3xf32>,
    return
  }
}

</mosaic_0001>

<llo_original>
// kernel: snli_bilstm_attentive_forward.1
$region0: #{snli_bilstm_attentive_forward.1}
  #allocation0 [shape = 'u32[]', space=smem, size = 0x4, offset = 0x4, fixed_abs, tag = 'smem constant byte address 0x4 - core index']
  #allocation1 [shape = 'u32[144,128]{1,0:T(1,128)}', space=vmem, size = 0x12000, scoped, tag = 'internal scratch']
  #allocation2 [shape = 'f32[16,256]{1,0:T(8,128)}', space=vmem, size = 0x4000, scoped, tag = 'scratch operand']
  #allocation3 [shape = 'f32[16,32]{1,0:T(8,128)}', space=vmem, size = 0x2000, scoped, tag = 'scratch operand']
  #allocation4 [shape = 'f32[16,32]{1,0:T(8,128)}', space=vmem, size = 0x2000, scoped, tag = 'scratch operand']
  %s0 = inlined_call_operand.vmem [shape: s32[2,16,1], index: 0, kind: input, shape index: {}]
  %s1 = inlined_call_operand.vmem [shape: f32[200,64], index: 1, kind: input, shape index: {}]
  %s2 = inlined_call_operand.vmem [shape: f32[64,256], index: 2, kind: input, shape index: {}]
  %s3 = inlined_call_operand.vmem [shape: f32[1,256], index: 3, kind: input, shape index: {}]
  %s4 = inlined_call_operand.vmem [shape: f32[64,256], index: 4, kind: input, shape index: {}]
  %s5 = inlined_call_operand.vmem [shape: f32[64,16], index: 5, kind: input, shape index: {}]
  %s6 = inlined_call_operand.vmem [shape: f32[16,8], index: 6, kind: input, shape index: {}]
  %s7 = inlined_call_operand.vmem [shape: f32[256,32], index: 7, kind: input, shape index: {}]
  %s8 = inlined_call_operand.vmem [shape: f32[1,32], index: 8, kind: input, shape index: {}]
  %s9 = inlined_call_operand.vmem [shape: f32[64,3], index: 9, kind: input, shape index: {}]
  %s10 = inlined_call_operand.vmem [shape: f32[1,3], index: 10, kind: input, shape index: {}]
  %s11 = inlined_call_operand.hbm [shape: f32[2,3], index: 11, kind: output, shape index: {}]
  %s12 = sld [smem:[#allocation0]]
  $region54: #{snli_bilstm_attentive_forward.1} parent=0
    _
  %s14 = ssub.s32 1, %s12
  %s15 = scalar_select 0, %s14, %s12
  $region1: #{snli_bilstm_attentive_forward.1} parent=0
    #allocation5 [shape = 'u8[1024]{0}', space=vmem, size = 0x400, scoped, tag = 'output window, operand 0, single buffered']
    #allocation6 [shape = 's32[1]{0}', space=sflag, size = 0x4, scoped, tag = 'scoped memory for snli_bilstm_attentive_forward.1']
    %16 = vsyncpa [#allocation6], 0
    // Predicated region
    $region2: #{snli_bilstm_attentive_forward.1} parent=1 // pred_check
      _
    $region3: #{snli_bilstm_attentive_forward.1} parent=1 // pred_check_branch
      %18 = sbr.rel (0) target = $region5
    $region4: #{snli_bilstm_attentive_forward.1} parent=1 // pred_region
      _
    $region5: #{snli_bilstm_attentive_forward.1} parent=1 // pred_fallthru
      _
    // Predicated region
    $region6: #{snli_bilstm_attentive_forward.1} parent=1 // pred_check
      _
    $region7: #{snli_bilstm_attentive_forward.1} parent=1 // pred_check_branch
      %20 = sbr.rel (0) target = $region9
    $region8: #{snli_bilstm_attentive_forward.1} parent=1 // pred_region
      _
    $region9: #{snli_bilstm_attentive_forward.1} parent=1 // pred_fallthru
      _
    // Predicated region
    $region10: #{snli_bilstm_attentive_forward.1} parent=1 // pred_check
      _
    $region11: #{snli_bilstm_attentive_forward.1} parent=1 // pred_check_branch
      %22 = sbr.rel (0) target = $region13
    $region12: #{snli_bilstm_attentive_forward.1} parent=1 // pred_region
      _
    $region13: #{snli_bilstm_attentive_forward.1} parent=1 // pred_fallthru
      _
    // Predicated region
    $region14: #{snli_bilstm_attentive_forward.1} parent=1 // pred_check
      _
    $region15: #{snli_bilstm_attentive_forward.1} parent=1 // pred_check_branch
      %24 = sbr.rel (0) target = $region17
    $region16: #{snli_bilstm_attentive_forward.1} parent=1 // pred_region
      _
    $region17: #{snli_bilstm_attentive_forward.1} parent=1 // pred_fallthru
      _
    // Predicated region
    $region18: #{snli_bilstm_attentive_forward.1} parent=1 // pred_check
      _
    $region19: #{snli_bilstm_attentive_forward.1} parent=1 // pred_check_branch
      %26 = sbr.rel (0) target = $region21
    $region20: #{snli_bilstm_attentive_forward.1} parent=1 // pred_region
      _
    $region21: #{snli_bilstm_attentive_forward.1} parent=1 // pred_fallthru
      _
    // Predicated region
    $region22: #{snli_bilstm_attentive_forward.1} parent=1 // pred_check
      _
    $region23: #{snli_bilstm_attentive_forward.1} parent=1 // pred_check_branch
      %28 = sbr.rel (0) target = $region25
    $region24: #{snli_bilstm_attentive_forward.1} parent=1 // pred_region
      _
    $region25: #{snli_bilstm_attentive_forward.1} parent=1 // pred_fallthru
      _
    // Predicated region
    $region26: #{snli_bilstm_attentive_forward.1} parent=1 // pred_check
      _
    $region27: #{snli_bilstm_attentive_forward.1} parent=1 // pred_check_branch
      %30 = sbr.rel (0) target = $region29
    $region28: #{snli_bilstm_attentive_forward.1} parent=1 // pred_region
      _
    $region29: #{snli_bilstm_attentive_forward.1} parent=1 // pred_fallthru
      _
    // Predicated region
    $region30: #{snli_bilstm_attentive_forward.1} parent=1 // pred_check
      _
    $region31: #{snli_bilstm_attentive_forward.1} parent=1 // pred_check_branch
      %32 = sbr.rel (0) target = $region33
    $region32: #{snli_bilstm_attentive_forward.1} parent=1 // pred_region
      _
    $region33: #{snli_bilstm_attentive_forward.1} parent=1 // pred_fallthru
      _
    // Predicated region
    $region34: #{snli_bilstm_attentive_forward.1} parent=1 // pred_check
      _
    $region35: #{snli_bilstm_attentive_forward.1} parent=1 // pred_check_branch
      %34 = sbr.rel (0) target = $region37
    $region36: #{snli_bilstm_attentive_forward.1} parent=1 // pred_region
      _
    $region37: #{snli_bilstm_attentive_forward.1} parent=1 // pred_fallthru
      _
    // Predicated region
    $region38: #{snli_bilstm_attentive_forward.1} parent=1 // pred_check
      _
    $region39: #{snli_bilstm_attentive_forward.1} parent=1 // pred_check_branch
      %36 = sbr.rel (0) target = $region41
    $region40: #{snli_bilstm_attentive_forward.1} parent=1 // pred_region
      _
    $region41: #{snli_bilstm_attentive_forward.1} parent=1 // pred_fallthru
      _
    // Predicated region
    $region42: #{snli_bilstm_attentive_forward.1} parent=1 // pred_check
      _
    $region43: #{snli_bilstm_attentive_forward.1} parent=1 // pred_check_branch
      %38 = sbr.rel (0) target = $region45
    $region44: #{snli_bilstm_attentive_forward.1} parent=1 // pred_region
      _
    $region45: #{snli_bilstm_attentive_forward.1} parent=1 // pred_fallthru
      _
    %v39 = vlaneseq
    %v40 = vand.u32 %v39, 127
    %v41 = vadd.s32 %v40, 128
    %v42 = vld [vmem:[%s0] sm:$0xff]
    %v43 = vld [vmem:[%s0 + $0x8] sm:$0xff]
    %44 = vset.pattern.permute.xlu0 0
    %45 = vperm.xlu0 %44, %v42
    %v46 = vpop.permute.xlu0 %45
    %47 = vset.pattern.permute.xlu0 0
    %48 = vperm.xlu0 %47, %v43
    %v49 = vpop.permute.xlu0 %48
    %vm50 = vcmp.eq.s32.totalorder %v40, %v46
    %vm51 = vcmp.eq.s32.totalorder %v41, %v46
    %vm52 = vcmp.eq.s32.totalorder %v40, %v49
    %vm53 = vcmp.eq.s32.totalorder %v41, %v49
    %s54 = scalar_lea.vmem %s0, 16
    %v55 = vld [vmem:[%s54] sm:$0xff]
    %v56 = vld [vmem:[%s54 + $0x8] sm:$0xff]
    %57 = vset.pattern.permute.xlu0 0
    %58 = vperm.xlu0 %57, %v55
    %v59 = vpop.permute.xlu0 %58
    %60 = vset.pattern.permute.xlu0 0
    %61 = vperm.xlu0 %60, %v56
    %v62 = vpop.permute.xlu0 %61
    %vm63 = vcmp.eq.s32.totalorder %v40, %v59
    %vm64 = vcmp.eq.s32.totalorder %v41, %v59
    %vm65 = vcmp.eq.s32.totalorder %v40, %v62
    %vm66 = vcmp.eq.s32.totalorder %v41, %v62
    %vm67 = vmor %vm50, %vm63
    %vm68 = vmor %vm51, %vm64
    %vm69 = vmor %vm52, %vm65
    %vm70 = vmor %vm53, %vm66
    %v71 = vsel %vm67, 1.0, 0.0
    %v72 = vsel %vm68, 1.0, 0.0
    %v73 = vsel %vm69, 1.0, 0.0
    %v74 = vsel %vm70, 1.0, 0.0
    %v75 = vld [vmem:[%s1] sm:$0xff]
    %v76 = vld [vmem:[%s1 + $0x8] sm:$0xff]
    %v77 = vld [vmem:[%s1 + $0x10] sm:$0xff]
    %v78 = vld [vmem:[%s1 + $0x18] sm:$0xff]
    %v79 = vld [vmem:[%s1 + $0x20] sm:$0xff]
    %v80 = vld [vmem:[%s1 + $0x28] sm:$0xff]
    %v81 = vld [vmem:[%s1 + $0x30] sm:$0xff]
    %v82 = vld [vmem:[%s1 + $0x38] sm:$0xff]
    %v83 = vld [vmem:[%s1 + $0x40] sm:$0xff]
    %v84 = vld [vmem:[%s1 + $0x48] sm:$0xff]
    %v85 = vld [vmem:[%s1 + $0x50] sm:$0xff]
    %v86 = vld [vmem:[%s1 + $0x58] sm:$0xff]
    %v87 = vld [vmem:[%s1 + $0x60] sm:$0xff]
    %v88 = vld [vmem:[%s1 + $0x68] sm:$0xff]
    %v89 = vld [vmem:[%s1 + $0x70] sm:$0xff]
    %v90 = vld [vmem:[%s1 + $0x78] sm:$0xff]
    %v91 = vld [vmem:[%s1 + $0x80] sm:$0xff]
    %v92 = vld [vmem:[%s1 + $0x88] sm:$0xff]
    %v93 = vld [vmem:[%s1 + $0x90] sm:$0xff]
    %v94 = vld [vmem:[%s1 + $0x98] sm:$0xff]
    %v95 = vld [vmem:[%s1 + $0xa0] sm:$0xff]
    %v96 = vld [vmem:[%s1 + $0xa8] sm:$0xff]
    %v97 = vld [vmem:[%s1 + $0xb0] sm:$0xff]
    %v98 = vld [vmem:[%s1 + $0xb8] sm:$0xff]
    %v99 = vld [vmem:[%s1 + $0xc0] sm:$0xff]
    %vm100 = vcmask 588800
    %v102 = vsel %vm100, %v72, 0
    %v105 = vsel %vm100, %v74, 0
    %107 = vmatprep.subr.mxu0 0.0
    %108 = vmatpush1.msra.mxu0 %v90
    %109 = vmatprep.subr.mxu0 0.0
    %110 = vmatpush1.msra.mxu0 %v89
    %111 = vmatprep.subr.mxu0 0.0
    %112 = vmatpush1.msra.mxu0 %v88
    %113 = vmatprep.subr.mxu0 0.0
    %114 = vmatpush1.msra.mxu0 %v87
    %115 = vmatprep.subr.mxu0 0.0
    %116 = vmatpush1.msra.mxu0 %v86
    %117 = vmatprep.subr.mxu0 0.0
    %118 = vmatpush1.msra.mxu0 %v85
    %119 = vmatprep.subr.mxu0 0.0
    %120 = vmatpush1.msra.mxu0 %v84
    %121 = vmatprep.subr.mxu0 0.0
    %122 = vmatpush1.msra.mxu0 %v83
    %123 = vmatprep.subr.mxu0 0.0
    %124 = vmatpush1.msra.mxu0 %v82
    %125 = vmatprep.subr.mxu0 0.0
    %126 = vmatpush1.msra.mxu0 %v81
    %127 = vmatprep.subr.mxu0 0.0
    %128 = vmatpush1.msra.mxu0 %v80
    %129 = vmatprep.subr.mxu0 0.0
    %130 = vmatpush1.msra.mxu0 %v79
    %131 = vmatprep.subr.mxu0 0.0
    %132 = vmatpush1.msra.mxu0 %v78
    %133 = vmatprep.subr.mxu0 0.0
    %134 = vmatpush1.msra.mxu0 %v77
    %135 = vmatprep.subr.mxu0 0.0
    %136 = vmatpush1.msra.mxu0 %v76
    %137 = vmatprep.subr.mxu0 0.0
    %138 = vmatpush1.msra.mxu0 %v75
    %139 = vmatprep.subr.mxu0 0.0
    %140 = vmatpush2.msra.mxu0 0.0
    %141 = vmatprep.subr.mxu0 0.0
    %142 = vmatpush2.msra.mxu0 0.0
    %143 = vmatprep.subr.mxu0 0.0
    %144 = vmatpush2.msra.mxu0 0.0
    %145 = vmatprep.subr.mxu0 0.0
    %146 = vmatpush2.msra.mxu0 0.0
    %147 = vmatprep.subr.mxu0 0.0
    %148 = vmatpush2.msra.mxu0 0.0
    %149 = vmatprep.subr.mxu0 0.0
    %150 = vmatpush2.msra.mxu0 0.0
    %151 = vmatprep.subr.mxu0 0.0
    %152 = vmatpush2.msra.mxu0 0.0
    %153 = vmatprep.subr.mxu0 0.0
    %154 = vmatpush2.msra.mxu0 %v99
    %155 = vmatprep.subr.mxu0 0.0
    %156 = vmatpush2.msra.mxu0 %v98
    %157 = vmatprep.subr.mxu0 0.0
    %158 = vmatpush2.msra.mxu0 %v97
    %159 = vmatprep.subr.mxu0 0.0
    %160 = vmatpush2.msra.mxu0 %v96
    %161 = vmatprep.subr.mxu0 0.0
    %162 = vmatpush2.msra.mxu0 %v95
    %163 = vmatprep.subr.mxu0 0.0
    %164 = vmatpush2.msra.mxu0 %v94
    %165 = vmatprep.subr.mxu0 0.0
    %166 = vmatpush2.msra.mxu0 %v93
    %167 = vmatprep.subr.mxu0 0.0
    %168 = vmatpush2.msra.mxu0 %v92
    %169 = vmatprep.subr.mxu0 0.0
    %170 = vmatpush2.msra.mxu0 %v91
    %171 = vmatprep.mubr.f32.mxu0 %v102
    %172 = vmatmul.mubr.f32.gmra.mxu0 %v71
    %v173 = vpop.f32.mrf.mxu0
    %v174 = vadd.f32 0.0, %v173
    %v175 = vpop.f32.mrf.mxu0
    %176 = vmatprep.mubr.f32.mxu0 %v105
    %177 = vmatmul.mubr.f32.gmra.mxu0 %v73
    %v178 = vpop.f32.mrf.mxu0
    %v179 = vadd.f32 0.0, %v178
    %v180 = vpop.f32.mrf.mxu0
    %181 = vdwg.mxu0
    %v182 = vld [vmem:[%s2] sm:$0xff]
    %v183 = vld [vmem:[%s2 + $0x8] sm:$0xff]
    %v184 = vld [vmem:[%s2 + $0x10] sm:$0xff]
    %v185 = vld [vmem:[%s2 + $0x18] sm:$0xff]
    %v186 = vld [vmem:[%s2 + $0x20] sm:$0xff]
    %v187 = vld [vmem:[%s2 + $0x28] sm:$0xff]
    %v188 = vld [vmem:[%s2 + $0x30] sm:$0xff]
    %v189 = vld [vmem:[%s2 + $0x38] sm:$0xff]
    %v190 = vld [vmem:[%s2 + $0x40] sm:$0xff]
    %v191 = vld [vmem:[%s2 + $0x48] sm:$0xff]
    %v192 = vld [vmem:[%s2 + $0x50] sm:$0xff]
    %v193 = vld [vmem:[%s2 + $0x58] sm:$0xff]
    %v194 = vld [vmem:[%s2 + $0x60] sm:$0xff]
    %v195 = vld [vmem:[%s2 + $0x68] sm:$0xff]
    %v196 = vld [vmem:[%s2 + $0x70] sm:$0xff]
    %v197 = vld [vmem:[%s2 + $0x78] sm:$0xff]
    %v198 = vld [vmem:[%s3] sm:$0x3]
    %v200 = vlaneseq
    %v201 = vshrl.u32 %v200, 7
    %v202 = vsub.s32 0, %v201
    %v203 = vrot.slane %v198, %v202
    %v204 = vlaneseq
    %v205 = vshrl.u32 %v204, 7
    %v206 = vsub.s32 1, %v205
    %v207 = vrot.slane %v198, %v206
    %vm210 = vcmask 523264
    %v212 = vsel %vm210, %v174, 0
    %v215 = vsel %vm210, %v179, 0
    %217 = vmatprep.subr.mxu0 0.0
    %218 = vmatpush1.msra.mxu0 0.0
    %219 = vmatprep.subr.mxu0 0.0
    %220 = vmatpush1.msra.mxu0 0.0
    %221 = vmatprep.subr.mxu0 0.0
    %222 = vmatpush1.msra.mxu0 0.0
    %223 = vmatprep.subr.mxu0 0.0
    %224 = vmatpush1.msra.mxu0 0.0
    %225 = vmatprep.subr.mxu0 0.0
    %226 = vmatpush1.msra.mxu0 0.0
    %227 = vmatprep.subr.mxu0 0.0
    %228 = vmatpush1.msra.mxu0 0.0
    %229 = vmatprep.subr.mxu0 0.0
    %230 = vmatpush1.msra.mxu0 0.0
    %231 = vmatprep.subr.mxu0 0.0
    %232 = vmatpush1.msra.mxu0 0.0
    %233 = vmatprep.subr.mxu0 %v197
    %234 = vmatpush1.msra.mxu0 %v196
    %235 = vmatprep.subr.mxu0 %v195
    %236 = vmatpush1.msra.mxu0 %v194
    %237 = vmatprep.subr.mxu0 %v193
    %238 = vmatpush1.msra.mxu0 %v192
    %239 = vmatprep.subr.mxu0 %v191
    %240 = vmatpush1.msra.mxu0 %v190
    %241 = vmatprep.subr.mxu0 %v189
    %242 = vmatpush1.msra.mxu0 %v188
    %243 = vmatprep.subr.mxu0 %v187
    %244 = vmatpush1.msra.mxu0 %v186
    %245 = vmatprep.subr.mxu0 %v185
    %246 = vmatpush1.msra.mxu0 %v184
    %247 = vmatprep.subr.mxu0 %v183
    %248 = vmatpush1.msra.mxu0 %v182
    %249 = vmatprep.subr.mxu0 0.0
    %250 = vmatpush2.msra.mxu0 0.0
    %251 = vmatprep.subr.mxu0 0.0
    %252 = vmatpush2.msra.mxu0 0.0
    %253 = vmatprep.subr.mxu0 0.0
    %254 = vmatpush2.msra.mxu0 0.0
    %255 = vmatprep.subr.mxu0 0.0
    %256 = vmatpush2.msra.mxu0 0.0
    %257 = vmatprep.subr.mxu0 0.0
    %258 = vmatpush2.msra.mxu0 0.0
    %259 = vmatprep.subr.mxu0 0.0
    %260 = vmatpush2.msra.mxu0 0.0
    %261 = vmatprep.subr.mxu0 0.0
    %262 = vmatpush2.msra.mxu0 0.0
    %263 = vmatprep.subr.mxu0 0.0
    %264 = vmatpush2.msra.mxu0 0.0
    %265 = vmatprep.subr.mxu0 0.0
    %266 = vmatpush2.msra.mxu0 0.0
    %267 = vmatprep.subr.mxu0 0.0
    %268 = vmatpush2.msra.mxu0 0.0
    %269 = vmatprep.subr.mxu0 0.0
    %270 = vmatpush2.msra.mxu0 0.0
    %271 = vmatprep.subr.mxu0 0.0
    %272 = vmatpush2.msra.mxu0 0.0
    %273 = vmatprep.subr.mxu0 0.0
    %274 = vmatpush2.msra.mxu0 0.0
    %275 = vmatprep.subr.mxu0 0.0
    %276 = vmatpush2.msra.mxu0 0.0
    %277 = vmatprep.subr.mxu0 0.0
    %278 = vmatpush2.msra.mxu0 0.0
    %279 = vmatprep.subr.mxu0 0.0
    %280 = vmatpush2.msra.mxu0 0.0
    %281 = vmatprep.mubr.f32.mxu0 0.0
    %282 = vmatmul.mubr.f32.gmra.mxu0 %v212
    %v283 = vpop.f32.mrf.mxu0
    %v284 = vadd.f32 %v203, %v283
    %v285 = vpop.f32.mrf.mxu0
    %v286 = vadd.f32 %v207, %v285
    %287 = vmatprep.mubr.f32.mxu0 0.0
    %288 = vmatmul.mubr.f32.gmra.mxu0 %v215
    %v289 = vpop.f32.mrf.mxu0
    %v290 = vadd.f32 %v203, %v289
    %v291 = vpop.f32.mrf.mxu0
    %v292 = vadd.f32 %v207, %v291
    %293 = vdwg.mxu0
    %294 = vst [vmem:[#allocation2] sm:$0xff] %v284
    %295 = vst [vmem:[#allocation2 + $0x8] sm:$0xff] %v286
    %296 = vst [vmem:[#allocation2 + $0x10] sm:$0xff] %v290
    %297 = vst [vmem:[#allocation2 + $0x18] sm:$0xff] %v292
    %v298 = vld [vmem:[%s4] sm:$0xff]
    %v299 = vld [vmem:[%s4 + $0x8] sm:$0xff]
    %v300 = vld [vmem:[%s4 + $0x10] sm:$0xff]
    %v301 = vld [vmem:[%s4 + $0x18] sm:$0xff]
    %v302 = vld [vmem:[%s4 + $0x20] sm:$0xff]
    %v303 = vld [vmem:[%s4 + $0x28] sm:$0xff]
    %v304 = vld [vmem:[%s4 + $0x30] sm:$0xff]
    %v305 = vld [vmem:[%s4 + $0x38] sm:$0xff]
    %v306 = vld [vmem:[%s4 + $0x40] sm:$0xff]
    %v307 = vld [vmem:[%s4 + $0x48] sm:$0xff]
    %v308 = vld [vmem:[%s4 + $0x50] sm:$0xff]
    %v309 = vld [vmem:[%s4 + $0x58] sm:$0xff]
    %v310 = vld [vmem:[%s4 + $0x60] sm:$0xff]
    %v311 = vld [vmem:[%s4 + $0x68] sm:$0xff]
    %v312 = vld [vmem:[%s4 + $0x70] sm:$0xff]
    %v313 = vld [vmem:[%s4 + $0x78] sm:$0xff]
    %vm314 = vcmp.lt.s32.totalorder %v40, 0
    %v315 = vsub.s32 0, %v40
    %v316 = vsel %vm314, %v315, %v40
    %v317 = vshrl.u32 %v316, 6
    %v318 = vand.u32 %v316, 63
    %v319 = vsub.s32 0, %v318
    %v320 = vsel %vm314, %v319, %v318
    %vm321 = vcmp.lt.s32.totalorder %v41, 0
    %v322 = vsub.s32 0, %v41
    %v323 = vsel %vm321, %v322, %v41
    %v324 = vshrl.u32 %v323, 6
    %v325 = vand.u32 %v323, 63
    %v326 = vsub.s32 0, %v325
    %v327 = vsel %vm321, %v326, %v325
    %vm328 = vcmp.ne.s32.totalorder %v320, 0
    %vm329 = vcmp.ne.s32.totalorder %v327, 0
    %vm330 = vcmp.lt.s32.totalorder %v320, 0
    %vm331 = vcmp.lt.s32.totalorder %v327, 0
    %vm332 = vmand %vm330, %vm328
    %vm333 = vmand %vm331, %vm329
    %v334 = vadd.s32 %v320, 64
    %v335 = vadd.s32 %v327, 64
    %v336 = vsel %vm332, %v334, %v320
    %v337 = vsel %vm333, %v335, %v327
    %vm338 = vcmp.lt.s32.totalorder %v336, 32
    %vm339 = vcmp.lt.s32.totalorder %v337, 32
    %v340 = vld [vmem:[#allocation2] sm:$0x3]
    %v341 = vld [vmem:[#allocation2 + $0x8] sm:$0x3]
    %v342 = vld [vmem:[#allocation2 + $0x10] sm:$0xc0]
    %v343 = vld [vmem:[#allocation2 + $0x18] sm:$0xc0]
    %v344 = vsel %vm338, 1, 0
    %v345 = vsel %vm339, 1, 0
    %vm346 = vcmp.eq.s32.totalorder %v344, 1
    %vm347 = vcmp.eq.s32.totalorder %v345, 1
    %v350 = vrot.slane %v342, 6
    %v351 = vrot.slane %v343, 6
    %v354 = vsel %vm346, %v340, %v350
    %v355 = vsel %vm347, %v341, %v351
    %v357 = vsel %vm210, 0.0, 0
    %359 = vmatprep.subr.mxu0 0.0
    %360 = vmatpush1.msra.mxu0 0.0
    %361 = vmatprep.subr.mxu0 0.0
    %362 = vmatpush1.msra.mxu0 0.0
    %363 = vmatprep.subr.mxu0 0.0
    %364 = vmatpush1.msra.mxu0 0.0
    %365 = vmatprep.subr.mxu0 0.0
    %366 = vmatpush1.msra.mxu0 0.0
    %367 = vmatprep.subr.mxu0 0.0
    %368 = vmatpush1.msra.mxu0 0.0
    %369 = vmatprep.subr.mxu0 0.0
    %370 = vmatpush1.msra.mxu0 0.0
    %371 = vmatprep.subr.mxu0 0.0
    %372 = vmatpush1.msra.mxu0 0.0
    %373 = vmatprep.subr.mxu0 0.0
    %374 = vmatpush1.msra.mxu0 0.0
    %375 = vmatprep.subr.mxu0 %v313
    %376 = vmatpush1.msra.mxu0 %v312
    %377 = vmatprep.subr.mxu0 %v311
    %378 = vmatpush1.msra.mxu0 %v310
    %379 = vmatprep.subr.mxu0 %v309
    %380 = vmatpush1.msra.mxu0 %v308
    %381 = vmatprep.subr.mxu0 %v307
    %382 = vmatpush1.msra.mxu0 %v306
    %383 = vmatprep.subr.mxu0 %v305
    %384 = vmatpush1.msra.mxu0 %v304
    %385 = vmatprep.subr.mxu0 %v303
    %386 = vmatpush1.msra.mxu0 %v302
    %387 = vmatprep.subr.mxu0 %v301
    %388 = vmatpush1.msra.mxu0 %v300
    %389 = vmatprep.subr.mxu0 %v299
    %390 = vmatpush1.msra.mxu0 %v298
    %391 = vmatprep.subr.mxu0 0.0
    %392 = vmatpush2.msra.mxu0 0.0
    %393 = vmatprep.subr.mxu0 0.0
    %394 = vmatpush2.msra.mxu0 0.0
    %395 = vmatprep.subr.mxu0 0.0
    %396 = vmatpush2.msra.mxu0 0.0
    %397 = vmatprep.subr.mxu0 0.0
    %398 = vmatpush2.msra.mxu0 0.0
    %399 = vmatprep.subr.mxu0 0.0
    %400 = vmatpush2.msra.mxu0 0.0
    %401 = vmatprep.subr.mxu0 0.0
    %402 = vmatpush2.msra.mxu0 0.0
    %403 = vmatprep.subr.mxu0 0.0
    %404 = vmatpush2.msra.mxu0 0.0
    %405 = vmatprep.subr.mxu0 0.0
    %406 = vmatpush2.msra.mxu0 0.0
    %407 = vmatprep.subr.mxu0 0.0
    %408 = vmatpush2.msra.mxu0 0.0
    %409 = vmatprep.subr.mxu0 0.0
    %410 = vmatpush2.msra.mxu0 0.0
    %411 = vmatprep.subr.mxu0 0.0
    %412 = vmatpush2.msra.mxu0 0.0
    %413 = vmatprep.subr.mxu0 0.0
    %414 = vmatpush2.msra.mxu0 0.0
    %415 = vmatprep.subr.mxu0 0.0
    %416 = vmatpush2.msra.mxu0 0.0
    %417 = vmatprep.subr.mxu0 0.0
    %418 = vmatpush2.msra.mxu0 0.0
    %419 = vmatprep.subr.mxu0 0.0
    %420 = vmatpush2.msra.mxu0 0.0
    %421 = vmatprep.subr.mxu0 0.0
    %422 = vmatpush2.msra.mxu0 0.0
    %423 = vmatprep.mubr.f32.mxu0 0.0
    %424 = vmatmul.mubr.f32.gmra.mxu0 %v357
    %v425 = vpop.f32.mrf.mxu0
    %v426 = vadd.f32 0.0, %v425
    %v427 = vpop.f32.mrf.mxu0
    %v428 = vadd.f32 0.0, %v427
    %429 = vdwg.mxu0
    %v430 = vadd.f32 %v354, %v426
    %v431 = vadd.f32 %v355, %v428
    %v432 = vmul.f32 %v430, 0.5
    %v433 = vmul.f32 %v431, 0.5
    %v434 = vtanh.pop %v432
    %v435 = vtanh.pop %v433
    %v436 = vmul.f32 %v434, 0.5
    %v437 = vmul.f32 %v435, 0.5
    %v438 = vadd.f32 %v436, 0.5
    %v439 = vadd.f32 %v437, 0.5
    %v440 = vtanh.pop %v431
    %v441 = vmul.f32 %v438, 0.0
    %443 = vrot.lane.b32.xlu0 %v440, 64
    %v444 = vpop.permute.xlu0 %443
    %v446 = vmul.f32 %v438, %v444
    %448 = vrot.lane.b32.xlu0 %v446, 64
    %v449 = vpop.permute.xlu0 %448
    %v451 = vadd.f32 %v441, %v449
    %v452 = vtanh.pop %v451
    %454 = vrot.lane.b32.xlu0 %v452, 64
    %v455 = vpop.permute.xlu0 %454
    %v457 = vmul.f32 %v439, %v455
    %vm458 = vcmask 254976
    %459 = vst.msk [vmem:[#allocation3] sm:$0x3] %vm458, %v457
    %461 = vrot.lane.b32.xlu0 %v457, 96
    %v462 = vpop.permute.xlu0 %461
    %464 = vst.msk [vmem:[#allocation4 + $0xe] sm:$0x3] %vm458, %v462
    %v465 = vld [vmem:[#allocation2] sm:$0xc]
    %v466 = vld [vmem:[#allocation2 + $0x8] sm:$0xc]
    %v467 = vld [vmem:[#allocation2 + $0x10] sm:$0x30]
    %v468 = vld [vmem:[#allocation2 + $0x18] sm:$0x30]
    %v471 = vrot.slane %v467, 2
    %v472 = vrot.slane %v468, 2
    %v475 = vsel %vm346, %v465, %v471
    %v476 = vsel %vm347, %v466, %v472
    %v477 = vsel %vm210, %v457, 0
    %479 = vmatprep.subr.mxu0 0.0
    %480 = vmatpush1.msra.mxu0 0.0
    %481 = vmatprep.subr.mxu0 0.0
    %482 = vmatpush1.msra.mxu0 0.0
    %483 = vmatprep.subr.mxu0 0.0
    %484 = vmatpush1.msra.mxu0 0.0
    %485 = vmatprep.subr.mxu0 0.0
    %486 = vmatpush1.msra.mxu0 0.0
    %487 = vmatprep.subr.mxu0 0.0
    %488 = vmatpush1.msra.mxu0 0.0
    %489 = vmatprep.subr.mxu0 0.0
    %490 = vmatpush1.msra.mxu0 0.0
    %491 = vmatprep.subr.mxu0 0.0
    %492 = vmatpush1.msra.mxu0 0.0
    %493 = vmatprep.subr.mxu0 0.0
    %494 = vmatpush1.msra.mxu0 0.0
    %495 = vmatprep.subr.mxu0 %v313
    %496 = vmatpush1.msra.mxu0 %v312
    %497 = vmatprep.subr.mxu0 %v311
    %498 = vmatpush1.msra.mxu0 %v310
    %499 = vmatprep.subr.mxu0 %v309
    %500 = vmatpush1.msra.mxu0 %v308
    %501 = vmatprep.subr.mxu0 %v307
    %502 = vmatpush1.msra.mxu0 %v306
    %503 = vmatprep.subr.mxu0 %v305
    %504 = vmatpush1.msra.mxu0 %v304
    %505 = vmatprep.subr.mxu0 %v303
    %506 = vmatpush1.msra.mxu0 %v302
    %507 = vmatprep.subr.mxu0 %v301
    %508 = vmatpush1.msra.mxu0 %v300
    %509 = vmatprep.subr.mxu0 %v299
    %510 = vmatpush1.msra.mxu0 %v298
    %511 = vmatprep.subr.mxu0 0.0
    %512 = vmatpush2.msra.mxu0 0.0
    %513 = vmatprep.subr.mxu0 0.0
    %514 = vmatpush2.msra.mxu0 0.0
    %515 = vmatprep.subr.mxu0 0.0
    %516 = vmatpush2.msra.mxu0 0.0
    %517 = vmatprep.subr.mxu0 0.0
    %518 = vmatpush2.msra.mxu0 0.0
    %519 = vmatprep.subr.mxu0 0.0
    %520 = vmatpush2.msra.mxu0 0.0
    %521 = vmatprep.subr.mxu0 0.0
    %522 = vmatpush2.msra.mxu0 0.0
    %523 = vmatprep.subr.mxu0 0.0
    %524 = vmatpush2.msra.mxu0 0.0
    %525 = vmatprep.subr.mxu0 0.0
    %526 = vmatpush2.msra.mxu0 0.0
    %527 = vmatprep.subr.mxu0 0.0
    %528 = vmatpush2.msra.mxu0 0.0
    %529 = vmatprep.subr.mxu0 0.0
    %530 = vmatpush2.msra.mxu0 0.0
    %531 = vmatprep.subr.mxu0 0.0
    %532 = vmatpush2.msra.mxu0 0.0
    %533 = vmatprep.subr.mxu0 0.0
    %534 = vmatpush2.msra.mxu0 0.0
    %535 = vmatprep.subr.mxu0 0.0
    %536 = vmatpush2.msra.mxu0 0.0
    %537 = vmatprep.subr.mxu0 0.0
    %538 = vmatpush2.msra.mxu0 0.0
    %539 = vmatprep.subr.mxu0 0.0
    %540 = vmatpush2.msra.mxu0 0.0
    %541 = vmatprep.subr.mxu0 0.0
    %542 = vmatpush2.msra.mxu0 0.0
    %543 = vmatprep.mubr.f32.mxu0 0.0
    %544 = vmatmul.mubr.f32.gmra.mxu0 %v477
    %v545 = vpop.f32.mrf.mxu0
    %v546 = vadd.f32 0.0, %v545
    %v547 = vpop.f32.mrf.mxu0
    %v548 = vadd.f32 0.0, %v547
    %549 = vdwg.mxu0
    %v552 = vrot.slane %v546, 6
    %v553 = vrot.slane %v548, 6
    %v556 = vadd.f32 %v475, %v552
    %v557 = vadd.f32 %v476, %v553
    %v558 = vmul.f32 %v556, 0.5
    %v559 = vmul.f32 %v557, 0.5
    %v560 = vtanh.pop %v558
    %v561 = vtanh.pop %v559
    %v562 = vmul.f32 %v560, 0.5
    %v563 = vmul.f32 %v561, 0.5
    %v564 = vadd.f32 %v562, 0.5
    %v565 = vadd.f32 %v563, 0.5
    %v566 = vtanh.pop %v557
    %v568 = vrot.slane %v451, 6
    %v570 = vmul.f32 %v564, %v568
    %572 = vrot.lane.b32.xlu0 %v566, 64
    %v573 = vpop.permute.xlu0 %572
    %v575 = vmul.f32 %v564, %v573
    %577 = vrot.lane.b32.xlu0 %v575, 64
    %v578 = vpop.permute.xlu0 %577
    %v580 = vadd.f32 %v570, %v578
    %v581 = vtanh.pop %v580
    %583 = vrot.lane.b32.xlu0 %v581, 64
    %v584 = vpop.permute.xlu0 %583
    %v586 = vmul.f32 %v565, %v584
    %vm587 = vcmask 257026
    %588 = vst.msk [vmem:[#allocation3] sm:$0xc] %vm587, %v586
    %590 = vrot.lane.b32.xlu0 %v586, 96
    %v591 = vpop.permute.xlu0 %590
    %593 = vst.msk [vmem:[#allocation4 + $0xa] sm:$0xc] %vm587, %v591
    %v594 = vld [vmem:[#allocation2] sm:$0x30]
    %v595 = vld [vmem:[#allocation2 + $0x8] sm:$0x30]
    %v596 = vld [vmem:[#allocation2 + $0x10] sm:$0xc]
    %v597 = vld [vmem:[#allocation2 + $0x18] sm:$0xc]
    %v600 = vrot.slane %v596, 6
    %v601 = vrot.slane %v597, 6
    %v604 = vsel %vm346, %v594, %v600
    %v605 = vsel %vm347, %v595, %v601
    %v606 = vrot.slane %v586, 2
    %v607 = vsel %vm210, %v606, 0
    %609 = vmatprep.subr.mxu0 0.0
    %610 = vmatpush1.msra.mxu0 0.0
    %611 = vmatprep.subr.mxu0 0.0
    %612 = vmatpush1.msra.mxu0 0.0
    %613 = vmatprep.subr.mxu0 0.0
    %614 = vmatpush1.msra.mxu0 0.0
    %615 = vmatprep.subr.mxu0 0.0
    %616 = vmatpush1.msra.mxu0 0.0
    %617 = vmatprep.subr.mxu0 0.0
    %618 = vmatpush1.msra.mxu0 0.0
    %619 = vmatprep.subr.mxu0 0.0
    %620 = vmatpush1.msra.mxu0 0.0
    %621 = vmatprep.subr.mxu0 0.0
    %622 = vmatpush1.msra.mxu0 0.0
    %623 = vmatprep.subr.mxu0 0.0
    %624 = vmatpush1.msra.mxu0 0.0
    %625 = vmatprep.subr.mxu0 %v313
    %626 = vmatpush1.msra.mxu0 %v312
    %627 = vmatprep.subr.mxu0 %v311
    %628 = vmatpush1.msra.mxu0 %v310
    %629 = vmatprep.subr.mxu0 %v309
    %630 = vmatpush1.msra.mxu0 %v308
    %631 = vmatprep.subr.mxu0 %v307
    %632 = vmatpush1.msra.mxu0 %v306
    %633 = vmatprep.subr.mxu0 %v305
    %634 = vmatpush1.msra.mxu0 %v304
    %635 = vmatprep.subr.mxu0 %v303
    %636 = vmatpush1.msra.mxu0 %v302
    %637 = vmatprep.subr.mxu0 %v301
    %638 = vmatpush1.msra.mxu0 %v300
    %639 = vmatprep.subr.mxu0 %v299
    %640 = vmatpush1.msra.mxu0 %v298
    %641 = vmatprep.subr.mxu0 0.0
    %642 = vmatpush2.msra.mxu0 0.0
    %643 = vmatprep.subr.mxu0 0.0
    %644 = vmatpush2.msra.mxu0 0.0
    %645 = vmatprep.subr.mxu0 0.0
    %646 = vmatpush2.msra.mxu0 0.0
    %647 = vmatprep.subr.mxu0 0.0
    %648 = vmatpush2.msra.mxu0 0.0
    %649 = vmatprep.subr.mxu0 0.0
    %650 = vmatpush2.msra.mxu0 0.0
    %651 = vmatprep.subr.mxu0 0.0
    %652 = vmatpush2.msra.mxu0 0.0
    %653 = vmatprep.subr.mxu0 0.0
    %654 = vmatpush2.msra.mxu0 0.0
    %655 = vmatprep.subr.mxu0 0.0
    %656 = vmatpush2.msra.mxu0 0.0
    %657 = vmatprep.subr.mxu0 0.0
    %658 = vmatpush2.msra.mxu0 0.0
    %659 = vmatprep.subr.mxu0 0.0
    %660 = vmatpush2.msra.mxu0 0.0
    %661 = vmatprep.subr.mxu0 0.0
    %662 = vmatpush2.msra.mxu0 0.0
    %663 = vmatprep.subr.mxu0 0.0
    %664 = vmatpush2.msra.mxu0 0.0
    %665 = vmatprep.subr.mxu0 0.0
    %666 = vmatpush2.msra.mxu0 0.0
    %667 = vmatprep.subr.mxu0 0.0
    %668 = vmatpush2.msra.mxu0 0.0
    %669 = vmatprep.subr.mxu0 0.0
    %670 = vmatpush2.msra.mxu0 0.0
    %671 = vmatprep.subr.mxu0 0.0
    %672 = vmatpush2.msra.mxu0 0.0
    %673 = vmatprep.mubr.f32.mxu0 0.0
    %674 = vmatmul.mubr.f32.gmra.mxu0 %v607
    %v675 = vpop.f32.mrf.mxu0
    %v676 = vadd.f32 0.0, %v675
    %v677 = vpop.f32.mrf.mxu0
    %v678 = vadd.f32 0.0, %v677
    %679 = vdwg.mxu0
    %v682 = vrot.slane %v676, 4
    %v683 = vrot.slane %v678, 4
    %v686 = vadd.f32 %v604, %v682
    %v687 = vadd.f32 %v605, %v683
    %v688 = vmul.f32 %v686, 0.5
    %v689 = vmul.f32 %v687, 0.5
    %v690 = vtanh.pop %v688
    %v691 = vtanh.pop %v689
    %v692 = vmul.f32 %v690, 0.5
    %v693 = vmul.f32 %v691, 0.5
    %v694 = vadd.f32 %v692, 0.5
    %v695 = vadd.f32 %v693, 0.5
    %v696 = vtanh.pop %v687
    %v698 = vrot.slane %v580, 6
    %v700 = vmul.f32 %v694, %v698
    %702 = vrot.lane.b32.xlu0 %v696, 64
    %v703 = vpop.permute.xlu0 %702
    %v705 = vmul.f32 %v694, %v703
    %707 = vrot.lane.b32.xlu0 %v705, 64
    %v708 = vpop.permute.xlu0 %707
    %v710 = vadd.f32 %v700, %v708
    %v711 = vtanh.pop %v710
    %713 = vrot.lane.b32.xlu0 %v711, 64
    %v714 = vpop.permute.xlu0 %713
    %v716 = vmul.f32 %v695, %v714
    %vm717 = vcmask 259076
    %718 = vst.msk [vmem:[#allocation3] sm:$0x30] %vm717, %v716
    %720 = vrot.lane.b32.xlu0 %v716, 96
    %v721 = vpop.permute.xlu0 %720
    %723 = vst.msk [vmem:[#allocation4 + $0x6] sm:$0x30] %vm717, %v721
    %v724 = vld [vmem:[#allocation2] sm:$0xc0]
    %v725 = vld [vmem:[#allocation2 + $0x8] sm:$0xc0]
    %v726 = vld [vmem:[#allocation2 + $0x10] sm:$0x3]
    %v727 = vld [vmem:[#allocation2 + $0x18] sm:$0x3]
    %v730 = vrot.slane %v726, 2
    %v731 = vrot.slane %v727, 2
    %v734 = vsel %vm346, %v724, %v730
    %v735 = vsel %vm347, %v725, %v731
    %v736 = vrot.slane %v716, 4
    %v737 = vsel %vm210, %v736, 0
    %739 = vmatprep.subr.mxu0 0.0
    %740 = vmatpush1.msra.mxu0 0.0
    %741 = vmatprep.subr.mxu0 0.0
    %742 = vmatpush1.msra.mxu0 0.0
    %743 = vmatprep.subr.mxu0 0.0
    %744 = vmatpush1.msra.mxu0 0.0
    %745 = vmatprep.subr.mxu0 0.0
    %746 = vmatpush1.msra.mxu0 0.0
    %747 = vmatprep.subr.mxu0 0.0
    %748 = vmatpush1.msra.mxu0 0.0
    %749 = vmatprep.subr.mxu0 0.0
    %750 = vmatpush1.msra.mxu0 0.0
    %751 = vmatprep.subr.mxu0 0.0
    %752 = vmatpush1.msra.mxu0 0.0
    %753 = vmatprep.subr.mxu0 0.0
    %754 = vmatpush1.msra.mxu0 0.0
    %755 = vmatprep.subr.mxu0 %v313
    %756 = vmatpush1.msra.mxu0 %v312
    %757 = vmatprep.subr.mxu0 %v311
    %758 = vmatpush1.msra.mxu0 %v310
    %759 = vmatprep.subr.mxu0 %v309
    %760 = vmatpush1.msra.mxu0 %v308
    %761 = vmatprep.subr.mxu0 %v307
    %762 = vmatpush1.msra.mxu0 %v306
    %763 = vmatprep.subr.mxu0 %v305
    %764 = vmatpush1.msra.mxu0 %v304
    %765 = vmatprep.subr.mxu0 %v303
    %766 = vmatpush1.msra.mxu0 %v302
    %767 = vmatprep.subr.mxu0 %v301
    %768 = vmatpush1.msra.mxu0 %v300
    %769 = vmatprep.subr.mxu0 %v299
    %770 = vmatpush1.msra.mxu0 %v298
    %771 = vmatprep.subr.mxu0 0.0
    %772 = vmatpush2.msra.mxu0 0.0
    %773 = vmatprep.subr.mxu0 0.0
    %774 = vmatpush2.msra.mxu0 0.0
    %775 = vmatprep.subr.mxu0 0.0
    %776 = vmatpush2.msra.mxu0 0.0
    %777 = vmatprep.subr.mxu0 0.0
    %778 = vmatpush2.msra.mxu0 0.0
    %779 = vmatprep.subr.mxu0 0.0
    %780 = vmatpush2.msra.mxu0 0.0
    %781 = vmatprep.subr.mxu0 0.0
    %782 = vmatpush2.msra.mxu0 0.0
    %783 = vmatprep.subr.mxu0 0.0
    %784 = vmatpush2.msra.mxu0 0.0
    %785 = vmatprep.subr.mxu0 0.0
    %786 = vmatpush2.msra.mxu0 0.0
    %787 = vmatprep.subr.mxu0 0.0
    %788 = vmatpush2.msra.mxu0 0.0
    %789 = vmatprep.subr.mxu0 0.0
    %790 = vmatpush2.msra.mxu0 0.0
    %791 = vmatprep.subr.mxu0 0.0
    %792 = vmatpush2.msra.mxu0 0.0
    %793 = vmatprep.subr.mxu0 0.0
    %794 = vmatpush2.msra.mxu0 0.0
    %795 = vmatprep.subr.mxu0 0.0
    %796 = vmatpush2.msra.mxu0 0.0
    %797 = vmatprep.subr.mxu0 0.0
    %798 = vmatpush2.msra.mxu0 0.0
    %799 = vmatprep.subr.mxu0 0.0
    %800 = vmatpush2.msra.mxu0 0.0
    %801 = vmatprep.subr.mxu0 0.0
    %802 = vmatpush2.msra.mxu0 0.0
    %803 = vmatprep.mubr.f32.mxu0 0.0
    %804 = vmatmul.mubr.f32.gmra.mxu0 %v737
    %v805 = vpop.f32.mrf.mxu0
    %v806 = vadd.f32 0.0, %v805
    %v807 = vpop.f32.mrf.mxu0
    %v808 = vadd.f32 0.0, %v807
    %809 = vdwg.mxu0
    %v812 = vrot.slane %v806, 2
    %v813 = vrot.slane %v808, 2
    %v816 = vadd.f32 %v734, %v812
    %v817 = vadd.f32 %v735, %v813
    %v818 = vmul.f32 %v816, 0.5
    %v819 = vmul.f32 %v817, 0.5
    %v820 = vtanh.pop %v818
    %v821 = vtanh.pop %v819
    %v822 = vmul.f32 %v820, 0.5
    %v823 = vmul.f32 %v821, 0.5
    %v824 = vadd.f32 %v822, 0.5
    %v825 = vadd.f32 %v823, 0.5
    %v826 = vtanh.pop %v817
    %v828 = vrot.slane %v710, 6
    %v830 = vmul.f32 %v824, %v828
    %832 = vrot.lane.b32.xlu0 %v826, 64
    %v833 = vpop.permute.xlu0 %832
    %v835 = vmul.f32 %v824, %v833
    %837 = vrot.lane.b32.xlu0 %v835, 64
    %v838 = vpop.permute.xlu0 %837
    %v840 = vadd.f32 %v830, %v838
    %v841 = vtanh.pop %v840
    %843 = vrot.lane.b32.xlu0 %v841, 64
    %v844 = vpop.permute.xlu0 %843
    %v846 = vmul.f32 %v825, %v844
    %vm847 = vcmask 261126
    %848 = vst.msk [vmem:[#allocation3] sm:$0xc0] %vm847, %v846
    %850 = vrot.lane.b32.xlu0 %v846, 96
    %v851 = vpop.permute.xlu0 %850
    %853 = vst.msk [vmem:[#allocation4 + $0x2] sm:$0xc0] %vm847, %v851
    %v854 = vld [vmem:[#allocation2 + $0x10] sm:$0x3]
    %v855 = vld [vmem:[#allocation2 + $0x18] sm:$0x3]
    %v856 = vld [vmem:[#allocation2] sm:$0xc0]
    %v857 = vld [vmem:[#allocation2 + $0x8] sm:$0xc0]
    %v860 = vrot.slane %v856, 6
    %v861 = vrot.slane %v857, 6
    %v864 = vsel %vm346, %v854, %v860
    %v865 = vsel %vm347, %v855, %v861
    %v866 = vrot.slane %v846, 6
    %v867 = vsel %vm210, %v866, 0
    %869 = vmatprep.subr.mxu0 0.0
    %870 = vmatpush1.msra.mxu0 0.0
    %871 = vmatprep.subr.mxu0 0.0
    %872 = vmatpush1.msra.mxu0 0.0
    %873 = vmatprep.subr.mxu0 0.0
    %874 = vmatpush1.msra.mxu0 0.0
    %875 = vmatprep.subr.mxu0 0.0
    %876 = vmatpush1.msra.mxu0 0.0
    %877 = vmatprep.subr.mxu0 0.0
    %878 = vmatpush1.msra.mxu0 0.0
    %879 = vmatprep.subr.mxu0 0.0
    %880 = vmatpush1.msra.mxu0 0.0
    %881 = vmatprep.subr.mxu0 0.0
    %882 = vmatpush1.msra.mxu0 0.0
    %883 = vmatprep.subr.mxu0 0.0
    %884 = vmatpush1.msra.mxu0 0.0
    %885 = vmatprep.subr.mxu0 %v313
    %886 = vmatpush1.msra.mxu0 %v312
    %887 = vmatprep.subr.mxu0 %v311
    %888 = vmatpush1.msra.mxu0 %v310
    %889 = vmatprep.subr.mxu0 %v309
    %890 = vmatpush1.msra.mxu0 %v308
    %891 = vmatprep.subr.mxu0 %v307
    %892 = vmatpush1.msra.mxu0 %v306
    %893 = vmatprep.subr.mxu0 %v305
    %894 = vmatpush1.msra.mxu0 %v304
    %895 = vmatprep.subr.mxu0 %v303
    %896 = vmatpush1.msra.mxu0 %v302
    %897 = vmatprep.subr.mxu0 %v301
    %898 = vmatpush1.msra.mxu0 %v300
    %899 = vmatprep.subr.mxu0 %v299
    %900 = vmatpush1.msra.mxu0 %v298
    %901 = vmatprep.subr.mxu0 0.0
    %902 = vmatpush2.msra.mxu0 0.0
    %903 = vmatprep.subr.mxu0 0.0
    %904 = vmatpush2.msra.mxu0 0.0
    %905 = vmatprep.subr.mxu0 0.0
    %906 = vmatpush2.msra.mxu0 0.0
    %907 = vmatprep.subr.mxu0 0.0
    %908 = vmatpush2.msra.mxu0 0.0
    %909 = vmatprep.subr.mxu0 0.0
    %910 = vmatpush2.msra.mxu0 0.0
    %911 = vmatprep.subr.mxu0 0.0
    %912 = vmatpush2.msra.mxu0 0.0
    %913 = vmatprep.subr.mxu0 0.0
    %914 = vmatpush2.msra.mxu0 0.0
    %915 = vmatprep.subr.mxu0 0.0
    %916 = vmatpush2.msra.mxu0 0.0
    %917 = vmatprep.subr.mxu0 0.0
    %918 = vmatpush2.msra.mxu0 0.0
    %919 = vmatprep.subr.mxu0 0.0
    %920 = vmatpush2.msra.mxu0 0.0
    %921 = vmatprep.subr.mxu0 0.0
    %922 = vmatpush2.msra.mxu0 0.0
    %923 = vmatprep.subr.mxu0 0.0
    %924 = vmatpush2.msra.mxu0 0.0
    %925 = vmatprep.subr.mxu0 0.0
    %926 = vmatpush2.msra.mxu0 0.0
    %927 = vmatprep.subr.mxu0 0.0
    %928 = vmatpush2.msra.mxu0 0.0
    %929 = vmatprep.subr.mxu0 0.0
    %930 = vmatpush2.msra.mxu0 0.0
    %931 = vmatprep.subr.mxu0 0.0
    %932 = vmatpush2.msra.mxu0 0.0
    %933 = vmatprep.mubr.f32.mxu0 0.0
    %934 = vmatmul.mubr.f32.gmra.mxu0 %v867
    %v935 = vpop.f32.mrf.mxu0
    %v936 = vadd.f32 0.0, %v935
    %v937 = vpop.f32.mrf.mxu0
    %v938 = vadd.f32 0.0, %v937
    %939 = vdwg.mxu0
    %v940 = vadd.f32 %v864, %v936
    %v941 = vadd.f32 %v865, %v938
    %v942 = vmul.f32 %v940, 0.5
    %v943 = vmul.f32 %v941, 0.5
    %v944 = vtanh.pop %v942
    %v945 = vtanh.pop %v943
    %v946 = vmul.f32 %v944, 0.5
    %v947 = vmul.f32 %v945, 0.5
    %v948 = vadd.f32 %v946, 0.5
    %v949 = vadd.f32 %v947, 0.5
    %v950 = vtanh.pop %v941
    %v952 = vrot.slane %v840, 6
    %v954 = vmul.f32 %v948, %v952
    %956 = vrot.lane.b32.xlu0 %v950, 64
    %v957 = vpop.permute.xlu0 %956
    %v959 = vmul.f32 %v948, %v957
    %961 = vrot.lane.b32.xlu0 %v959, 64
    %v962 = vpop.permute.xlu0 %961
    %v964 = vadd.f32 %v954, %v962
    %v965 = vtanh.pop %v964
    %967 = vrot.lane.b32.xlu0 %v965, 64
    %v968 = vpop.permute.xlu0 %967
    %v970 = vmul.f32 %v949, %v968
    %971 = vst.msk [vmem:[#allocation3 + $0x8] sm:$0x3] %vm458, %v970
    %973 = vrot.lane.b32.xlu0 %v970, 96
    %v974 = vpop.permute.xlu0 %973
    %976 = vst.msk [vmem:[#allocation4 + $0x6] sm:$0x3] %vm458, %v974
    %v977 = vld [vmem:[#allocation2 + $0x10] sm:$0xc]
    %v978 = vld [vmem:[#allocation2 + $0x18] sm:$0xc]
    %v979 = vld [vmem:[#allocation2] sm:$0x30]
    %v980 = vld [vmem:[#allocation2 + $0x8] sm:$0x30]
    %v983 = vrot.slane %v979, 2
    %v984 = vrot.slane %v980, 2
    %v987 = vsel %vm346, %v977, %v983
    %v988 = vsel %vm347, %v978, %v984
    %v989 = vsel %vm210, %v970, 0
    %991 = vmatprep.subr.mxu0 0.0
    %992 = vmatpush1.msra.mxu0 0.0
    %993 = vmatprep.subr.mxu0 0.0
    %994 = vmatpush1.msra.mxu0 0.0
    %995 = vmatprep.subr.mxu0 0.0
    %996 = vmatpush1.msra.mxu0 0.0
    %997 = vmatprep.subr.mxu0 0.0
    %998 = vmatpush1.msra.mxu0 0.0
    %999 = vmatprep.subr.mxu0 0.0
    %1000 = vmatpush1.msra.mxu0 0.0
    %1001 = vmatprep.subr.mxu0 0.0
    %1002 = vmatpush1.msra.mxu0 0.0
    %1003 = vmatprep.subr.mxu0 0.0
    %1004 = vmatpush1.msra.mxu0 0.0
    %1005 = vmatprep.subr.mxu0 0.0
    %1006 = vmatpush1.msra.mxu0 0.0
    %1007 = vmatprep.subr.mxu0 %v313
    %1008 = vmatpush1.msra.mxu0 %v312
    %1009 = vmatprep.subr.mxu0 %v311
    %1010 = vmatpush1.msra.mxu0 %v310
    %1011 = vmatprep.subr.mxu0 %v309
    %1012 = vmatpush1.msra.mxu0 %v308
    %1013 = vmatprep.subr.mxu0 %v307
    %1014 = vmatpush1.msra.mxu0 %v306
    %1015 = vmatprep.subr.mxu0 %v305
    %1016 = vmatpush1.msra.mxu0 %v304
    %1017 = vmatprep.subr.mxu0 %v303
    %1018 = vmatpush1.msra.mxu0 %v302
    %1019 = vmatprep.subr.mxu0 %v301
    %1020 = vmatpush1.msra.mxu0 %v300
    %1021 = vmatprep.subr.mxu0 %v299
    %1022 = vmatpush1.msra.mxu0 %v298
    %1023 = vmatprep.subr.mxu0 0.0
    %1024 = vmatpush2.msra.mxu0 0.0
    %1025 = vmatprep.subr.mxu0 0.0
    %1026 = vmatpush2.msra.mxu0 0.0
    %1027 = vmatprep.subr.mxu0 0.0
    %1028 = vmatpush2.msra.mxu0 0.0
    %1029 = vmatprep.subr.mxu0 0.0
    %1030 = vmatpush2.msra.mxu0 0.0
    %1031 = vmatprep.subr.mxu0 0.0
    %1032 = vmatpush2.msra.mxu0 0.0
    %1033 = vmatprep.subr.mxu0 0.0
    %1034 = vmatpush2.msra.mxu0 0.0
    %1035 = vmatprep.subr.mxu0 0.0
    %1036 = vmatpush2.msra.mxu0 0.0
    %1037 = vmatprep.subr.mxu0 0.0
    %1038 = vmatpush2.msra.mxu0 0.0
    %1039 = vmatprep.subr.mxu0 0.0
    %1040 = vmatpush2.msra.mxu0 0.0
    %1041 = vmatprep.subr.mxu0 0.0
    %1042 = vmatpush2.msra.mxu0 0.0
    %1043 = vmatprep.subr.mxu0 0.0
    %1044 = vmatpush2.msra.mxu0 0.0
    %1045 = vmatprep.subr.mxu0 0.0
    %1046 = vmatpush2.msra.mxu0 0.0
    %1047 = vmatprep.subr.mxu0 0.0
    %1048 = vmatpush2.msra.mxu0 0.0
    %1049 = vmatprep.subr.mxu0 0.0
    %1050 = vmatpush2.msra.mxu0 0.0
    %1051 = vmatprep.subr.mxu0 0.0
    %1052 = vmatpush2.msra.mxu0 0.0
    %1053 = vmatprep.subr.mxu0 0.0
    %1054 = vmatpush2.msra.mxu0 0.0
    %1055 = vmatprep.mubr.f32.mxu0 0.0
    %1056 = vmatmul.mubr.f32.gmra.mxu0 %v989
    %v1057 = vpop.f32.mrf.mxu0
    %v1058 = vadd.f32 0.0, %v1057
    %v1059 = vpop.f32.mrf.mxu0
    %v1060 = vadd.f32 0.0, %v1059
    %1061 = vdwg.mxu0
    %v1064 = vrot.slane %v1058, 6
    %v1065 = vrot.slane %v1060, 6
    %v1068 = vadd.f32 %v987, %v1064
    %v1069 = vadd.f32 %v988, %v1065
    %v1070 = vmul.f32 %v1068, 0.5
    %v1071 = vmul.f32 %v1069, 0.5
    %v1072 = vtanh.pop %v1070
    %v1073 = vtanh.pop %v1071
    %v1074 = vmul.f32 %v1072, 0.5
    %v1075 = vmul.f32 %v1073, 0.5
    %v1076 = vadd.f32 %v1074, 0.5
    %v1077 = vadd.f32 %v1075, 0.5
    %v1078 = vtanh.pop %v1069
    %v1080 = vrot.slane %v964, 6
    %v1082 = vmul.f32 %v1076, %v1080
    %1084 = vrot.lane.b32.xlu0 %v1078, 64
    %v1085 = vpop.permute.xlu0 %1084
    %v1087 = vmul.f32 %v1076, %v1085
    %1089 = vrot.lane.b32.xlu0 %v1087, 64
    %v1090 = vpop.permute.xlu0 %1089
    %v1092 = vadd.f32 %v1082, %v1090
    %v1093 = vtanh.pop %v1092
    %1095 = vrot.lane.b32.xlu0 %v1093, 64
    %v1096 = vpop.permute.xlu0 %1095
    %v1098 = vmul.f32 %v1077, %v1096
    %1099 = vst.msk [vmem:[#allocation3 + $0x8] sm:$0xc] %vm587, %v1098
    %1101 = vrot.lane.b32.xlu0 %v1098, 96
    %v1102 = vpop.permute.xlu0 %1101
    %1104 = vst.msk [vmem:[#allocation4 + $0x2] sm:$0xc] %vm587, %v1102
    %v1105 = vld [vmem:[#allocation2 + $0x10] sm:$0x30]
    %v1106 = vld [vmem:[#allocation2 + $0x18] sm:$0x30]
    %v1107 = vld [vmem:[#allocation2] sm:$0xc]
    %v1108 = vld [vmem:[#allocation2 + $0x8] sm:$0xc]
    %v1111 = vrot.slane %v1107, 6
    %v1112 = vrot.slane %v1108, 6
    %v1115 = vsel %vm346, %v1105, %v1111
    %v1116 = vsel %vm347, %v1106, %v1112
    %v1117 = vrot.slane %v1098, 2
    %v1118 = vsel %vm210, %v1117, 0
    %1120 = vmatprep.subr.mxu0 0.0
    %1121 = vmatpush1.msra.mxu0 0.0
    %1122 = vmatprep.subr.mxu0 0.0
    %1123 = vmatpush1.msra.mxu0 0.0
    %1124 = vmatprep.subr.mxu0 0.0
    %1125 = vmatpush1.msra.mxu0 0.0
    %1126 = vmatprep.subr.mxu0 0.0
    %1127 = vmatpush1.msra.mxu0 0.0
    %1128 = vmatprep.subr.mxu0 0.0
    %1129 = vmatpush1.msra.mxu0 0.0
    %1130 = vmatprep.subr.mxu0 0.0
    %1131 = vmatpush1.msra.mxu0 0.0
    %1132 = vmatprep.subr.mxu0 0.0
    %1133 = vmatpush1.msra.mxu0 0.0
    %1134 = vmatprep.subr.mxu0 0.0
    %1135 = vmatpush1.msra.mxu0 0.0
    %1136 = vmatprep.subr.mxu0 %v313
    %1137 = vmatpush1.msra.mxu0 %v312
    %1138 = vmatprep.subr.mxu0 %v311
    %1139 = vmatpush1.msra.mxu0 %v310
    %1140 = vmatprep.subr.mxu0 %v309
    %1141 = vmatpush1.msra.mxu0 %v308
    %1142 = vmatprep.subr.mxu0 %v307
    %1143 = vmatpush1.msra.mxu0 %v306
    %1144 = vmatprep.subr.mxu0 %v305
    %1145 = vmatpush1.msra.mxu0 %v304
    %1146 = vmatprep.subr.mxu0 %v303
    %1147 = vmatpush1.msra.mxu0 %v302
    %1148 = vmatprep.subr.mxu0 %v301
    %1149 = vmatpush1.msra.mxu0 %v300
    %1150 = vmatprep.subr.mxu0 %v299
    %1151 = vmatpush1.msra.mxu0 %v298
    %1152 = vmatprep.subr.mxu0 0.0
    %1153 = vmatpush2.msra.mxu0 0.0
    %1154 = vmatprep.subr.mxu0 0.0
    %1155 = vmatpush2.msra.mxu0 0.0
    %1156 = vmatprep.subr.mxu0 0.0
    %1157 = vmatpush2.msra.mxu0 0.0
    %1158 = vmatprep.subr.mxu0 0.0
    %1159 = vmatpush2.msra.mxu0 0.0
    %1160 = vmatprep.subr.mxu0 0.0
    %1161 = vmatpush2.msra.mxu0 0.0
    %1162 = vmatprep.subr.mxu0 0.0
    %1163 = vmatpush2.msra.mxu0 0.0
    %1164 = vmatprep.subr.mxu0 0.0
    %1165 = vmatpush2.msra.mxu0 0.0
    %1166 = vmatprep.subr.mxu0 0.0
    %1167 = vmatpush2.msra.mxu0 0.0
    %1168 = vmatprep.subr.mxu0 0.0
    %1169 = vmatpush2.msra.mxu0 0.0
    %1170 = vmatprep.subr.mxu0 0.0
    %1171 = vmatpush2.msra.mxu0 0.0
    %1172 = vmatprep.subr.mxu0 0.0
    %1173 = vmatpush2.msra.mxu0 0.0
    %1174 = vmatprep.subr.mxu0 0.0
    %1175 = vmatpush2.msra.mxu0 0.0
    %1176 = vmatprep.subr.mxu0 0.0
    %1177 = vmatpush2.msra.mxu0 0.0
    %1178 = vmatprep.subr.mxu0 0.0
    %1179 = vmatpush2.msra.mxu0 0.0
    %1180 = vmatprep.subr.mxu0 0.0
    %1181 = vmatpush2.msra.mxu0 0.0
    %1182 = vmatprep.subr.mxu0 0.0
    %1183 = vmatpush2.msra.mxu0 0.0
    %1184 = vmatprep.mubr.f32.mxu0 0.0
    %1185 = vmatmul.mubr.f32.gmra.mxu0 %v1118
    %v1186 = vpop.f32.mrf.mxu0
    %v1187 = vadd.f32 0.0, %v1186
    %v1188 = vpop.f32.mrf.mxu0
    %v1189 = vadd.f32 0.0, %v1188
    %1190 = vdwg.mxu0
    %v1193 = vrot.slane %v1187, 4
    %v1194 = vrot.slane %v1189, 4
    %v1197 = vadd.f32 %v1115, %v1193
    %v1198 = vadd.f32 %v1116, %v1194
    %v1199 = vmul.f32 %v1197, 0.5
    %v1200 = vmul.f32 %v1198, 0.5
    %v1201 = vtanh.pop %v1199
    %v1202 = vtanh.pop %v1200
    %v1203 = vmul.f32 %v1201, 0.5
    %v1204 = vmul.f32 %v1202, 0.5
    %v1205 = vadd.f32 %v1203, 0.5
    %v1206 = vadd.f32 %v1204, 0.5
    %v1207 = vtanh.pop %v1198
    %v1209 = vrot.slane %v1092, 6
    %v1211 = vmul.f32 %v1205, %v1209
    %1213 = vrot.lane.b32.xlu0 %v1207, 64
    %v1214 = vpop.permute.xlu0 %1213
    %v1216 = vmul.f32 %v1205, %v1214
    %1218 = vrot.lane.b32.xlu0 %v1216, 64
    %v1219 = vpop.permute.xlu0 %1218
    %v1221 = vadd.f32 %v1211, %v1219
    %v1222 = vtanh.pop %v1221
    %1224 = vrot.lane.b32.xlu0 %v1222, 64
    %v1225 = vpop.permute.xlu0 %1224
    %v1227 = vmul.f32 %v1206, %v1225
    %1228 = vst.msk [vmem:[#allocation3 + $0x8] sm:$0x30] %vm717, %v1227
    %1230 = vrot.lane.b32.xlu0 %v1227, 96
    %v1231 = vpop.permute.xlu0 %1230
    %1233 = vst.msk [vmem:[#allocation4 - $0x2] sm:$0x30] %vm717, %v1231
    %v1234 = vld [vmem:[#allocation2 + $0x10] sm:$0xc0]
    %v1235 = vld [vmem:[#allocation2 + $0x18] sm:$0xc0]
    %v1236 = vld [vmem:[#allocation2] sm:$0x3]
    %v1237 = vld [vmem:[#allocation2 + $0x8] sm:$0x3]
    %v1240 = vrot.slane %v1236, 2
    %v1241 = vrot.slane %v1237, 2
    %v1244 = vsel %vm346, %v1234, %v1240
    %v1245 = vsel %vm347, %v1235, %v1241
    %v1246 = vrot.slane %v1227, 4
    %v1247 = vsel %vm210, %v1246, 0
    %1249 = vmatprep.subr.mxu0 0.0
    %1250 = vmatpush1.msra.mxu0 0.0
    %1251 = vmatprep.subr.mxu0 0.0
    %1252 = vmatpush1.msra.mxu0 0.0
    %1253 = vmatprep.subr.mxu0 0.0
    %1254 = vmatpush1.msra.mxu0 0.0
    %1255 = vmatprep.subr.mxu0 0.0
    %1256 = vmatpush1.msra.mxu0 0.0
    %1257 = vmatprep.subr.mxu0 0.0
    %1258 = vmatpush1.msra.mxu0 0.0
    %1259 = vmatprep.subr.mxu0 0.0
    %1260 = vmatpush1.msra.mxu0 0.0
    %1261 = vmatprep.subr.mxu0 0.0
    %1262 = vmatpush1.msra.mxu0 0.0
    %1263 = vmatprep.subr.mxu0 0.0
    %1264 = vmatpush1.msra.mxu0 0.0
    %1265 = vmatprep.subr.mxu0 %v313
    %1266 = vmatpush1.msra.mxu0 %v312
    %1267 = vmatprep.subr.mxu0 %v311
    %1268 = vmatpush1.msra.mxu0 %v310
    %1269 = vmatprep.subr.mxu0 %v309
    %1270 = vmatpush1.msra.mxu0 %v308
    %1271 = vmatprep.subr.mxu0 %v307
    %1272 = vmatpush1.msra.mxu0 %v306
    %1273 = vmatprep.subr.mxu0 %v305
    %1274 = vmatpush1.msra.mxu0 %v304
    %1275 = vmatprep.subr.mxu0 %v303
    %1276 = vmatpush1.msra.mxu0 %v302
    %1277 = vmatprep.subr.mxu0 %v301
    %1278 = vmatpush1.msra.mxu0 %v300
    %1279 = vmatprep.subr.mxu0 %v299
    %1280 = vmatpush1.msra.mxu0 %v298
    %1281 = vmatprep.subr.mxu0 0.0
    %1282 = vmatpush2.msra.mxu0 0.0
    %1283 = vmatprep.subr.mxu0 0.0
    %1284 = vmatpush2.msra.mxu0 0.0
    %1285 = vmatprep.subr.mxu0 0.0
    %1286 = vmatpush2.msra.mxu0 0.0
    %1287 = vmatprep.subr.mxu0 0.0
    %1288 = vmatpush2.msra.mxu0 0.0
    %1289 = vmatprep.subr.mxu0 0.0
    %1290 = vmatpush2.msra.mxu0 0.0
    %1291 = vmatprep.subr.mxu0 0.0
    %1292 = vmatpush2.msra.mxu0 0.0
    %1293 = vmatprep.subr.mxu0 0.0
    %1294 = vmatpush2.msra.mxu0 0.0
    %1295 = vmatprep.subr.mxu0 0.0
    %1296 = vmatpush2.msra.mxu0 0.0
    %1297 = vmatprep.subr.mxu0 0.0
    %1298 = vmatpush2.msra.mxu0 0.0
    %1299 = vmatprep.subr.mxu0 0.0
    %1300 = vmatpush2.msra.mxu0 0.0
    %1301 = vmatprep.subr.mxu0 0.0
    %1302 = vmatpush2.msra.mxu0 0.0
    %1303 = vmatprep.subr.mxu0 0.0
    %1304 = vmatpush2.msra.mxu0 0.0
    %1305 = vmatprep.subr.mxu0 0.0
    %1306 = vmatpush2.msra.mxu0 0.0
    %1307 = vmatprep.subr.mxu0 0.0
    %1308 = vmatpush2.msra.mxu0 0.0
    %1309 = vmatprep.subr.mxu0 0.0
    %1310 = vmatpush2.msra.mxu0 0.0
    %1311 = vmatprep.subr.mxu0 0.0
    %1312 = vmatpush2.msra.mxu0 0.0
    %1313 = vmatprep.mubr.f32.mxu0 0.0
    %1314 = vmatmul.mubr.f32.gmra.mxu0 %v1247
    %v1315 = vpop.f32.mrf.mxu0
    %v1316 = vadd.f32 0.0, %v1315
    %v1317 = vpop.f32.mrf.mxu0
    %v1318 = vadd.f32 0.0, %v1317
    %1319 = vdwg.mxu0
    %v1322 = vrot.slane %v1316, 2
    %v1323 = vrot.slane %v1318, 2
    %v1326 = vadd.f32 %v1244, %v1322
    %v1327 = vadd.f32 %v1245, %v1323
    %v1328 = vmul.f32 %v1326, 0.5
    %v1329 = vmul.f32 %v1327, 0.5
    %v1330 = vtanh.pop %v1328
    %v1331 = vtanh.pop %v1329
    %v1332 = vmul.f32 %v1330, 0.5
    %v1333 = vmul.f32 %v1331, 0.5
    %v1334 = vadd.f32 %v1332, 0.5
    %v1335 = vadd.f32 %v1333, 0.5
    %v1336 = vtanh.pop %v1327
    %v1338 = vrot.slane %v1221, 6
    %v1340 = vmul.f32 %v1334, %v1338
    %1342 = vrot.lane.b32.xlu0 %v1336, 64
    %v1343 = vpop.permute.xlu0 %1342
    %v1345 = vmul.f32 %v1334, %v1343
    %1347 = vrot.lane.b32.xlu0 %v1345, 64
    %v1348 = vpop.permute.xlu0 %1347
    %v1350 = vadd.f32 %v1340, %v1348
    %v1351 = vtanh.pop %v1350
    %1353 = vrot.lane.b32.xlu0 %v1351, 64
    %v1354 = vpop.permute.xlu0 %1353
    %v1356 = vmul.f32 %v1335, %v1354
    %1357 = vst.msk [vmem:[#allocation3 + $0x8] sm:$0xc0] %vm847, %v1356
    %1359 = vrot.lane.b32.xlu0 %v1356, 96
    %v1360 = vpop.permute.xlu0 %1359
    %1362 = vst.msk [vmem:[#allocation4 - $0x6] sm:$0xc0] %vm847, %v1360
    %v1363 = vld [vmem:[#allocation3] sm:$0xff]
    %v1364 = vld [vmem:[#allocation3 + $0x8] sm:$0xff]
    %v1365 = vld [vmem:[#allocation4] sm:$0xff]
    %v1366 = vld [vmem:[#allocation4 + $0x8] sm:$0xff]
    %1369 = vrot.lane.b32.xlu0 %v1365, 32
    %v1370 = vpop.permute.xlu0 %1369
    %1371 = vrot.lane.b32.xlu0 %v1366, 32
    %v1372 = vpop.permute.xlu0 %1371
    %vm1375 = vcmask 261120
    %v1376 = vsel %vm1375, %v1363, %v1370
    %v1377 = vsel %vm1375, %v1364, %v1372
    %v1378 = vld [vmem:[%s5] sm:$0xff]
    %v1379 = vld [vmem:[%s5 + $0x8] sm:$0xff]
    %v1380 = vld [vmem:[%s5 + $0x10] sm:$0xff]
    %v1381 = vld [vmem:[%s5 + $0x18] sm:$0xff]
    %v1382 = vld [vmem:[%s5 + $0x20] sm:$0xff]
    %v1383 = vld [vmem:[%s5 + $0x28] sm:$0xff]
    %v1384 = vld [vmem:[%s5 + $0x30] sm:$0xff]
    %v1385 = vld [vmem:[%s5 + $0x38] sm:$0xff]
    %v1387 = vsel %vm210, %v1376, 0
    %v1390 = vsel %vm210, %v1377, 0
    %1392 = vmatprep.subr.mxu0 0.0
    %1393 = vmatpush1.msra.mxu0 0.0
    %1394 = vmatprep.subr.mxu0 0.0
    %1395 = vmatpush1.msra.mxu0 0.0
    %1396 = vmatprep.subr.mxu0 0.0
    %1397 = vmatpush1.msra.mxu0 0.0
    %1398 = vmatprep.subr.mxu0 0.0
    %1399 = vmatpush1.msra.mxu0 0.0
    %1400 = vmatprep.subr.mxu0 0.0
    %1401 = vmatpush1.msra.mxu0 0.0
    %1402 = vmatprep.subr.mxu0 0.0
    %1403 = vmatpush1.msra.mxu0 0.0
    %1404 = vmatprep.subr.mxu0 0.0
    %1405 = vmatpush1.msra.mxu0 0.0
    %1406 = vmatprep.subr.mxu0 0.0
    %1407 = vmatpush1.msra.mxu0 0.0
    %1408 = vmatprep.subr.mxu0 0.0
    %1409 = vmatpush1.msra.mxu0 %v1385
    %1410 = vmatprep.subr.mxu0 0.0
    %1411 = vmatpush1.msra.mxu0 %v1384
    %1412 = vmatprep.subr.mxu0 0.0
    %1413 = vmatpush1.msra.mxu0 %v1383
    %1414 = vmatprep.subr.mxu0 0.0
    %1415 = vmatpush1.msra.mxu0 %v1382
    %1416 = vmatprep.subr.mxu0 0.0
    %1417 = vmatpush1.msra.mxu0 %v1381
    %1418 = vmatprep.subr.mxu0 0.0
    %1419 = vmatpush1.msra.mxu0 %v1380
    %1420 = vmatprep.subr.mxu0 0.0
    %1421 = vmatpush1.msra.mxu0 %v1379
    %1422 = vmatprep.subr.mxu0 0.0
    %1423 = vmatpush1.msra.mxu0 %v1378
    %1424 = vmatprep.subr.mxu0 0.0
    %1425 = vmatpush2.msra.mxu0 0.0
    %1426 = vmatprep.subr.mxu0 0.0
    %1427 = vmatpush2.msra.mxu0 0.0
    %1428 = vmatprep.subr.mxu0 0.0
    %1429 = vmatpush2.msra.mxu0 0.0
    %1430 = vmatprep.subr.mxu0 0.0
    %1431 = vmatpush2.msra.mxu0 0.0
    %1432 = vmatprep.subr.mxu0 0.0
    %1433 = vmatpush2.msra.mxu0 0.0
    %1434 = vmatprep.subr.mxu0 0.0
    %1435 = vmatpush2.msra.mxu0 0.0
    %1436 = vmatprep.subr.mxu0 0.0
    %1437 = vmatpush2.msra.mxu0 0.0
    %1438 = vmatprep.subr.mxu0 0.0
    %1439 = vmatpush2.msra.mxu0 0.0
    %1440 = vmatprep.subr.mxu0 0.0
    %1441 = vmatpush2.msra.mxu0 0.0
    %1442 = vmatprep.subr.mxu0 0.0
    %1443 = vmatpush2.msra.mxu0 0.0
    %1444 = vmatprep.subr.mxu0 0.0
    %1445 = vmatpush2.msra.mxu0 0.0
    %1446 = vmatprep.subr.mxu0 0.0
    %1447 = vmatpush2.msra.mxu0 0.0
    %1448 = vmatprep.subr.mxu0 0.0
    %1449 = vmatpush2.msra.mxu0 0.0
    %1450 = vmatprep.subr.mxu0 0.0
    %1451 = vmatpush2.msra.mxu0 0.0
    %1452 = vmatprep.subr.mxu0 0.0
    %1453 = vmatpush2.msra.mxu0 0.0
    %1454 = vmatprep.subr.mxu0 0.0
    %1455 = vmatpush2.msra.mxu0 0.0
    %1456 = vmatprep.mubr.f32.mxu0 0.0
    %1457 = vmatmul.mubr.f32.gmra.mxu0 %v1387
    %v1458 = vpop.f32.mrf.mxu0
    %v1459 = vadd.f32 0.0, %v1458
    %v1460 = vpop.f32.mrf.mxu0
    %1461 = vmatprep.mubr.f32.mxu0 0.0
    %1462 = vmatmul.mubr.f32.gmra.mxu0 %v1390
    %v1463 = vpop.f32.mrf.mxu0
    %v1464 = vadd.f32 0.0, %v1463
    %v1465 = vpop.f32.mrf.mxu0
    %1466 = vdwg.mxu0
    %v1467 = vtanh.pop %v1459
    %v1468 = vtanh.pop %v1464
    %v1469 = vld [vmem:[%s6] sm:$0xff]
    %v1470 = vld [vmem:[%s6 + $0x8] sm:$0xff]
    %vm1471 = vcmask 130048
    %v1473 = vsel %vm1471, %v1467, 0
    %v1476 = vsel %vm1471, %v1468, 0
    %1478 = vmatprep.subr.mxu0 0.0
    %1479 = vmatpush1.msra.mxu0 0.0
    %1480 = vmatprep.subr.mxu0 0.0
    %1481 = vmatpush1.msra.mxu0 0.0
    %1482 = vmatprep.subr.mxu0 0.0
    %1483 = vmatpush1.msra.mxu0 0.0
    %1484 = vmatprep.subr.mxu0 0.0
    %1485 = vmatpush1.msra.mxu0 0.0
    %1486 = vmatprep.subr.mxu0 0.0
    %1487 = vmatpush1.msra.mxu0 0.0
    %1488 = vmatprep.subr.mxu0 0.0
    %1489 = vmatpush1.msra.mxu0 0.0
    %1490 = vmatprep.subr.mxu0 0.0
    %1491 = vmatpush1.msra.mxu0 0.0
    %1492 = vmatprep.subr.mxu0 0.0
    %1493 = vmatpush1.msra.mxu0 0.0
    %1494 = vmatprep.subr.mxu0 0.0
    %1495 = vmatpush1.msra.mxu0 0.0
    %1496 = vmatprep.subr.mxu0 0.0
    %1497 = vmatpush1.msra.mxu0 0.0
    %1498 = vmatprep.subr.mxu0 0.0
    %1499 = vmatpush1.msra.mxu0 0.0
    %1500 = vmatprep.subr.mxu0 0.0
    %1501 = vmatpush1.msra.mxu0 0.0
    %1502 = vmatprep.subr.mxu0 0.0
    %1503 = vmatpush1.msra.mxu0 0.0
    %1504 = vmatprep.subr.mxu0 0.0
    %1505 = vmatpush1.msra.mxu0 0.0
    %1506 = vmatprep.subr.mxu0 0.0
    %1507 = vmatpush1.msra.mxu0 %v1470
    %1508 = vmatprep.subr.mxu0 0.0
    %1509 = vmatpush1.msra.mxu0 %v1469
    %1510 = vmatprep.subr.mxu0 0.0
    %1511 = vmatpush2.msra.mxu0 0.0
    %1512 = vmatprep.subr.mxu0 0.0
    %1513 = vmatpush2.msra.mxu0 0.0
    %1514 = vmatprep.subr.mxu0 0.0
    %1515 = vmatpush2.msra.mxu0 0.0
    %1516 = vmatprep.subr.mxu0 0.0
    %1517 = vmatpush2.msra.mxu0 0.0
    %1518 = vmatprep.subr.mxu0 0.0
    %1519 = vmatpush2.msra.mxu0 0.0
    %1520 = vmatprep.subr.mxu0 0.0
    %1521 = vmatpush2.msra.mxu0 0.0
    %1522 = vmatprep.subr.mxu0 0.0
    %1523 = vmatpush2.msra.mxu0 0.0
    %1524 = vmatprep.subr.mxu0 0.0
    %1525 = vmatpush2.msra.mxu0 0.0
    %1526 = vmatprep.subr.mxu0 0.0
    %1527 = vmatpush2.msra.mxu0 0.0
    %1528 = vmatprep.subr.mxu0 0.0
    %1529 = vmatpush2.msra.mxu0 0.0
    %1530 = vmatprep.subr.mxu0 0.0
    %1531 = vmatpush2.msra.mxu0 0.0
    %1532 = vmatprep.subr.mxu0 0.0
    %1533 = vmatpush2.msra.mxu0 0.0
    %1534 = vmatprep.subr.mxu0 0.0
    %1535 = vmatpush2.msra.mxu0 0.0
    %1536 = vmatprep.subr.mxu0 0.0
    %1537 = vmatpush2.msra.mxu0 0.0
    %1538 = vmatprep.subr.mxu0 0.0
    %1539 = vmatpush2.msra.mxu0 0.0
    %1540 = vmatprep.subr.mxu0 0.0
    %1541 = vmatpush2.msra.mxu0 0.0
    %1542 = vmatprep.mubr.f32.mxu0 0.0
    %1543 = vmatmul.mubr.f32.gmra.mxu0 %v1473
    %v1544 = vpop.f32.mrf.mxu0
    %v1545 = vadd.f32 0.0, %v1544
    %v1546 = vpop.f32.mrf.mxu0
    %1547 = vmatprep.mubr.f32.mxu0 0.0
    %1548 = vmatmul.mubr.f32.gmra.mxu0 %v1476
    %v1549 = vpop.f32.mrf.mxu0
    %v1550 = vadd.f32 0.0, %v1549
    %v1551 = vpop.f32.mrf.mxu0
    %1552 = vdwg.mxu0
    %vm1553 = vcmask 64512
    %v1554 = vsel %vm1553, %v1545, -inf
    %v1555 = vsel %vm1553, %v1550, -inf
    %v1556 = vmax.f32 %v1554, %v1555
    %v1557 = vrot.slane %v1556, 4
    %v1558 = vmax.f32 %v1556, %v1557
    %v1559 = vrot.slane %v1558, 2
    %v1560 = vmax.f32 %v1558, %v1559
    %v1561 = vrot.slane %v1560, 1
    %v1562 = vmax.f32 %v1560, %v1561
    %v1563 = vsel %vm1553, %v1562, -inf
    %1564 = vmax.xlane.f32.xlu0 %v1563
    %v1565 = vpop.xlane.xlu0 %1564
    %v1566 = vsub.f32 %v1545, %v1565
    %v1567 = vsub.f32 %v1550, %v1565
    %v1568 = vmul.f32 %v1566, 1.442695
    %v1569 = vpow.pop %v1568
    %v1570 = vmul.f32 %v1567, 1.442695
    %v1571 = vpow.pop %v1570
    %vm1572 = vcmp.lt.s32.totalorder %v40, 0
    %v1573 = vsub.s32 0, %v40
    %v1574 = vsel %vm1572, %v1573, %v40
    %v1575 = vshrl.u32 %v1574, 1
    %v1576 = vand.u32 %v1574, 1
    %v1577 = vsub.s32 0, %v1576
    %v1578 = vsel %vm1572, %v1577, %v1576
    %vm1579 = vcmp.ne.s32.totalorder %v1578, 0
    %vm1580 = vcmp.lt.s32.totalorder %v1578, 0
    %vm1581 = vmand %vm1580, %vm1579
    %v1582 = vadd.s32 %v1578, 2
    %v1583 = vsel %vm1581, %v1582, %v1578
    %v1584 = vlaneseq
    %v1585 = vshrl.u32 %v1584, 7
    %vm1586 = vcmp.eq.s32.totalorder %v1583, %v1585
    %v1587 = vsel %vm1586, 1.0, 0.0
    %v1588 = vadd.s32 %v1585, 8
    %vm1589 = vcmp.lt.s32.totalorder %v1585, 0
    %v1590 = vsub.s32 0, %v1585
    %v1591 = vsel %vm1589, %v1590, %v1585
    %v1592 = vshrl.u32 %v1591, 1
    %v1593 = vand.u32 %v1591, 1
    %v1594 = vsub.s32 0, %v1593
    %v1595 = vsel %vm1589, %v1594, %v1593
    %vm1596 = vcmp.lt.s32.totalorder %v1588, 0
    %v1597 = vsub.s32 0, %v1588
    %v1598 = vsel %vm1596, %v1597, %v1588
    %v1599 = vshrl.u32 %v1598, 1
    %v1600 = vand.u32 %v1598, 1
    %v1601 = vsub.s32 0, %v1600
    %v1602 = vsel %vm1596, %v1601, %v1600
    %vm1603 = vcmp.ne.s32.totalorder %v1595, 0
    %vm1604 = vcmp.ne.s32.totalorder %v1602, 0
    %vm1605 = vcmp.lt.s32.totalorder %v1595, 0
    %vm1606 = vcmp.lt.s32.totalorder %v1602, 0
    %vm1607 = vmand %vm1605, %vm1603
    %vm1608 = vmand %vm1606, %vm1604
    %v1609 = vadd.s32 %v1595, 2
    %v1610 = vadd.s32 %v1602, 2
    %v1611 = vsel %vm1607, %v1609, %v1595
    %v1612 = vsel %vm1608, %v1610, %v1602
    %vm1613 = vcmp.eq.s32.totalorder %v1611, %v40
    %vm1614 = vcmp.eq.s32.totalorder %v1612, %v40
    %v1615 = vsel %vm1613, 1.0, 0.0
    %v1616 = vsel %vm1614, 1.0, 0.0
    %v1618 = vsel %vm1471, %v1587, 0
    %1620 = vmatprep.subr.mxu0 0.0
    %1621 = vmatpush1.msra.mxu0 0.0
    %1622 = vmatprep.subr.mxu0 0.0
    %1623 = vmatpush1.msra.mxu0 0.0
    %1624 = vmatprep.subr.mxu0 0.0
    %1625 = vmatpush1.msra.mxu0 0.0
    %1626 = vmatprep.subr.mxu0 0.0
    %1627 = vmatpush1.msra.mxu0 0.0
    %1628 = vmatprep.subr.mxu0 0.0
    %1629 = vmatpush1.msra.mxu0 0.0
    %1630 = vmatprep.subr.mxu0 0.0
    %1631 = vmatpush1.msra.mxu0 0.0
    %1632 = vmatprep.subr.mxu0 0.0
    %1633 = vmatpush1.msra.mxu0 0.0
    %1634 = vmatprep.subr.mxu0 0.0
    %1635 = vmatpush1.msra.mxu0 0.0
    %1636 = vmatprep.subr.mxu0 0.0
    %1637 = vmatpush1.msra.mxu0 0.0
    %1638 = vmatprep.subr.mxu0 0.0
    %1639 = vmatpush1.msra.mxu0 0.0
    %1640 = vmatprep.subr.mxu0 0.0
    %1641 = vmatpush1.msra.mxu0 0.0
    %1642 = vmatprep.subr.mxu0 0.0
    %1643 = vmatpush1.msra.mxu0 0.0
    %1644 = vmatprep.subr.mxu0 0.0
    %1645 = vmatpush1.msra.mxu0 0.0
    %1646 = vmatprep.subr.mxu0 0.0
    %1647 = vmatpush1.msra.mxu0 0.0
    %1648 = vmatprep.subr.mxu0 0.0
    %1649 = vmatpush1.msra.mxu0 %v1571
    %1650 = vmatprep.subr.mxu0 0.0
    %1651 = vmatpush1.msra.mxu0 %v1569
    %1652 = vmatprep.subr.mxu0 0.0
    %1653 = vmatpush2.msra.mxu0 0.0
    %1654 = vmatprep.subr.mxu0 0.0
    %1655 = vmatpush2.msra.mxu0 0.0
    %1656 = vmatprep.subr.mxu0 0.0
    %1657 = vmatpush2.msra.mxu0 0.0
    %1658 = vmatprep.subr.mxu0 0.0
    %1659 = vmatpush2.msra.mxu0 0.0
    %1660 = vmatprep.subr.mxu0 0.0
    %1661 = vmatpush2.msra.mxu0 0.0
    %1662 = vmatprep.subr.mxu0 0.0
    %1663 = vmatpush2.msra.mxu0 0.0
    %1664 = vmatprep.subr.mxu0 0.0
    %1665 = vmatpush2.msra.mxu0 0.0
    %1666 = vmatprep.subr.mxu0 0.0
    %1667 = vmatpush2.msra.mxu0 0.0
    %1668 = vmatprep.subr.mxu0 0.0
    %1669 = vmatpush2.msra.mxu0 0.0
    %1670 = vmatprep.subr.mxu0 0.0
    %1671 = vmatpush2.msra.mxu0 0.0
    %1672 = vmatprep.subr.mxu0 0.0
    %1673 = vmatpush2.msra.mxu0 0.0
    %1674 = vmatprep.subr.mxu0 0.0
    %1675 = vmatpush2.msra.mxu0 0.0
    %1676 = vmatprep.subr.mxu0 0.0
    %1677 = vmatpush2.msra.mxu0 0.0
    %1678 = vmatprep.subr.mxu0 0.0
    %1679 = vmatpush2.msra.mxu0 0.0
    %1680 = vmatprep.subr.mxu0 0.0
    %1681 = vmatpush2.msra.mxu0 0.0
    %1682 = vmatprep.subr.mxu0 0.0
    %1683 = vmatpush2.msra.mxu0 0.0
    %1684 = vmatprep.mubr.f32.mxu0 0.0
    %1685 = vmatmul.mubr.f32.gmra.mxu0 %v1618
    %v1686 = vpop.f32.mrf.mxu0
    %v1687 = vadd.f32 0.0, %v1686
    %v1688 = vpop.f32.mrf.mxu0
    %1689 = vdwg.mxu0
    %v1690 = vrcp.pop %v1687
    %vm1691 = vcmask 15360
    %v1693 = vsel %vm1691, %v1615, 0
    %v1696 = vsel %vm1691, %v1616, 0
    %vm1698 = vcmask 1041408
    %v1700 = vsel %vm1698, %v1690, 0
    %1702 = vmatprep.subr.mxu0 0.0
    %1703 = vmatpush1.msra.mxu0 0.0
    %1704 = vmatprep.subr.mxu0 0.0
    %1705 = vmatpush1.msra.mxu0 0.0
    %1706 = vmatprep.subr.mxu0 0.0
    %1707 = vmatpush1.msra.mxu0 0.0
    %1708 = vmatprep.subr.mxu0 0.0
    %1709 = vmatpush1.msra.mxu0 0.0
    %1710 = vmatprep.subr.mxu0 0.0
    %1711 = vmatpush1.msra.mxu0 0.0
    %1712 = vmatprep.subr.mxu0 0.0
    %1713 = vmatpush1.msra.mxu0 0.0
    %1714 = vmatprep.subr.mxu0 0.0
    %1715 = vmatpush1.msra.mxu0 0.0
    %1716 = vmatprep.subr.mxu0 0.0
    %1717 = vmatpush1.msra.mxu0 0.0
    %1718 = vmatprep.subr.mxu0 0.0
    %1719 = vmatpush1.msra.mxu0 0.0
    %1720 = vmatprep.subr.mxu0 0.0
    %1721 = vmatpush1.msra.mxu0 0.0
    %1722 = vmatprep.subr.mxu0 0.0
    %1723 = vmatpush1.msra.mxu0 0.0
    %1724 = vmatprep.subr.mxu0 0.0
    %1725 = vmatpush1.msra.mxu0 0.0
    %1726 = vmatprep.subr.mxu0 0.0
    %1727 = vmatpush1.msra.mxu0 0.0
    %1728 = vmatprep.subr.mxu0 0.0
    %1729 = vmatpush1.msra.mxu0 0.0
    %1730 = vmatprep.subr.mxu0 0.0
    %1731 = vmatpush1.msra.mxu0 0.0
    %1732 = vmatprep.subr.mxu0 0.0
    %1733 = vmatpush1.msra.mxu0 %v1700
    %1734 = vmatprep.subr.mxu0 0.0
    %1735 = vmatpush2.msra.mxu0 0.0
    %1736 = vmatprep.subr.mxu0 0.0
    %1737 = vmatpush2.msra.mxu0 0.0
    %1738 = vmatprep.subr.mxu0 0.0
    %1739 = vmatpush2.msra.mxu0 0.0
    %1740 = vmatprep.subr.mxu0 0.0
    %1741 = vmatpush2.msra.mxu0 0.0
    %1742 = vmatprep.subr.mxu0 0.0
    %1743 = vmatpush2.msra.mxu0 0.0
    %1744 = vmatprep.subr.mxu0 0.0
    %1745 = vmatpush2.msra.mxu0 0.0
    %1746 = vmatprep.subr.mxu0 0.0
    %1747 = vmatpush2.msra.mxu0 0.0
    %1748 = vmatprep.subr.mxu0 0.0
    %1749 = vmatpush2.msra.mxu0 0.0
    %1750 = vmatprep.subr.mxu0 0.0
    %1751 = vmatpush2.msra.mxu0 0.0
    %1752 = vmatprep.subr.mxu0 0.0
    %1753 = vmatpush2.msra.mxu0 0.0
    %1754 = vmatprep.subr.mxu0 0.0
    %1755 = vmatpush2.msra.mxu0 0.0
    %1756 = vmatprep.subr.mxu0 0.0
    %1757 = vmatpush2.msra.mxu0 0.0
    %1758 = vmatprep.subr.mxu0 0.0
    %1759 = vmatpush2.msra.mxu0 0.0
    %1760 = vmatprep.subr.mxu0 0.0
    %1761 = vmatpush2.msra.mxu0 0.0
    %1762 = vmatprep.subr.mxu0 0.0
    %1763 = vmatpush2.msra.mxu0 0.0
    %1764 = vmatprep.subr.mxu0 0.0
    %1765 = vmatpush2.msra.mxu0 0.0
    %1766 = vmatprep.mubr.f32.mxu0 0.0
    %1767 = vmatmul.mubr.f32.gmra.mxu0 %v1693
    %v1768 = vpop.f32.mrf.mxu0
    %v1769 = vadd.f32 0.0, %v1768
    %v1770 = vpop.f32.mrf.mxu0
    %1771 = vmatprep.mubr.f32.mxu0 0.0
    %1772 = vmatmul.mubr.f32.gmra.mxu0 %v1696
    %v1773 = vpop.f32.mrf.mxu0
    %v1774 = vadd.f32 0.0, %v1773
    %v1775 = vpop.f32.mrf.mxu0
    %1776 = vdwg.mxu0
    %v1777 = vmul.f32 %v1569, %v1769
    %v1778 = vmul.f32 %v1571, %v1774
    %vm1779 = vcmp.lt.s32.totalorder %v40, 0
    %v1780 = vsub.s32 0, %v40
    %v1781 = vsel %vm1779, %v1780, %v40
    %v1782 = vshrl.u32 %v1781, 5
    %v1783 = vand.u32 %v1781, 31
    %v1784 = vsub.s32 0, %v1783
    %v1785 = vsel %vm1779, %v1784, %v1783
    %vm1786 = vcmp.ne.s32.totalorder %v1785, 0
    %vm1787 = vcmp.lt.s32.totalorder %v1785, 0
    %vm1788 = vmand %vm1787, %vm1786
    %v1789 = vadd.s32 %v1785, 32
    %v1790 = vsel %vm1788, %v1789, %v1785
    %vm1791 = vcmp.lt.s32.totalorder %v1790, 16
    %v1792 = vsel %vm1791, 1, 0
    %vm1793 = vcmp.eq.s32.totalorder %v1792, 1
    %1795 = vset.pattern.permute.xlu0 0
    %1796 = vperm.xlu0 %1795, %v1777
    %v1797 = vpop.permute.xlu0 %1796
    %1800 = vset.pattern.permute.xlu0 0
    %1801 = vperm.xlu0 %1800, %v1778
    %v1802 = vpop.permute.xlu0 %1801
    %1804 = vset.pattern.permute.xlu0 4
    %1805 = vperm.xlu0 %1804, %v1777
    %v1806 = vpop.permute.xlu0 %1805
    %1808 = vset.pattern.permute.xlu0 4
    %1809 = vperm.xlu0 %1808, %v1778
    %v1810 = vpop.permute.xlu0 %1809
    %v1812 = vsel %vm1793, %v1797, %v1806
    %v1813 = vsel %vm1793, %v1802, %v1810
    %v1814 = vmul.f32 %v1812, %v1376
    %v1815 = vmul.f32 %v1813, %v1377
    %1816 = vset.pattern.permute.xlu0 1
    %1817 = vperm.xlu0 %1816, %v1777
    %v1818 = vpop.permute.xlu0 %1817
    %1820 = vset.pattern.permute.xlu0 1
    %1821 = vperm.xlu0 %1820, %v1778
    %v1822 = vpop.permute.xlu0 %1821
    %1824 = vset.pattern.permute.xlu0 5
    %1825 = vperm.xlu0 %1824, %v1777
    %v1826 = vpop.permute.xlu0 %1825
    %1828 = vset.pattern.permute.xlu0 5
    %1829 = vperm.xlu0 %1828, %v1778
    %v1830 = vpop.permute.xlu0 %1829
    %v1832 = vsel %vm1793, %v1818, %v1826
    %v1833 = vsel %vm1793, %v1822, %v1830
    %v1834 = vmul.f32 %v1832, %v1376
    %v1835 = vmul.f32 %v1833, %v1377
    %1836 = vset.pattern.permute.xlu0 2
    %1837 = vperm.xlu0 %1836, %v1777
    %v1838 = vpop.permute.xlu0 %1837
    %1840 = vset.pattern.permute.xlu0 2
    %1841 = vperm.xlu0 %1840, %v1778
    %v1842 = vpop.permute.xlu0 %1841
    %1844 = vset.pattern.permute.xlu0 6
    %1845 = vperm.xlu0 %1844, %v1777
    %v1846 = vpop.permute.xlu0 %1845
    %1848 = vset.pattern.permute.xlu0 6
    %1849 = vperm.xlu0 %1848, %v1778
    %v1850 = vpop.permute.xlu0 %1849
    %v1852 = vsel %vm1793, %v1838, %v1846
    %v1853 = vsel %vm1793, %v1842, %v1850
    %v1854 = vmul.f32 %v1852, %v1376
    %v1855 = vmul.f32 %v1853, %v1377
    %1856 = vset.pattern.permute.xlu0 3
    %1857 = vperm.xlu0 %1856, %v1777
    %v1858 = vpop.permute.xlu0 %1857
    %1860 = vset.pattern.permute.xlu0 3
    %1861 = vperm.xlu0 %1860, %v1778
    %v1862 = vpop.permute.xlu0 %1861
    %1864 = vset.pattern.permute.xlu0 7
    %1865 = vperm.xlu0 %1864, %v1777
    %v1866 = vpop.permute.xlu0 %1865
    %1868 = vset.pattern.permute.xlu0 7
    %1869 = vperm.xlu0 %1868, %v1778
    %v1870 = vpop.permute.xlu0 %1869
    %v1872 = vsel %vm1793, %v1858, %v1866
    %v1873 = vsel %vm1793, %v1862, %v1870
    %v1874 = vmul.f32 %v1872, %v1376
    %v1875 = vmul.f32 %v1873, %v1377
    %1878 = vrot.lane.b32.xlu0 %v1834, 64
    %v1879 = vpop.permute.xlu0 %1878
    %1880 = vrot.lane.b32.xlu0 %v1835, 64
    %v1881 = vpop.permute.xlu0 %1880
    %1886 = vrot.lane.b32.xlu0 %v1874, 64
    %v1887 = vpop.permute.xlu0 %1886
    %1888 = vrot.lane.b32.xlu0 %v1875, 64
    %v1889 = vpop.permute.xlu0 %1888
    %v1892 = vsel %vm210, %v1814, %v1879
    %v1893 = vsel %vm210, %v1815, %v1881
    %v1894 = vsel %vm210, %v1854, %v1887
    %v1895 = vsel %vm210, %v1855, %v1889
    %1896 = vmatprep.subr.mxu0 0.0
    %1897 = vmatpush1.msra.mxu0 0.0
    %1898 = vmatprep.subr.mxu0 0.0
    %1899 = vmatpush1.msra.mxu0 0.0
    %1900 = vmatprep.subr.mxu0 0.0
    %1901 = vmatpush1.msra.mxu0 0.0
    %1902 = vmatprep.subr.mxu0 0.0
    %1903 = vmatpush1.msra.mxu0 0.0
    %1904 = vmatprep.subr.mxu0 0.0
    %1905 = vmatpush1.msra.mxu0 0.0
    %1906 = vmatprep.subr.mxu0 0.0
    %1907 = vmatpush1.msra.mxu0 0.0
    %1908 = vmatprep.subr.mxu0 0.0
    %1909 = vmatpush1.msra.mxu0 0.0
    %1910 = vmatprep.subr.mxu0 0.0
    %1911 = vmatpush1.msra.mxu0 0.0
    %1912 = vmatprep.subr.mxu0 0.0
    %1913 = vmatpush1.msra.mxu0 0.0
    %1914 = vmatprep.subr.mxu0 0.0
    %1915 = vmatpush1.msra.mxu0 0.0
    %1916 = vmatprep.subr.mxu0 0.0
    %1917 = vmatpush1.msra.mxu0 0.0
    %1918 = vmatprep.subr.mxu0 0.0
    %1919 = vmatpush1.msra.mxu0 0.0
    %1920 = vmatprep.subr.mxu0 0.0
    %1921 = vmatpush1.msra.mxu0 0.0
    %1922 = vmatprep.subr.mxu0 0.0
    %1923 = vmatpush1.msra.mxu0 0.0
    %1924 = vmatprep.subr.mxu0 %v1895
    %1925 = vmatpush1.msra.mxu0 %v1893
    %1926 = vmatprep.subr.mxu0 %v1894
    %1927 = vmatpush1.msra.mxu0 %v1892
    %1928 = vmatprep.subr.mxu0 0.0
    %1929 = vmatpush2.msra.mxu0 0.0
    %1930 = vmatprep.subr.mxu0 0.0
    %1931 = vmatpush2.msra.mxu0 0.0
    %1932 = vmatprep.subr.mxu0 0.0
    %1933 = vmatpush2.msra.mxu0 0.0
    %1934 = vmatprep.subr.mxu0 0.0
    %1935 = vmatpush2.msra.mxu0 0.0
    %1936 = vmatprep.subr.mxu0 0.0
    %1937 = vmatpush2.msra.mxu0 0.0
    %1938 = vmatprep.subr.mxu0 0.0
    %1939 = vmatpush2.msra.mxu0 0.0
    %1940 = vmatprep.subr.mxu0 0.0
    %1941 = vmatpush2.msra.mxu0 0.0
    %1942 = vmatprep.subr.mxu0 0.0
    %1943 = vmatpush2.msra.mxu0 0.0
    %1944 = vmatprep.subr.mxu0 0.0
    %1945 = vmatpush2.msra.mxu0 0.0
    %1946 = vmatprep.subr.mxu0 0.0
    %1947 = vmatpush2.msra.mxu0 0.0
    %1948 = vmatprep.subr.mxu0 0.0
    %1949 = vmatpush2.msra.mxu0 0.0
    %1950 = vmatprep.subr.mxu0 0.0
    %1951 = vmatpush2.msra.mxu0 0.0
    %1952 = vmatprep.subr.mxu0 0.0
    %1953 = vmatpush2.msra.mxu0 0.0
    %1954 = vmatprep.subr.mxu0 0.0
    %1955 = vmatpush2.msra.mxu0 0.0
    %1956 = vmatprep.subr.mxu0 0.0
    %1957 = vmatpush2.msra.mxu0 0.0
    %1958 = vmatprep.subr.mxu0 0.0
    %1959 = vmatpush2.msra.mxu0 0.0
    %1960 = vmatprep.mubr.f32.mxu0 0.0
    %1961 = vmatmul.mubr.f32.gmra.mxu0 %v1618
    %v1962 = vpop.f32.mrf.mxu0
    %v1963 = vadd.f32 0.0, %v1962
    %v1964 = vpop.f32.mrf.mxu0
    %v1965 = vadd.f32 0.0, %v1964
    %1966 = vdwg.mxu0
    %v1967 = vld [vmem:[%s7] sm:$0xff]
    %v1968 = vld [vmem:[%s7 + $0x8] sm:$0xff]
    %v1969 = vld [vmem:[%s7 + $0x10] sm:$0xff]
    %v1970 = vld [vmem:[%s7 + $0x18] sm:$0xff]
    %v1971 = vld [vmem:[%s7 + $0x20] sm:$0xff]
    %v1972 = vld [vmem:[%s7 + $0x28] sm:$0xff]
    %v1973 = vld [vmem:[%s7 + $0x30] sm:$0xff]
    %v1974 = vld [vmem:[%s7 + $0x38] sm:$0xff]
    %v1975 = vld [vmem:[%s7 + $0x40] sm:$0xff]
    %v1976 = vld [vmem:[%s7 + $0x48] sm:$0xff]
    %v1977 = vld [vmem:[%s7 + $0x50] sm:$0xff]
    %v1978 = vld [vmem:[%s7 + $0x58] sm:$0xff]
    %v1979 = vld [vmem:[%s7 + $0x60] sm:$0xff]
    %v1980 = vld [vmem:[%s7 + $0x68] sm:$0xff]
    %v1981 = vld [vmem:[%s7 + $0x70] sm:$0xff]
    %v1982 = vld [vmem:[%s7 + $0x78] sm:$0xff]
    %v1983 = vld [vmem:[%s7 + $0x80] sm:$0xff]
    %v1984 = vld [vmem:[%s7 + $0x88] sm:$0xff]
    %v1985 = vld [vmem:[%s7 + $0x90] sm:$0xff]
    %v1986 = vld [vmem:[%s7 + $0x98] sm:$0xff]
    %v1987 = vld [vmem:[%s7 + $0xa0] sm:$0xff]
    %v1988 = vld [vmem:[%s7 + $0xa8] sm:$0xff]
    %v1989 = vld [vmem:[%s7 + $0xb0] sm:$0xff]
    %v1990 = vld [vmem:[%s7 + $0xb8] sm:$0xff]
    %v1991 = vld [vmem:[%s7 + $0xc0] sm:$0xff]
    %v1992 = vld [vmem:[%s7 + $0xc8] sm:$0xff]
    %v1993 = vld [vmem:[%s7 + $0xd0] sm:$0xff]
    %v1994 = vld [vmem:[%s7 + $0xd8] sm:$0xff]
    %v1995 = vld [vmem:[%s7 + $0xe0] sm:$0xff]
    %v1996 = vld [vmem:[%s7 + $0xe8] sm:$0xff]
    %v1997 = vld [vmem:[%s7 + $0xf0] sm:$0xff]
    %v1998 = vld [vmem:[%s7 + $0xf8] sm:$0xff]
    %v1999 = vld [vmem:[%s8] sm:$0x1]
    %v2001 = vlaneseq
    %v2002 = vshrl.u32 %v2001, 7
    %v2003 = vsub.s32 0, %v2002
    %v2004 = vrot.slane %v1999, %v2003
    %2006 = vmatprep.subr.mxu0 0.0
    %2007 = vmatpush1.msra.mxu0 %v1982
    %2008 = vmatprep.subr.mxu0 0.0
    %2009 = vmatpush1.msra.mxu0 %v1981
    %2010 = vmatprep.subr.mxu0 0.0
    %2011 = vmatpush1.msra.mxu0 %v1980
    %2012 = vmatprep.subr.mxu0 0.0
    %2013 = vmatpush1.msra.mxu0 %v1979
    %2014 = vmatprep.subr.mxu0 0.0
    %2015 = vmatpush1.msra.mxu0 %v1978
    %2016 = vmatprep.subr.mxu0 0.0
    %2017 = vmatpush1.msra.mxu0 %v1977
    %2018 = vmatprep.subr.mxu0 0.0
    %2019 = vmatpush1.msra.mxu0 %v1976
    %2020 = vmatprep.subr.mxu0 0.0
    %2021 = vmatpush1.msra.mxu0 %v1975
    %2022 = vmatprep.subr.mxu0 0.0
    %2023 = vmatpush1.msra.mxu0 %v1974
    %2024 = vmatprep.subr.mxu0 0.0
    %2025 = vmatpush1.msra.mxu0 %v1973
    %2026 = vmatprep.subr.mxu0 0.0
    %2027 = vmatpush1.msra.mxu0 %v1972
    %2028 = vmatprep.subr.mxu0 0.0
    %2029 = vmatpush1.msra.mxu0 %v1971
    %2030 = vmatprep.subr.mxu0 0.0
    %2031 = vmatpush1.msra.mxu0 %v1970
    %2032 = vmatprep.subr.mxu0 0.0
    %2033 = vmatpush1.msra.mxu0 %v1969
    %2034 = vmatprep.subr.mxu0 0.0
    %2035 = vmatpush1.msra.mxu0 %v1968
    %2036 = vmatprep.subr.mxu0 0.0
    %2037 = vmatpush1.msra.mxu0 %v1967
    %2038 = vmatprep.subr.mxu0 0.0
    %2039 = vmatpush2.msra.mxu0 %v1998
    %2040 = vmatprep.subr.mxu0 0.0
    %2041 = vmatpush2.msra.mxu0 %v1997
    %2042 = vmatprep.subr.mxu0 0.0
    %2043 = vmatpush2.msra.mxu0 %v1996
    %2044 = vmatprep.subr.mxu0 0.0
    %2045 = vmatpush2.msra.mxu0 %v1995
    %2046 = vmatprep.subr.mxu0 0.0
    %2047 = vmatpush2.msra.mxu0 %v1994
    %2048 = vmatprep.subr.mxu0 0.0
    %2049 = vmatpush2.msra.mxu0 %v1993
    %2050 = vmatprep.subr.mxu0 0.0
    %2051 = vmatpush2.msra.mxu0 %v1992
    %2052 = vmatprep.subr.mxu0 0.0
    %2053 = vmatpush2.msra.mxu0 %v1991
    %2054 = vmatprep.subr.mxu0 0.0
    %2055 = vmatpush2.msra.mxu0 %v1990
    %2056 = vmatprep.subr.mxu0 0.0
    %2057 = vmatpush2.msra.mxu0 %v1989
    %2058 = vmatprep.subr.mxu0 0.0
    %2059 = vmatpush2.msra.mxu0 %v1988
    %2060 = vmatprep.subr.mxu0 0.0
    %2061 = vmatpush2.msra.mxu0 %v1987
    %2062 = vmatprep.subr.mxu0 0.0
    %2063 = vmatpush2.msra.mxu0 %v1986
    %2064 = vmatprep.subr.mxu0 0.0
    %2065 = vmatpush2.msra.mxu0 %v1985
    %2066 = vmatprep.subr.mxu0 0.0
    %2067 = vmatpush2.msra.mxu0 %v1984
    %2068 = vmatprep.subr.mxu0 0.0
    %2069 = vmatpush2.msra.mxu0 %v1983
    %2070 = vmatprep.mubr.f32.mxu0 %v1965
    %2071 = vmatmul.mubr.f32.gmra.mxu0 %v1963
    %v2072 = vpop.f32.mrf.mxu0
    %v2073 = vadd.f32 %v2004, %v2072
    %v2074 = vpop.f32.mrf.mxu0
    %2075 = vdwg.mxu0
    %2077 = vrot.lane.b32.xlu0 %v2073, 112
    %v2078 = vpop.permute.xlu0 %2077
    %v2080 = vmul.f32 %v2073, %v2078
    %v2081 = vsub.f32 %v2073, %v2078
    %2083 = vrot.lane.b32.xlu0 %v2080, 16
    %v2084 = vpop.permute.xlu0 %2083
    %2087 = vrot.lane.b32.xlu0 %v2081, 32
    %v2088 = vpop.permute.xlu0 %2087
    %2090 = vrot.lane.b32.xlu0 %v2073, 32
    %v2091 = vpop.permute.xlu0 %2090
    %v2093 = vsel %vm1471, %v2073, %v2084
    %v2094 = vsel %vm1375, %v2093, %v2088
    %vm2095 = vcmask 392192
    %v2096 = vsel %vm2095, %v2094, %v2091
    %v2097 = vld [vmem:[%s9] sm:$0xff]
    %v2098 = vld [vmem:[%s9 + $0x8] sm:$0xff]
    %v2099 = vld [vmem:[%s9 + $0x10] sm:$0xff]
    %v2100 = vld [vmem:[%s9 + $0x18] sm:$0xff]
    %v2101 = vld [vmem:[%s9 + $0x20] sm:$0xff]
    %v2102 = vld [vmem:[%s9 + $0x28] sm:$0xff]
    %v2103 = vld [vmem:[%s9 + $0x30] sm:$0xff]
    %v2104 = vld [vmem:[%s9 + $0x38] sm:$0xff]
    %v2105 = vld [vmem:[%s10] sm:$0x1]
    %v2107 = vlaneseq
    %v2108 = vshrl.u32 %v2107, 7
    %v2109 = vsub.s32 0, %v2108
    %v2110 = vrot.slane %v2105, %v2109
    %v2113 = vsel %vm210, %v2096, 0
    %2115 = vmatprep.subr.mxu0 0.0
    %2116 = vmatpush1.msra.mxu0 0.0
    %2117 = vmatprep.subr.mxu0 0.0
    %2118 = vmatpush1.msra.mxu0 0.0
    %2119 = vmatprep.subr.mxu0 0.0
    %2120 = vmatpush1.msra.mxu0 0.0
    %2121 = vmatprep.subr.mxu0 0.0
    %2122 = vmatpush1.msra.mxu0 0.0
    %2123 = vmatprep.subr.mxu0 0.0
    %2124 = vmatpush1.msra.mxu0 0.0
    %2125 = vmatprep.subr.mxu0 0.0
    %2126 = vmatpush1.msra.mxu0 0.0
    %2127 = vmatprep.subr.mxu0 0.0
    %2128 = vmatpush1.msra.mxu0 0.0
    %2129 = vmatprep.subr.mxu0 0.0
    %2130 = vmatpush1.msra.mxu0 0.0
    %2131 = vmatprep.subr.mxu0 0.0
    %2132 = vmatpush1.msra.mxu0 %v2104
    %2133 = vmatprep.subr.mxu0 0.0
    %2134 = vmatpush1.msra.mxu0 %v2103
    %2135 = vmatprep.subr.mxu0 0.0
    %2136 = vmatpush1.msra.mxu0 %v2102
    %2137 = vmatprep.subr.mxu0 0.0
    %2138 = vmatpush1.msra.mxu0 %v2101
    %2139 = vmatprep.subr.mxu0 0.0
    %2140 = vmatpush1.msra.mxu0 %v2100
    %2141 = vmatprep.subr.mxu0 0.0
    %2142 = vmatpush1.msra.mxu0 %v2099
    %2143 = vmatprep.subr.mxu0 0.0
    %2144 = vmatpush1.msra.mxu0 %v2098
    %2145 = vmatprep.subr.mxu0 0.0
    %2146 = vmatpush1.msra.mxu0 %v2097
    %2147 = vmatprep.subr.mxu0 0.0
    %2148 = vmatpush2.msra.mxu0 0.0
    %2149 = vmatprep.subr.mxu0 0.0
    %2150 = vmatpush2.msra.mxu0 0.0
    %2151 = vmatprep.subr.mxu0 0.0
    %2152 = vmatpush2.msra.mxu0 0.0
    %2153 = vmatprep.subr.mxu0 0.0
    %2154 = vmatpush2.msra.mxu0 0.0
    %2155 = vmatprep.subr.mxu0 0.0
    %2156 = vmatpush2.msra.mxu0 0.0
    %2157 = vmatprep.subr.mxu0 0.0
    %2158 = vmatpush2.msra.mxu0 0.0
    %2159 = vmatprep.subr.mxu0 0.0
    %2160 = vmatpush2.msra.mxu0 0.0
    %2161 = vmatprep.subr.mxu0 0.0
    %2162 = vmatpush2.msra.mxu0 0.0
    %2163 = vmatprep.subr.mxu0 0.0
    %2164 = vmatpush2.msra.mxu0 0.0
    %2165 = vmatprep.subr.mxu0 0.0
    %2166 = vmatpush2.msra.mxu0 0.0
    %2167 = vmatprep.subr.mxu0 0.0
    %2168 = vmatpush2.msra.mxu0 0.0
    %2169 = vmatprep.subr.mxu0 0.0
    %2170 = vmatpush2.msra.mxu0 0.0
    %2171 = vmatprep.subr.mxu0 0.0
    %2172 = vmatpush2.msra.mxu0 0.0
    %2173 = vmatprep.subr.mxu0 0.0
    %2174 = vmatpush2.msra.mxu0 0.0
    %2175 = vmatprep.subr.mxu0 0.0
    %2176 = vmatpush2.msra.mxu0 0.0
    %2177 = vmatprep.subr.mxu0 0.0
    %2178 = vmatpush2.msra.mxu0 0.0
    %2179 = vmatprep.mubr.f32.mxu0 0.0
    %2180 = vmatmul.mubr.f32.gmra.mxu0 %v2113
    %v2181 = vpop.f32.mrf.mxu0
    %v2182 = vadd.f32 %v2110, %v2181
    %v2183 = vpop.f32.mrf.mxu0
    %2184 = vdwg.mxu0
    %vm2185 = vcmask 17408
    %2186 = vst.msk [vmem:[#allocation5] sm:$0x3] %vm2185, %v2182
    // Predicated region
    $region46: #{snli_bilstm_attentive_forward.1} parent=1 // pred_check
      _
    $region47: #{snli_bilstm_attentive_forward.1} parent=1 // pred_check_branch
      %2188 = sbr.rel (0) target = $region49
    $region48: #{snli_bilstm_attentive_forward.1} parent=1 // pred_region
      %s2190 = ssub.s32 32, 32
      %2191 = vsyncadd [#allocation6], %s2190
      %s2193 = sshll.u32 [#allocation5], 4
      %s2194 = int_to_ptr.vmem [resolvable:$true] %s2193
      %2196 = dma.vmem_to_hbm [thread:$0]  %s2194, 32, %s11, [#allocation6]
    $region49: #{snli_bilstm_attentive_forward.1} parent=1 // pred_fallthru
      _
    // Predicated region
    $region50: #{snli_bilstm_attentive_forward.1} parent=1 // pred_check
      _
    $region51: #{snli_bilstm_attentive_forward.1} parent=1 // pred_check_branch
      %2198 = sbr.rel (0) target = $region53
    $region52: #{snli_bilstm_attentive_forward.1} parent=1 // pred_region
      %2199 = dma.done [#allocation6], 32
    $region53: #{snli_bilstm_attentive_forward.1} parent=1 // pred_fallthru
      _
    %2200 = vsyncpa [#allocation6], 1

</llo_original>
